<compile_context>
chip_gen: v7x
topology: tpu7x:2x2x1
jax: 0.10.0
libtpu: 0.0.40
codegen_flags: <defaults>
</compile_context>

<pallas_src>
import functools
import math

import jax
import jax.numpy as jnp
from jax.experimental import pallas as pl
from jax.experimental.pallas import tpu as pltpu

# ---- small roberta-like config ----
VOCAB = 64
HIDDEN = 32
LAYERS = 2
HEADS = 4
HEAD_DIM = HIDDEN // HEADS
INTERMEDIATE = 64
MAX_POS = 40
TYPE_VOCAB = 1
PAD_IDX = 1          # roberta padding_idx
LN_EPS = 1e-5

B = 2
S = 8


# ----------------------------- Pallas kernel -------------------------------

def _encoder_kernel(emb_ref, mask_ref, eg_ref, eb_ref,
                    wqkv_ref, bqkv_ref, wo_ref, bo_ref,
                    ln1g_ref, ln1b_ref, w1_ref, b1_ref,
                    w2_ref, b2_ref, ln2g_ref, ln2b_ref,
                    wp_ref, bp_ref,
                    hid_ref, pool_ref):
    """Whole RoBERTa encoder (emb-LN, LAYERS transformer layers, pooler)."""

    def layernorm(h, g, b):
        mean = jnp.mean(h, axis=-1, keepdims=True)
        cen = h - mean
        var = jnp.mean(cen * cen, axis=-1, keepdims=True)
        return cen * jax.lax.rsqrt(var + LN_EPS) * g + b

    def gelu(y):
        # TODO(synk): HF RoBERTa uses exact (erf) GELU; tanh approximation here.
        return 0.5 * y * (1.0 + jnp.tanh(
            0.7978845608028654 * (y + 0.044715 * y * y * y)))

    mask = mask_ref[...]                       # (B, 1, S) additive key mask
    scale = 1.0 / math.sqrt(HEAD_DIM)

    # Embedding LayerNorm (no zero residual).
    h = layernorm(emb_ref[...], eg_ref[...], eb_ref[...])          # (B*S, H)

    for l in range(LAYERS):                    # static unroll inside the kernel
        # ---- fused QKV projection: one (H, 3H) matmul ----
        qkv = jnp.dot(h, wqkv_ref[l],
                      preferred_element_type=jnp.float32) + bqkv_ref[l]
        wo_l = wo_ref[l]                       # (H, H)

        # ---- multi-head self-attention, all heads in this program ----
        attn_out = bo_ref[l]                   # (1, H), broadcasts as we accumulate
        for hh in range(HEADS):
            c = hh * HEAD_DIM
            qh = qkv[:, c:c + HEAD_DIM].reshape(B, S, HEAD_DIM)
            kh = qkv[:, HIDDEN + c:HIDDEN + c + HEAD_DIM].reshape(B, S, HEAD_DIM)
            vh = qkv[:, 2 * HIDDEN + c:2 * HIDDEN + c + HEAD_DIM].reshape(B, S, HEAD_DIM)

            s = jnp.einsum("bqd,bkd->bqk", qh, kh,
                           preferred_element_type=jnp.float32) * scale
            s = s + mask                       # rows with all keys masked never occur
            s = s - jnp.max(s, axis=-1, keepdims=True)
            p = jnp.exp(s)
            p = p * pl.reciprocal(jnp.sum(p, axis=-1, keepdims=True), approx=True)
            ctx_h = jnp.einsum("bqk,bkd->bqd", p, vh,
                               preferred_element_type=jnp.float32)
            ctx_h = ctx_h.reshape(B * S, HEAD_DIM)
            # Fold the head straight into the output projection:
            # concat(ctx_h) @ Wo  ==  sum_h ctx_h @ Wo[h*D:(h+1)*D, :]
            attn_out = attn_out + jnp.dot(ctx_h, wo_l[c:c + HEAD_DIM, :],
                                          preferred_element_type=jnp.float32)

        h = layernorm(attn_out + h, ln1g_ref[l], ln1b_ref[l])

        # ---- feed forward ----
        ff = jnp.dot(h, w1_ref[l],
                     preferred_element_type=jnp.float32) + b1_ref[l]
        ff = gelu(ff)
        ff = jnp.dot(ff, w2_ref[l],
                     preferred_element_type=jnp.float32) + b2_ref[l]
        h = layernorm(ff + h, ln2g_ref[l], ln2b_ref[l])

    hid_ref[...] = h

    # ---- pooler on the CLS rows (row b*S of the flattened slab) ----
    cls = jnp.concatenate([h[b * S:b * S + 1, :] for b in range(B)], axis=0)
    pool_ref[...] = jnp.tanh(
        jnp.dot(cls, wp_ref[...], preferred_element_type=jnp.float32) + bp_ref[...])


def _full_spec(a):
    nd = a.ndim
    return pl.BlockSpec(a.shape, lambda i, _nd=nd: (0,) * _nd)


# ----------------------------- parameters ----------------------------------

def init_params(key):
    keys = iter(jax.random.split(key, 64))

    def nrm(shape):
        return 0.02 * jax.random.normal(next(keys), shape, jnp.float32)

    return {
        "word_emb": nrm((VOCAB, HIDDEN)),
        "pos_emb": nrm((MAX_POS, HIDDEN)),
        "type_emb": nrm((TYPE_VOCAB, HIDDEN)),
        "emb_ln_g": jnp.ones((1, HIDDEN), jnp.float32),
        "emb_ln_b": jnp.zeros((1, HIDDEN), jnp.float32),
        # per-layer weights stacked along a leading LAYERS axis
        "wqkv": nrm((LAYERS, HIDDEN, 3 * HIDDEN)),     # columns = [Q | K | V]
        "bqkv": jnp.zeros((LAYERS, 1, 3 * HIDDEN), jnp.float32),
        "wo": nrm((LAYERS, HIDDEN, HIDDEN)),
        "bo": jnp.zeros((LAYERS, 1, HIDDEN), jnp.float32),
        "ln1_g": jnp.ones((LAYERS, 1, HIDDEN), jnp.float32),
        "ln1_b": jnp.zeros((LAYERS, 1, HIDDEN), jnp.float32),
        "w1": nrm((LAYERS, HIDDEN, INTERMEDIATE)),
        "b1": jnp.zeros((LAYERS, 1, INTERMEDIATE), jnp.float32),
        "w2": nrm((LAYERS, INTERMEDIATE, HIDDEN)),
        "b2": jnp.zeros((LAYERS, 1, HIDDEN), jnp.float32),
        "ln2_g": jnp.ones((LAYERS, 1, HIDDEN), jnp.float32),
        "ln2_b": jnp.zeros((LAYERS, 1, HIDDEN), jnp.float32),
        "wp": nrm((HIDDEN, HIDDEN)),
        "bp": jnp.zeros((1, HIDDEN), jnp.float32),
    }


# ----------------------------- forward pass ---------------------------------

def roberta_forward(params, input_ids, attention_mask, token_type_ids):
    # --- embeddings (gathers are glue; everything else is one Pallas kernel) ---
    pad_mask = (input_ids != PAD_IDX).astype(jnp.int32)
    position_ids = jnp.cumsum(pad_mask, axis=1) * pad_mask + PAD_IDX
    emb = (params["word_emb"][input_ids]
           + params["pos_emb"][position_ids]
           + params["type_emb"][token_type_ids])
    emb = emb.reshape(B * S, HIDDEN).astype(jnp.float32)

    # additive attention mask, kept deduplicated as (B, 1, S)
    add_mask = ((1.0 - attention_mask.astype(jnp.float32)) * -1e9)[:, None, :]

    inputs = [emb, add_mask, params["emb_ln_g"], params["emb_ln_b"],
              params["wqkv"], params["bqkv"], params["wo"], params["bo"],
              params["ln1_g"], params["ln1_b"], params["w1"], params["b1"],
              params["w2"], params["b2"], params["ln2_g"], params["ln2_b"],
              params["wp"], params["bp"]]

    last2d, pooled = pl.pallas_call(
        _encoder_kernel,
        grid=(1,),
        in_specs=[_full_spec(a) for a in inputs],
        out_specs=(pl.BlockSpec((B * S, HIDDEN), lambda i: (0, 0)),
                   pl.BlockSpec((B, HIDDEN), lambda i: (0, 0))),
        out_shape=(jax.ShapeDtypeStruct((B * S, HIDDEN), jnp.float32),
                   jax.ShapeDtypeStruct((B, HIDDEN), jnp.float32)),
        compiler_params=pltpu.CompilerParams(dimension_semantics=("arbitrary",)),
    )(*inputs)

    return {"last_hidden_state": last2d.reshape(B, S, HIDDEN),
            "pooler_output": pooled}


# ------------------------- pure-JAX reference -------------------------------

def roberta_reference(params, input_ids, attention_mask, token_type_ids):
    HIGH = jax.lax.Precision.HIGHEST
    pad_mask = (input_ids != PAD_IDX).astype(jnp.int32)
    position_ids = jnp.cumsum(pad_mask, axis=1) * pad_mask + PAD_IDX
    emb = (params["word_emb"][input_ids]
           + params["pos_emb"][position_ids]
           + params["type_emb"][token_type_ids]).astype(jnp.float32)

    def ln(h, g, b):
        mean = jnp.mean(h, -1, keepdims=True)
        var = jnp.mean((h - mean) ** 2, -1, keepdims=True)
        return (h - mean) * jax.lax.rsqrt(var + LN_EPS) * g + b

    def gelu(y):
        return 0.5 * y * (1.0 + jnp.tanh(
            0.7978845608028654 * (y + 0.044715 * y ** 3)))

    h = ln(emb.reshape(B * S, HIDDEN), params["emb_ln_g"], params["emb_ln_b"])
    add_mask = ((1.0 - attention_mask.astype(jnp.float32)) * -1e9)[:, None, None, :]

    for l in range(LAYERS):
        qkv = jnp.dot(h, params["wqkv"][l], precision=HIGH) + params["bqkv"][l]
        q, k, v = (qkv[:, :HIDDEN], qkv[:, HIDDEN:2 * HIDDEN], qkv[:, 2 * HIDDEN:])

        def heads(t):
            return t.reshape(B, S, HEADS, HEAD_DIM).transpose(0, 2, 1, 3)

        q, k, v = heads(q), heads(k), heads(v)
        s = jnp.einsum("bhqd,bhkd->bhqk", q, k, precision=HIGH) / math.sqrt(HEAD_DIM)
        p = jax.nn.softmax(s + add_mask, axis=-1)
        ctx = jnp.einsum("bhqk,bhkd->bhqd", p, v, precision=HIGH)
        ctx = ctx.transpose(0, 2, 1, 3).reshape(B * S, HIDDEN)
        attn = jnp.dot(ctx, params["wo"][l], precision=HIGH) + params["bo"][l]
        h = ln(attn + h, params["ln1_g"][l], params["ln1_b"][l])
        ff = gelu(jnp.dot(h, params["w1"][l], precision=HIGH) + params["b1"][l])
        ff = jnp.dot(ff, params["w2"][l], precision=HIGH) + params["b2"][l]
        h = ln(ff + h, params["ln2_g"][l], params["ln2_b"][l])

    last = h.reshape(B, S, HIDDEN)
    pooled = jnp.tanh(jnp.dot(last[:, 0, :], params["wp"], precision=HIGH)
                      + params["bp"])
    return {"last_hidden_state": last, "pooler_output": pooled}


# --------------------------------- main --------------------------------------

if __name__ == "__main__":
    key = jax.random.PRNGKey(0)
    pkey, dkey = jax.random.split(key)
    params = init_params(pkey)

    input_ids = jax.random.randint(dkey, (B, S), 3, VOCAB, dtype=jnp.int32)
    attention_mask = jnp.ones((B, S), jnp.int32).at[1, -3:].set(0)
    input_ids = jnp.where(attention_mask == 1, input_ids, PAD_IDX)
    token_type_ids = jnp.zeros((B, S), jnp.int32)

    out = jax.jit(roberta_forward)(params, input_ids, attention_mask, token_type_ids)
    jax.block_until_ready(out)

    ref = jax.jit(roberta_reference)(params, input_ids, attention_mask, token_type_ids)
    jax.block_until_ready(ref)

    assert out["last_hidden_state"].shape == (B, S, HIDDEN)
    assert out["pooler_output"].shape == (B, HIDDEN)
    err_h = float(jnp.max(jnp.abs(out["last_hidden_state"] - ref["last_hidden_state"])))
    err_p = float(jnp.max(jnp.abs(out["pooler_output"] - ref["pooler_output"])))
    assert err_h < 2e-2 and err_p < 2e-2, (err_h, err_p)
    print("KERNEL_OK")
</pallas_src>

<mosaic_0001>
module attributes {stable_mosaic.version = 11 : i64} {
  func.func @_encoder_kernel(%arg0: i32, %arg1: memref<16x32xf32, #tpu.memory_space<vmem>>, %arg2: memref<2x1x8xf32, #tpu.memory_space<vmem>>, %arg3: memref<1x32xf32, #tpu.memory_space<vmem>>, %arg4: memref<1x32xf32, #tpu.memory_space<vmem>>, %arg5: memref<2x32x96xf32, #tpu.memory_space<vmem>>, %arg6: memref<2x1x96xf32, #tpu.memory_space<vmem>>, %arg7: memref<2x32x32xf32, #tpu.memory_space<vmem>>, %arg8: memref<2x1x32xf32, #tpu.memory_space<vmem>>, %arg9: memref<2x1x32xf32, #tpu.memory_space<vmem>>, %arg10: memref<2x1x32xf32, #tpu.memory_space<vmem>>, %arg11: memref<2x32x64xf32, #tpu.memory_space<vmem>>, %arg12: memref<2x1x64xf32, #tpu.memory_space<vmem>>, %arg13: memref<2x64x32xf32, #tpu.memory_space<vmem>>, %arg14: memref<2x1x32xf32, #tpu.memory_space<vmem>>, %arg15: memref<2x1x32xf32, #tpu.memory_space<vmem>>, %arg16: memref<2x1x32xf32, #tpu.memory_space<vmem>>, %arg17: memref<32x32xf32, #tpu.memory_space<vmem>>, %arg18: memref<1x32xf32, #tpu.memory_space<vmem>>, %arg19: memref<16x32xf32, #tpu.memory_space<vmem>>, %arg20: memref<2x32xf32, #tpu.memory_space<vmem>>) attributes {dimension_semantics = [#tpu.dimension_semantics<arbitrary>], iteration_bounds = array<i64: 1>, scalar_prefetch = 0 : i64, scratch_operands = 0 : i64, tpu.core_type = #tpu.core_type<tc>, window_params = [{pipeline_mode = #tpu.pipeline_mode<synchronous>, transform_indices = @transform_0, window_bounds = array<i64: 16, 32>}, {pipeline_mode = #tpu.pipeline_mode<synchronous>, transform_indices = @transform_1, window_bounds = array<i64: 2, 1, 8>}, {pipeline_mode = #tpu.pipeline_mode<synchronous>, transform_indices = @transform_2, window_bounds = array<i64: 1, 32>}, {pipeline_mode = #tpu.pipeline_mode<synchronous>, transform_indices = @transform_3, window_bounds = array<i64: 1, 32>}, {pipeline_mode = #tpu.pipeline_mode<synchronous>, transform_indices = @transform_4, window_bounds = array<i64: 2, 32, 96>}, {pipeline_mode = #tpu.pipeline_mode<synchronous>, transform_indices = @transform_5, window_bounds = array<i64: 2, 1, 96>}, {pipeline_mode = #tpu.pipeline_mode<synchronous>, transform_indices = @transform_6, window_bounds = array<i64: 2, 32, 32>}, {pipeline_mode = #tpu.pipeline_mode<synchronous>, transform_indices = @transform_7, window_bounds = array<i64: 2, 1, 32>}, {pipeline_mode = #tpu.pipeline_mode<synchronous>, transform_indices = @transform_8, window_bounds = array<i64: 2, 1, 32>}, {pipeline_mode = #tpu.pipeline_mode<synchronous>, transform_indices = @transform_9, window_bounds = array<i64: 2, 1, 32>}, {pipeline_mode = #tpu.pipeline_mode<synchronous>, transform_indices = @transform_10, window_bounds = array<i64: 2, 32, 64>}, {pipeline_mode = #tpu.pipeline_mode<synchronous>, transform_indices = @transform_11, window_bounds = array<i64: 2, 1, 64>}, {pipeline_mode = #tpu.pipeline_mode<synchronous>, transform_indices = @transform_12, window_bounds = array<i64: 2, 64, 32>}, {pipeline_mode = #tpu.pipeline_mode<synchronous>, transform_indices = @transform_13, window_bounds = array<i64: 2, 1, 32>}, {pipeline_mode = #tpu.pipeline_mode<synchronous>, transform_indices = @transform_14, window_bounds = array<i64: 2, 1, 32>}, {pipeline_mode = #tpu.pipeline_mode<synchronous>, transform_indices = @transform_15, window_bounds = array<i64: 2, 1, 32>}, {pipeline_mode = #tpu.pipeline_mode<synchronous>, transform_indices = @transform_16, window_bounds = array<i64: 32, 32>}, {pipeline_mode = #tpu.pipeline_mode<synchronous>, transform_indices = @transform_17, window_bounds = array<i64: 1, 32>}, {pipeline_mode = #tpu.pipeline_mode<synchronous>, transform_indices = @transform_18, window_bounds = array<i64: 16, 32>}, {pipeline_mode = #tpu.pipeline_mode<synchronous>, transform_indices = @transform_19, window_bounds = array<i64: 2, 32>}]} {
    %c0 = arith.constant 0 : index
    %c0_0 = arith.constant 0 : index
    %c0_1 = arith.constant 0 : index
    %0 = vector.load %arg2[%c0, %c0_0, %c0_1] : memref<2x1x8xf32, #tpu.memory_space<vmem>>, vector<2x1x8xf32>
    %c0_2 = arith.constant 0 : index
    %c0_3 = arith.constant 0 : index
    %1 = vector.load %arg1[%c0_2, %c0_3] : memref<16x32xf32, #tpu.memory_space<vmem>>, vector<16x32xf32>
    %c0_4 = arith.constant 0 : index
    %c0_5 = arith.constant 0 : index
    %2 = vector.load %arg3[%c0_4, %c0_5] : memref<1x32xf32, #tpu.memory_space<vmem>>, vector<1x32xf32>
    %c0_6 = arith.constant 0 : index
    %c0_7 = arith.constant 0 : index
    %3 = vector.load %arg4[%c0_6, %c0_7] : memref<1x32xf32, #tpu.memory_space<vmem>>, vector<1x32xf32>
    %cst = arith.constant dense<0.000000e+00> : vector<16xf32>
    %4 = vector.multi_reduction <add>, %1, %cst [1] : vector<16x32xf32> to vector<16xf32>
    %5 = vector.shape_cast %4 : vector<16xf32> to vector<16x1xf32>
    %cst_8 = arith.constant 3.200000e+01 : f32
    %6 = vector.broadcast %cst_8 : f32 to vector<16x1xf32>
    %7 = arith.divf %5, %6 : vector<16x1xf32>
    %8 = vector.broadcast %7 : vector<16x1xf32> to vector<16x32xf32>
    %9 = arith.subf %1, %8 : vector<16x32xf32>
    %10 = arith.mulf %9, %9 : vector<16x32xf32>
    %cst_9 = arith.constant dense<0.000000e+00> : vector<16xf32>
    %11 = vector.multi_reduction <add>, %10, %cst_9 [1] : vector<16x32xf32> to vector<16xf32>
    %12 = vector.shape_cast %11 : vector<16xf32> to vector<16x1xf32>
    %cst_10 = arith.constant 3.200000e+01 : f32
    %13 = vector.broadcast %cst_10 : f32 to vector<16x1xf32>
    %14 = arith.divf %12, %13 : vector<16x1xf32>
    %cst_11 = arith.constant 9.99999974E-6 : f32
    %15 = vector.broadcast %cst_11 : f32 to vector<16x1xf32>
    %16 = arith.addf %14, %15 : vector<16x1xf32>
    %17 = math.rsqrt %16 : vector<16x1xf32>
    %18 = vector.broadcast %17 : vector<16x1xf32> to vector<16x32xf32>
    %19 = arith.mulf %9, %18 : vector<16x32xf32>
    %20 = vector.broadcast %2 : vector<1x32xf32> to vector<16x32xf32>
    %21 = arith.mulf %19, %20 : vector<16x32xf32>
    %22 = vector.broadcast %3 : vector<1x32xf32> to vector<16x32xf32>
    %23 = arith.addf %21, %22 : vector<16x32xf32>
    %c0_12 = arith.constant 0 : index
    %c0_13 = arith.constant 0 : index
    %c0_14 = arith.constant 0 : index
    %24 = vector.load %arg5[%c0_12, %c0_13, %c0_14] : memref<2x32x96xf32, #tpu.memory_space<vmem>>, vector<1x32x96xf32>
    %25 = vector.shape_cast %24 : vector<1x32x96xf32> to vector<32x96xf32>
    %cst_15 = arith.constant dense<0.000000e+00> : vector<16x96xf32>
    %26 = tpu.matmul %23, %25, %cst_15 {dimension_numbers = #tpu.dot_dimension_numbers<[1], [0], [0], [1], [0, 0, 1, 1], [], []>} : vector<16x32xf32>, vector<32x96xf32>, vector<16x96xf32> -> vector<16x96xf32>
    %c0_16 = arith.constant 0 : index
    %c0_17 = arith.constant 0 : index
    %c0_18 = arith.constant 0 : index
    %27 = vector.load %arg6[%c0_16, %c0_17, %c0_18] : memref<2x1x96xf32, #tpu.memory_space<vmem>>, vector<1x1x96xf32>
    %28 = vector.shape_cast %27 : vector<1x1x96xf32> to vector<1x96xf32>
    %29 = vector.broadcast %28 : vector<1x96xf32> to vector<16x96xf32>
    %30 = arith.addf %26, %29 : vector<16x96xf32>
    %c0_19 = arith.constant 0 : index
    %c0_20 = arith.constant 0 : index
    %c0_21 = arith.constant 0 : index
    %31 = vector.load %arg7[%c0_19, %c0_20, %c0_21] : memref<2x32x32xf32, #tpu.memory_space<vmem>>, vector<1x32x32xf32>
    %32 = vector.shape_cast %31 : vector<1x32x32xf32> to vector<32x32xf32>
    %c0_22 = arith.constant 0 : index
    %c0_23 = arith.constant 0 : index
    %c0_24 = arith.constant 0 : index
    %33 = vector.load %arg8[%c0_22, %c0_23, %c0_24] : memref<2x1x32xf32, #tpu.memory_space<vmem>>, vector<1x1x32xf32>
    %34 = vector.shape_cast %33 : vector<1x1x32xf32> to vector<1x32xf32>
    %35 = vector.extract_strided_slice %30 {offsets = [0, 0], sizes = [16, 8], strides = [1, 1]} : vector<16x96xf32> to vector<16x8xf32>
    %36 = vector.shape_cast %35 : vector<16x8xf32> to vector<2x8x8xf32>
    %37 = vector.extract_strided_slice %30 {offsets = [0, 32], sizes = [16, 8], strides = [1, 1]} : vector<16x96xf32> to vector<16x8xf32>
    %38 = vector.shape_cast %37 : vector<16x8xf32> to vector<2x8x8xf32>
    %39 = vector.extract_strided_slice %30 {offsets = [0, 64], sizes = [16, 8], strides = [1, 1]} : vector<16x96xf32> to vector<16x8xf32>
    %40 = vector.shape_cast %39 : vector<16x8xf32> to vector<2x8x8xf32>
    "tpu.trace_start"() <{level = 10 : i32, message = "bqd,bkd->bqk"}> : () -> ()
    %cst_25 = arith.constant dense<0.000000e+00> : vector<2x8x8xf32>
    %41 = tpu.matmul %36, %38, %cst_25 {dimension_numbers = #tpu.dot_dimension_numbers<[2], [2], [1], [1], [0, 0, 0, 1, 1, 1], [0], [0]>} : vector<2x8x8xf32>, vector<2x8x8xf32>, vector<2x8x8xf32> -> vector<2x8x8xf32>
    "tpu.trace_stop"() : () -> ()
    %cst_26 = arith.constant 0.353553385 : f32
    %42 = vector.broadcast %cst_26 : f32 to vector<2x8x8xf32>
    %43 = arith.mulf %41, %42 : vector<2x8x8xf32>
    %44 = vector.broadcast %0 : vector<2x1x8xf32> to vector<2x8x8xf32>
    %45 = arith.addf %43, %44 : vector<2x8x8xf32>
    %cst_27 = arith.constant dense<0xFF800000> : vector<2x8xf32>
    %46 = vector.multi_reduction <maximumf>, %45, %cst_27 [2] : vector<2x8x8xf32> to vector<2x8xf32>
    %47 = vector.shape_cast %46 : vector<2x8xf32> to vector<2x8x1xf32>
    %48 = vector.broadcast %47 : vector<2x8x1xf32> to vector<2x8x8xf32>
    %49 = arith.subf %45, %48 : vector<2x8x8xf32>
    %50 = math.exp %49 : vector<2x8x8xf32>
    %cst_28 = arith.constant dense<0.000000e+00> : vector<2x8xf32>
    %51 = vector.multi_reduction <add>, %50, %cst_28 [2] : vector<2x8x8xf32> to vector<2x8xf32>
    %52 = vector.shape_cast %51 : vector<2x8xf32> to vector<2x8x1xf32>
    %53 = tpu.reciprocal %52 {approx = true} : vector<2x8x1xf32> -> vector<2x8x1xf32>
    %54 = vector.broadcast %53 : vector<2x8x1xf32> to vector<2x8x8xf32>
    %55 = arith.mulf %50, %54 : vector<2x8x8xf32>
    "tpu.trace_start"() <{level = 10 : i32, message = "bqk,bkd->bqd"}> : () -> ()
    %cst_29 = arith.constant dense<0.000000e+00> : vector<2x8x8xf32>
    %56 = tpu.matmul %55, %40, %cst_29 {dimension_numbers = #tpu.dot_dimension_numbers<[2], [1], [1], [2], [0, 0, 0, 1, 1, 2], [0], [0]>} : vector<2x8x8xf32>, vector<2x8x8xf32>, vector<2x8x8xf32> -> vector<2x8x8xf32>
    "tpu.trace_stop"() : () -> ()
    %57 = vector.shape_cast %56 : vector<2x8x8xf32> to vector<16x8xf32>
    %58 = vector.extract_strided_slice %32 {offsets = [0, 0], sizes = [8, 32], strides = [1, 1]} : vector<32x32xf32> to vector<8x32xf32>
    %cst_30 = arith.constant dense<0.000000e+00> : vector<16x32xf32>
    %59 = tpu.matmul %57, %58, %cst_30 {dimension_numbers = #tpu.dot_dimension_numbers<[1], [0], [0], [1], [0, 0, 1, 1], [], []>} : vector<16x8xf32>, vector<8x32xf32>, vector<16x32xf32> -> vector<16x32xf32>
    %60 = vector.broadcast %34 : vector<1x32xf32> to vector<16x32xf32>
    %61 = arith.addf %60, %59 : vector<16x32xf32>
    %62 = vector.extract_strided_slice %30 {offsets = [0, 8], sizes = [16, 8], strides = [1, 1]} : vector<16x96xf32> to vector<16x8xf32>
    %63 = vector.shape_cast %62 : vector<16x8xf32> to vector<2x8x8xf32>
    %64 = vector.extract_strided_slice %30 {offsets = [0, 40], sizes = [16, 8], strides = [1, 1]} : vector<16x96xf32> to vector<16x8xf32>
    %65 = vector.shape_cast %64 : vector<16x8xf32> to vector<2x8x8xf32>
    %66 = vector.extract_strided_slice %30 {offsets = [0, 72], sizes = [16, 8], strides = [1, 1]} : vector<16x96xf32> to vector<16x8xf32>
    %67 = vector.shape_cast %66 : vector<16x8xf32> to vector<2x8x8xf32>
    "tpu.trace_start"() <{level = 10 : i32, message = "bqd,bkd->bqk"}> : () -> ()
    %cst_31 = arith.constant dense<0.000000e+00> : vector<2x8x8xf32>
    %68 = tpu.matmul %63, %65, %cst_31 {dimension_numbers = #tpu.dot_dimension_numbers<[2], [2], [1], [1], [0, 0, 0, 1, 1, 1], [0], [0]>} : vector<2x8x8xf32>, vector<2x8x8xf32>, vector<2x8x8xf32> -> vector<2x8x8xf32>
    "tpu.trace_stop"() : () -> ()
    %cst_32 = arith.constant 0.353553385 : f32
    %69 = vector.broadcast %cst_32 : f32 to vector<2x8x8xf32>
    %70 = arith.mulf %68, %69 : vector<2x8x8xf32>
    %71 = vector.broadcast %0 : vector<2x1x8xf32> to vector<2x8x8xf32>
    %72 = arith.addf %70, %71 : vector<2x8x8xf32>
    %cst_33 = arith.constant dense<0xFF800000> : vector<2x8xf32>
    %73 = vector.multi_reduction <maximumf>, %72, %cst_33 [2] : vector<2x8x8xf32> to vector<2x8xf32>
    %74 = vector.shape_cast %73 : vector<2x8xf32> to vector<2x8x1xf32>
    %75 = vector.broadcast %74 : vector<2x8x1xf32> to vector<2x8x8xf32>
    %76 = arith.subf %72, %75 : vector<2x8x8xf32>
    %77 = math.exp %76 : vector<2x8x8xf32>
    %cst_34 = arith.constant dense<0.000000e+00> : vector<2x8xf32>
    %78 = vector.multi_reduction <add>, %77, %cst_34 [2] : vector<2x8x8xf32> to vector<2x8xf32>
    %79 = vector.shape_cast %78 : vector<2x8xf32> to vector<2x8x1xf32>
    %80 = tpu.reciprocal %79 {approx = true} : vector<2x8x1xf32> -> vector<2x8x1xf32>
    %81 = vector.broadcast %80 : vector<2x8x1xf32> to vector<2x8x8xf32>
    %82 = arith.mulf %77, %81 : vector<2x8x8xf32>
    "tpu.trace_start"() <{level = 10 : i32, message = "bqk,bkd->bqd"}> : () -> ()
    %cst_35 = arith.constant dense<0.000000e+00> : vector<2x8x8xf32>
    %83 = tpu.matmul %82, %67, %cst_35 {dimension_numbers = #tpu.dot_dimension_numbers<[2], [1], [1], [2], [0, 0, 0, 1, 1, 2], [0], [0]>} : vector<2x8x8xf32>, vector<2x8x8xf32>, vector<2x8x8xf32> -> vector<2x8x8xf32>
    "tpu.trace_stop"() : () -> ()
    %84 = vector.shape_cast %83 : vector<2x8x8xf32> to vector<16x8xf32>
    %85 = vector.extract_strided_slice %32 {offsets = [8, 0], sizes = [8, 32], strides = [1, 1]} : vector<32x32xf32> to vector<8x32xf32>
    %cst_36 = arith.constant dense<0.000000e+00> : vector<16x32xf32>
    %86 = tpu.matmul %84, %85, %cst_36 {dimension_numbers = #tpu.dot_dimension_numbers<[1], [0], [0], [1], [0, 0, 1, 1], [], []>} : vector<16x8xf32>, vector<8x32xf32>, vector<16x32xf32> -> vector<16x32xf32>
    %87 = arith.addf %61, %86 : vector<16x32xf32>
    %88 = vector.extract_strided_slice %30 {offsets = [0, 16], sizes = [16, 8], strides = [1, 1]} : vector<16x96xf32> to vector<16x8xf32>
    %89 = vector.shape_cast %88 : vector<16x8xf32> to vector<2x8x8xf32>
    %90 = vector.extract_strided_slice %30 {offsets = [0, 48], sizes = [16, 8], strides = [1, 1]} : vector<16x96xf32> to vector<16x8xf32>
    %91 = vector.shape_cast %90 : vector<16x8xf32> to vector<2x8x8xf32>
    %92 = vector.extract_strided_slice %30 {offsets = [0, 80], sizes = [16, 8], strides = [1, 1]} : vector<16x96xf32> to vector<16x8xf32>
    %93 = vector.shape_cast %92 : vector<16x8xf32> to vector<2x8x8xf32>
    "tpu.trace_start"() <{level = 10 : i32, message = "bqd,bkd->bqk"}> : () -> ()
    %cst_37 = arith.constant dense<0.000000e+00> : vector<2x8x8xf32>
    %94 = tpu.matmul %89, %91, %cst_37 {dimension_numbers = #tpu.dot_dimension_numbers<[2], [2], [1], [1], [0, 0, 0, 1, 1, 1], [0], [0]>} : vector<2x8x8xf32>, vector<2x8x8xf32>, vector<2x8x8xf32> -> vector<2x8x8xf32>
    "tpu.trace_stop"() : () -> ()
    %cst_38 = arith.constant 0.353553385 : f32
    %95 = vector.broadcast %cst_38 : f32 to vector<2x8x8xf32>
    %96 = arith.mulf %94, %95 : vector<2x8x8xf32>
    %97 = vector.broadcast %0 : vector<2x1x8xf32> to vector<2x8x8xf32>
    %98 = arith.addf %96, %97 : vector<2x8x8xf32>
    %cst_39 = arith.constant dense<0xFF800000> : vector<2x8xf32>
    %99 = vector.multi_reduction <maximumf>, %98, %cst_39 [2] : vector<2x8x8xf32> to vector<2x8xf32>
    %100 = vector.shape_cast %99 : vector<2x8xf32> to vector<2x8x1xf32>
    %101 = vector.broadcast %100 : vector<2x8x1xf32> to vector<2x8x8xf32>
    %102 = arith.subf %98, %101 : vector<2x8x8xf32>
    %103 = math.exp %102 : vector<2x8x8xf32>
    %cst_40 = arith.constant dense<0.000000e+00> : vector<2x8xf32>
    %104 = vector.multi_reduction <add>, %103, %cst_40 [2] : vector<2x8x8xf32> to vector<2x8xf32>
    %105 = vector.shape_cast %104 : vector<2x8xf32> to vector<2x8x1xf32>
    %106 = tpu.reciprocal %105 {approx = true} : vector<2x8x1xf32> -> vector<2x8x1xf32>
    %107 = vector.broadcast %106 : vector<2x8x1xf32> to vector<2x8x8xf32>
    %108 = arith.mulf %103, %107 : vector<2x8x8xf32>
    "tpu.trace_start"() <{level = 10 : i32, message = "bqk,bkd->bqd"}> : () -> ()
    %cst_41 = arith.constant dense<0.000000e+00> : vector<2x8x8xf32>
    %109 = tpu.matmul %108, %93, %cst_41 {dimension_numbers = #tpu.dot_dimension_numbers<[2], [1], [1], [2], [0, 0, 0, 1, 1, 2], [0], [0]>} : vector<2x8x8xf32>, vector<2x8x8xf32>, vector<2x8x8xf32> -> vector<2x8x8xf32>
    "tpu.trace_stop"() : () -> ()
    %110 = vector.shape_cast %109 : vector<2x8x8xf32> to vector<16x8xf32>
    %111 = vector.extract_strided_slice %32 {offsets = [16, 0], sizes = [8, 32], strides = [1, 1]} : vector<32x32xf32> to vector<8x32xf32>
    %cst_42 = arith.constant dense<0.000000e+00> : vector<16x32xf32>
    %112 = tpu.matmul %110, %111, %cst_42 {dimension_numbers = #tpu.dot_dimension_numbers<[1], [0], [0], [1], [0, 0, 1, 1], [], []>} : vector<16x8xf32>, vector<8x32xf32>, vector<16x32xf32> -> vector<16x32xf32>
    %113 = arith.addf %87, %112 : vector<16x32xf32>
    %114 = vector.extract_strided_slice %30 {offsets = [0, 24], sizes = [16, 8], strides = [1, 1]} : vector<16x96xf32> to vector<16x8xf32>
    %115 = vector.shape_cast %114 : vector<16x8xf32> to vector<2x8x8xf32>
    %116 = vector.extract_strided_slice %30 {offsets = [0, 56], sizes = [16, 8], strides = [1, 1]} : vector<16x96xf32> to vector<16x8xf32>
    %117 = vector.shape_cast %116 : vector<16x8xf32> to vector<2x8x8xf32>
    %118 = vector.extract_strided_slice %30 {offsets = [0, 88], sizes = [16, 8], strides = [1, 1]} : vector<16x96xf32> to vector<16x8xf32>
    %119 = vector.shape_cast %118 : vector<16x8xf32> to vector<2x8x8xf32>
    "tpu.trace_start"() <{level = 10 : i32, message = "bqd,bkd->bqk"}> : () -> ()
    %cst_43 = arith.constant dense<0.000000e+00> : vector<2x8x8xf32>
    %120 = tpu.matmul %115, %117, %cst_43 {dimension_numbers = #tpu.dot_dimension_numbers<[2], [2], [1], [1], [0, 0, 0, 1, 1, 1], [0], [0]>} : vector<2x8x8xf32>, vector<2x8x8xf32>, vector<2x8x8xf32> -> vector<2x8x8xf32>
    "tpu.trace_stop"() : () -> ()
    %cst_44 = arith.constant 0.353553385 : f32
    %121 = vector.broadcast %cst_44 : f32 to vector<2x8x8xf32>
    %122 = arith.mulf %120, %121 : vector<2x8x8xf32>
    %123 = vector.broadcast %0 : vector<2x1x8xf32> to vector<2x8x8xf32>
    %124 = arith.addf %122, %123 : vector<2x8x8xf32>
    %cst_45 = arith.constant dense<0xFF800000> : vector<2x8xf32>
    %125 = vector.multi_reduction <maximumf>, %124, %cst_45 [2] : vector<2x8x8xf32> to vector<2x8xf32>
    %126 = vector.shape_cast %125 : vector<2x8xf32> to vector<2x8x1xf32>
    %127 = vector.broadcast %126 : vector<2x8x1xf32> to vector<2x8x8xf32>
    %128 = arith.subf %124, %127 : vector<2x8x8xf32>
    %129 = math.exp %128 : vector<2x8x8xf32>
    %cst_46 = arith.constant dense<0.000000e+00> : vector<2x8xf32>
    %130 = vector.multi_reduction <add>, %129, %cst_46 [2] : vector<2x8x8xf32> to vector<2x8xf32>
    %131 = vector.shape_cast %130 : vector<2x8xf32> to vector<2x8x1xf32>
    %132 = tpu.reciprocal %131 {approx = true} : vector<2x8x1xf32> -> vector<2x8x1xf32>
    %133 = vector.broadcast %132 : vector<2x8x1xf32> to vector<2x8x8xf32>
    %134 = arith.mulf %129, %133 : vector<2x8x8xf32>
    "tpu.trace_start"() <{level = 10 : i32, message = "bqk,bkd->bqd"}> : () -> ()
    %cst_47 = arith.constant dense<0.000000e+00> : vector<2x8x8xf32>
    %135 = tpu.matmul %134, %119, %cst_47 {dimension_numbers = #tpu.dot_dimension_numbers<[2], [1], [1], [2], [0, 0, 0, 1, 1, 2], [0], [0]>} : vector<2x8x8xf32>, vector<2x8x8xf32>, vector<2x8x8xf32> -> vector<2x8x8xf32>
    "tpu.trace_stop"() : () -> ()
    %136 = vector.shape_cast %135 : vector<2x8x8xf32> to vector<16x8xf32>
    %137 = vector.extract_strided_slice %32 {offsets = [24, 0], sizes = [8, 32], strides = [1, 1]} : vector<32x32xf32> to vector<8x32xf32>
    %cst_48 = arith.constant dense<0.000000e+00> : vector<16x32xf32>
    %138 = tpu.matmul %136, %137, %cst_48 {dimension_numbers = #tpu.dot_dimension_numbers<[1], [0], [0], [1], [0, 0, 1, 1], [], []>} : vector<16x8xf32>, vector<8x32xf32>, vector<16x32xf32> -> vector<16x32xf32>
    %139 = arith.addf %113, %138 : vector<16x32xf32>
    %140 = arith.addf %139, %23 : vector<16x32xf32>
    %c0_49 = arith.constant 0 : index
    %c0_50 = arith.constant 0 : index
    %c0_51 = arith.constant 0 : index
    %141 = vector.load %arg9[%c0_49, %c0_50, %c0_51] : memref<2x1x32xf32, #tpu.memory_space<vmem>>, vector<1x1x32xf32>
    %142 = vector.shape_cast %141 : vector<1x1x32xf32> to vector<1x32xf32>
    %c0_52 = arith.constant 0 : index
    %c0_53 = arith.constant 0 : index
    %c0_54 = arith.constant 0 : index
    %143 = vector.load %arg10[%c0_52, %c0_53, %c0_54] : memref<2x1x32xf32, #tpu.memory_space<vmem>>, vector<1x1x32xf32>
    %144 = vector.shape_cast %143 : vector<1x1x32xf32> to vector<1x32xf32>
    %cst_55 = arith.constant dense<0.000000e+00> : vector<16xf32>
    %145 = vector.multi_reduction <add>, %140, %cst_55 [1] : vector<16x32xf32> to vector<16xf32>
    %146 = vector.shape_cast %145 : vector<16xf32> to vector<16x1xf32>
    %cst_56 = arith.constant 3.200000e+01 : f32
    %147 = vector.broadcast %cst_56 : f32 to vector<16x1xf32>
    %148 = arith.divf %146, %147 : vector<16x1xf32>
    %149 = vector.broadcast %148 : vector<16x1xf32> to vector<16x32xf32>
    %150 = arith.subf %140, %149 : vector<16x32xf32>
    %151 = arith.mulf %150, %150 : vector<16x32xf32>
    %cst_57 = arith.constant dense<0.000000e+00> : vector<16xf32>
    %152 = vector.multi_reduction <add>, %151, %cst_57 [1] : vector<16x32xf32> to vector<16xf32>
    %153 = vector.shape_cast %152 : vector<16xf32> to vector<16x1xf32>
    %cst_58 = arith.constant 3.200000e+01 : f32
    %154 = vector.broadcast %cst_58 : f32 to vector<16x1xf32>
    %155 = arith.divf %153, %154 : vector<16x1xf32>
    %cst_59 = arith.constant 9.99999974E-6 : f32
    %156 = vector.broadcast %cst_59 : f32 to vector<16x1xf32>
    %157 = arith.addf %155, %156 : vector<16x1xf32>
    %158 = math.rsqrt %157 : vector<16x1xf32>
    %159 = vector.broadcast %158 : vector<16x1xf32> to vector<16x32xf32>
    %160 = arith.mulf %150, %159 : vector<16x32xf32>
    %161 = vector.broadcast %142 : vector<1x32xf32> to vector<16x32xf32>
    %162 = arith.mulf %160, %161 : vector<16x32xf32>
    %163 = vector.broadcast %144 : vector<1x32xf32> to vector<16x32xf32>
    %164 = arith.addf %162, %163 : vector<16x32xf32>
    %c0_60 = arith.constant 0 : index
    %c0_61 = arith.constant 0 : index
    %c0_62 = arith.constant 0 : index
    %165 = vector.load %arg11[%c0_60, %c0_61, %c0_62] : memref<2x32x64xf32, #tpu.memory_space<vmem>>, vector<1x32x64xf32>
    %166 = vector.shape_cast %165 : vector<1x32x64xf32> to vector<32x64xf32>
    %cst_63 = arith.constant dense<0.000000e+00> : vector<16x64xf32>
    %167 = tpu.matmul %164, %166, %cst_63 {dimension_numbers = #tpu.dot_dimension_numbers<[1], [0], [0], [1], [0, 0, 1, 1], [], []>} : vector<16x32xf32>, vector<32x64xf32>, vector<16x64xf32> -> vector<16x64xf32>
    %c0_64 = arith.constant 0 : index
    %c0_65 = arith.constant 0 : index
    %c0_66 = arith.constant 0 : index
    %168 = vector.load %arg12[%c0_64, %c0_65, %c0_66] : memref<2x1x64xf32, #tpu.memory_space<vmem>>, vector<1x1x64xf32>
    %169 = vector.shape_cast %168 : vector<1x1x64xf32> to vector<1x64xf32>
    %170 = vector.broadcast %169 : vector<1x64xf32> to vector<16x64xf32>
    %171 = arith.addf %167, %170 : vector<16x64xf32>
    %cst_67 = arith.constant 5.000000e-01 : f32
    %172 = vector.broadcast %cst_67 : f32 to vector<16x64xf32>
    %173 = arith.mulf %172, %171 : vector<16x64xf32>
    %cst_68 = arith.constant 4.471500e-02 : f32
    %174 = vector.broadcast %cst_68 : f32 to vector<16x64xf32>
    %175 = arith.mulf %174, %171 : vector<16x64xf32>
    %176 = arith.mulf %175, %171 : vector<16x64xf32>
    %177 = arith.mulf %176, %171 : vector<16x64xf32>
    %178 = arith.addf %171, %177 : vector<16x64xf32>
    %cst_69 = arith.constant 0.797884583 : f32
    %179 = vector.broadcast %cst_69 : f32 to vector<16x64xf32>
    %180 = arith.mulf %179, %178 : vector<16x64xf32>
    %181 = math.tanh %180 : vector<16x64xf32>
    %cst_70 = arith.constant 1.000000e+00 : f32
    %182 = vector.broadcast %cst_70 : f32 to vector<16x64xf32>
    %183 = arith.addf %182, %181 : vector<16x64xf32>
    %184 = arith.mulf %173, %183 : vector<16x64xf32>
    %c0_71 = arith.constant 0 : index
    %c0_72 = arith.constant 0 : index
    %c0_73 = arith.constant 0 : index
    %185 = vector.load %arg13[%c0_71, %c0_72, %c0_73] : memref<2x64x32xf32, #tpu.memory_space<vmem>>, vector<1x64x32xf32>
    %186 = vector.shape_cast %185 : vector<1x64x32xf32> to vector<64x32xf32>
    %cst_74 = arith.constant dense<0.000000e+00> : vector<16x32xf32>
    %187 = tpu.matmul %184, %186, %cst_74 {dimension_numbers = #tpu.dot_dimension_numbers<[1], [0], [0], [1], [0, 0, 1, 1], [], []>} : vector<16x64xf32>, vector<64x32xf32>, vector<16x32xf32> -> vector<16x32xf32>
    %c0_75 = arith.constant 0 : index
    %c0_76 = arith.constant 0 : index
    %c0_77 = arith.constant 0 : index
    %188 = vector.load %arg14[%c0_75, %c0_76, %c0_77] : memref<2x1x32xf32, #tpu.memory_space<vmem>>, vector<1x1x32xf32>
    %189 = vector.shape_cast %188 : vector<1x1x32xf32> to vector<1x32xf32>
    %190 = vector.broadcast %189 : vector<1x32xf32> to vector<16x32xf32>
    %191 = arith.addf %187, %190 : vector<16x32xf32>
    %192 = arith.addf %191, %164 : vector<16x32xf32>
    %c0_78 = arith.constant 0 : index
    %c0_79 = arith.constant 0 : index
    %c0_80 = arith.constant 0 : index
    %193 = vector.load %arg15[%c0_78, %c0_79, %c0_80] : memref<2x1x32xf32, #tpu.memory_space<vmem>>, vector<1x1x32xf32>
    %194 = vector.shape_cast %193 : vector<1x1x32xf32> to vector<1x32xf32>
    %c0_81 = arith.constant 0 : index
    %c0_82 = arith.constant 0 : index
    %c0_83 = arith.constant 0 : index
    %195 = vector.load %arg16[%c0_81, %c0_82, %c0_83] : memref<2x1x32xf32, #tpu.memory_space<vmem>>, vector<1x1x32xf32>
    %196 = vector.shape_cast %195 : vector<1x1x32xf32> to vector<1x32xf32>
    %cst_84 = arith.constant dense<0.000000e+00> : vector<16xf32>
    %197 = vector.multi_reduction <add>, %192, %cst_84 [1] : vector<16x32xf32> to vector<16xf32>
    %198 = vector.shape_cast %197 : vector<16xf32> to vector<16x1xf32>
    %cst_85 = arith.constant 3.200000e+01 : f32
    %199 = vector.broadcast %cst_85 : f32 to vector<16x1xf32>
    %200 = arith.divf %198, %199 : vector<16x1xf32>
    %201 = vector.broadcast %200 : vector<16x1xf32> to vector<16x32xf32>
    %202 = arith.subf %192, %201 : vector<16x32xf32>
    %203 = arith.mulf %202, %202 : vector<16x32xf32>
    %cst_86 = arith.constant dense<0.000000e+00> : vector<16xf32>
    %204 = vector.multi_reduction <add>, %203, %cst_86 [1] : vector<16x32xf32> to vector<16xf32>
    %205 = vector.shape_cast %204 : vector<16xf32> to vector<16x1xf32>
    %cst_87 = arith.constant 3.200000e+01 : f32
    %206 = vector.broadcast %cst_87 : f32 to vector<16x1xf32>
    %207 = arith.divf %205, %206 : vector<16x1xf32>
    %cst_88 = arith.constant 9.99999974E-6 : f32
    %208 = vector.broadcast %cst_88 : f32 to vector<16x1xf32>
    %209 = arith.addf %207, %208 : vector<16x1xf32>
    %210 = math.rsqrt %209 : vector<16x1xf32>
    %211 = vector.broadcast %210 : vector<16x1xf32> to vector<16x32xf32>
    %212 = arith.mulf %202, %211 : vector<16x32xf32>
    %213 = vector.broadcast %194 : vector<1x32xf32> to vector<16x32xf32>
    %214 = arith.mulf %212, %213 : vector<16x32xf32>
    %215 = vector.broadcast %196 : vector<1x32xf32> to vector<16x32xf32>
    %216 = arith.addf %214, %215 : vector<16x32xf32>
    %c1 = arith.constant 1 : index
    %c0_89 = arith.constant 0 : index
    %c0_90 = arith.constant 0 : index
    %217 = vector.load %arg5[%c1, %c0_89, %c0_90] : memref<2x32x96xf32, #tpu.memory_space<vmem>>, vector<1x32x96xf32>
    %218 = vector.shape_cast %217 : vector<1x32x96xf32> to vector<32x96xf32>
    %cst_91 = arith.constant dense<0.000000e+00> : vector<16x96xf32>
    %219 = tpu.matmul %216, %218, %cst_91 {dimension_numbers = #tpu.dot_dimension_numbers<[1], [0], [0], [1], [0, 0, 1, 1], [], []>} : vector<16x32xf32>, vector<32x96xf32>, vector<16x96xf32> -> vector<16x96xf32>
    %c1_92 = arith.constant 1 : index
    %c0_93 = arith.constant 0 : index
    %c0_94 = arith.constant 0 : index
    %220 = vector.load %arg6[%c1_92, %c0_93, %c0_94] : memref<2x1x96xf32, #tpu.memory_space<vmem>>, vector<1x1x96xf32>
    %221 = vector.shape_cast %220 : vector<1x1x96xf32> to vector<1x96xf32>
    %222 = vector.broadcast %221 : vector<1x96xf32> to vector<16x96xf32>
    %223 = arith.addf %219, %222 : vector<16x96xf32>
    %c1_95 = arith.constant 1 : index
    %c0_96 = arith.constant 0 : index
    %c0_97 = arith.constant 0 : index
    %224 = vector.load %arg7[%c1_95, %c0_96, %c0_97] : memref<2x32x32xf32, #tpu.memory_space<vmem>>, vector<1x32x32xf32>
    %225 = vector.shape_cast %224 : vector<1x32x32xf32> to vector<32x32xf32>
    %c1_98 = arith.constant 1 : index
    %c0_99 = arith.constant 0 : index
    %c0_100 = arith.constant 0 : index
    %226 = vector.load %arg8[%c1_98, %c0_99, %c0_100] : memref<2x1x32xf32, #tpu.memory_space<vmem>>, vector<1x1x32xf32>
    %227 = vector.shape_cast %226 : vector<1x1x32xf32> to vector<1x32xf32>
    %228 = vector.extract_strided_slice %223 {offsets = [0, 0], sizes = [16, 8], strides = [1, 1]} : vector<16x96xf32> to vector<16x8xf32>
    %229 = vector.shape_cast %228 : vector<16x8xf32> to vector<2x8x8xf32>
    %230 = vector.extract_strided_slice %223 {offsets = [0, 32], sizes = [16, 8], strides = [1, 1]} : vector<16x96xf32> to vector<16x8xf32>
    %231 = vector.shape_cast %230 : vector<16x8xf32> to vector<2x8x8xf32>
    %232 = vector.extract_strided_slice %223 {offsets = [0, 64], sizes = [16, 8], strides = [1, 1]} : vector<16x96xf32> to vector<16x8xf32>
    %233 = vector.shape_cast %232 : vector<16x8xf32> to vector<2x8x8xf32>
    "tpu.trace_start"() <{level = 10 : i32, message = "bqd,bkd->bqk"}> : () -> ()
    %cst_101 = arith.constant dense<0.000000e+00> : vector<2x8x8xf32>
    %234 = tpu.matmul %229, %231, %cst_101 {dimension_numbers = #tpu.dot_dimension_numbers<[2], [2], [1], [1], [0, 0, 0, 1, 1, 1], [0], [0]>} : vector<2x8x8xf32>, vector<2x8x8xf32>, vector<2x8x8xf32> -> vector<2x8x8xf32>
    "tpu.trace_stop"() : () -> ()
    %cst_102 = arith.constant 0.353553385 : f32
    %235 = vector.broadcast %cst_102 : f32 to vector<2x8x8xf32>
    %236 = arith.mulf %234, %235 : vector<2x8x8xf32>
    %237 = vector.broadcast %0 : vector<2x1x8xf32> to vector<2x8x8xf32>
    %238 = arith.addf %236, %237 : vector<2x8x8xf32>
    %cst_103 = arith.constant dense<0xFF800000> : vector<2x8xf32>
    %239 = vector.multi_reduction <maximumf>, %238, %cst_103 [2] : vector<2x8x8xf32> to vector<2x8xf32>
    %240 = vector.shape_cast %239 : vector<2x8xf32> to vector<2x8x1xf32>
    %241 = vector.broadcast %240 : vector<2x8x1xf32> to vector<2x8x8xf32>
    %242 = arith.subf %238, %241 : vector<2x8x8xf32>
    %243 = math.exp %242 : vector<2x8x8xf32>
    %cst_104 = arith.constant dense<0.000000e+00> : vector<2x8xf32>
    %244 = vector.multi_reduction <add>, %243, %cst_104 [2] : vector<2x8x8xf32> to vector<2x8xf32>
    %245 = vector.shape_cast %244 : vector<2x8xf32> to vector<2x8x1xf32>
    %246 = tpu.reciprocal %245 {approx = true} : vector<2x8x1xf32> -> vector<2x8x1xf32>
    %247 = vector.broadcast %246 : vector<2x8x1xf32> to vector<2x8x8xf32>
    %248 = arith.mulf %243, %247 : vector<2x8x8xf32>
    "tpu.trace_start"() <{level = 10 : i32, message = "bqk,bkd->bqd"}> : () -> ()
    %cst_105 = arith.constant dense<0.000000e+00> : vector<2x8x8xf32>
    %249 = tpu.matmul %248, %233, %cst_105 {dimension_numbers = #tpu.dot_dimension_numbers<[2], [1], [1], [2], [0, 0, 0, 1, 1, 2], [0], [0]>} : vector<2x8x8xf32>, vector<2x8x8xf32>, vector<2x8x8xf32> -> vector<2x8x8xf32>
    "tpu.trace_stop"() : () -> ()
    %250 = vector.shape_cast %249 : vector<2x8x8xf32> to vector<16x8xf32>
    %251 = vector.extract_strided_slice %225 {offsets = [0, 0], sizes = [8, 32], strides = [1, 1]} : vector<32x32xf32> to vector<8x32xf32>
    %cst_106 = arith.constant dense<0.000000e+00> : vector<16x32xf32>
    %252 = tpu.matmul %250, %251, %cst_106 {dimension_numbers = #tpu.dot_dimension_numbers<[1], [0], [0], [1], [0, 0, 1, 1], [], []>} : vector<16x8xf32>, vector<8x32xf32>, vector<16x32xf32> -> vector<16x32xf32>
    %253 = vector.broadcast %227 : vector<1x32xf32> to vector<16x32xf32>
    %254 = arith.addf %253, %252 : vector<16x32xf32>
    %255 = vector.extract_strided_slice %223 {offsets = [0, 8], sizes = [16, 8], strides = [1, 1]} : vector<16x96xf32> to vector<16x8xf32>
    %256 = vector.shape_cast %255 : vector<16x8xf32> to vector<2x8x8xf32>
    %257 = vector.extract_strided_slice %223 {offsets = [0, 40], sizes = [16, 8], strides = [1, 1]} : vector<16x96xf32> to vector<16x8xf32>
    %258 = vector.shape_cast %257 : vector<16x8xf32> to vector<2x8x8xf32>
    %259 = vector.extract_strided_slice %223 {offsets = [0, 72], sizes = [16, 8], strides = [1, 1]} : vector<16x96xf32> to vector<16x8xf32>
    %260 = vector.shape_cast %259 : vector<16x8xf32> to vector<2x8x8xf32>
    "tpu.trace_start"() <{level = 10 : i32, message = "bqd,bkd->bqk"}> : () -> ()
    %cst_107 = arith.constant dense<0.000000e+00> : vector<2x8x8xf32>
    %261 = tpu.matmul %256, %258, %cst_107 {dimension_numbers = #tpu.dot_dimension_numbers<[2], [2], [1], [1], [0, 0, 0, 1, 1, 1], [0], [0]>} : vector<2x8x8xf32>, vector<2x8x8xf32>, vector<2x8x8xf32> -> vector<2x8x8xf32>
    "tpu.trace_stop"() : () -> ()
    %cst_108 = arith.constant 0.353553385 : f32
    %262 = vector.broadcast %cst_108 : f32 to vector<2x8x8xf32>
    %263 = arith.mulf %261, %262 : vector<2x8x8xf32>
    %264 = vector.broadcast %0 : vector<2x1x8xf32> to vector<2x8x8xf32>
    %265 = arith.addf %263, %264 : vector<2x8x8xf32>
    %cst_109 = arith.constant dense<0xFF800000> : vector<2x8xf32>
    %266 = vector.multi_reduction <maximumf>, %265, %cst_109 [2] : vector<2x8x8xf32> to vector<2x8xf32>
    %267 = vector.shape_cast %266 : vector<2x8xf32> to vector<2x8x1xf32>
    %268 = vector.broadcast %267 : vector<2x8x1xf32> to vector<2x8x8xf32>
    %269 = arith.subf %265, %268 : vector<2x8x8xf32>
    %270 = math.exp %269 : vector<2x8x8xf32>
    %cst_110 = arith.constant dense<0.000000e+00> : vector<2x8xf32>
    %271 = vector.multi_reduction <add>, %270, %cst_110 [2] : vector<2x8x8xf32> to vector<2x8xf32>
    %272 = vector.shape_cast %271 : vector<2x8xf32> to vector<2x8x1xf32>
    %273 = tpu.reciprocal %272 {approx = true} : vector<2x8x1xf32> -> vector<2x8x1xf32>
    %274 = vector.broadcast %273 : vector<2x8x1xf32> to vector<2x8x8xf32>
    %275 = arith.mulf %270, %274 : vector<2x8x8xf32>
    "tpu.trace_start"() <{level = 10 : i32, message = "bqk,bkd->bqd"}> : () -> ()
    %cst_111 = arith.constant dense<0.000000e+00> : vector<2x8x8xf32>
    %276 = tpu.matmul %275, %260, %cst_111 {dimension_numbers = #tpu.dot_dimension_numbers<[2], [1], [1], [2], [0, 0, 0, 1, 1, 2], [0], [0]>} : vector<2x8x8xf32>, vector<2x8x8xf32>, vector<2x8x8xf32> -> vector<2x8x8xf32>
    "tpu.trace_stop"() : () -> ()
    %277 = vector.shape_cast %276 : vector<2x8x8xf32> to vector<16x8xf32>
    %278 = vector.extract_strided_slice %225 {offsets = [8, 0], sizes = [8, 32], strides = [1, 1]} : vector<32x32xf32> to vector<8x32xf32>
    %cst_112 = arith.constant dense<0.000000e+00> : vector<16x32xf32>
    %279 = tpu.matmul %277, %278, %cst_112 {dimension_numbers = #tpu.dot_dimension_numbers<[1], [0], [0], [1], [0, 0, 1, 1], [], []>} : vector<16x8xf32>, vector<8x32xf32>, vector<16x32xf32> -> vector<16x32xf32>
    %280 = arith.addf %254, %279 : vector<16x32xf32>
    %281 = vector.extract_strided_slice %223 {offsets = [0, 16], sizes = [16, 8], strides = [1, 1]} : vector<16x96xf32> to vector<16x8xf32>
    %282 = vector.shape_cast %281 : vector<16x8xf32> to vector<2x8x8xf32>
    %283 = vector.extract_strided_slice %223 {offsets = [0, 48], sizes = [16, 8], strides = [1, 1]} : vector<16x96xf32> to vector<16x8xf32>
    %284 = vector.shape_cast %283 : vector<16x8xf32> to vector<2x8x8xf32>
    %285 = vector.extract_strided_slice %223 {offsets = [0, 80], sizes = [16, 8], strides = [1, 1]} : vector<16x96xf32> to vector<16x8xf32>
    %286 = vector.shape_cast %285 : vector<16x8xf32> to vector<2x8x8xf32>
    "tpu.trace_start"() <{level = 10 : i32, message = "bqd,bkd->bqk"}> : () -> ()
    %cst_113 = arith.constant dense<0.000000e+00> : vector<2x8x8xf32>
    %287 = tpu.matmul %282, %284, %cst_113 {dimension_numbers = #tpu.dot_dimension_numbers<[2], [2], [1], [1], [0, 0, 0, 1, 1, 1], [0], [0]>} : vector<2x8x8xf32>, vector<2x8x8xf32>, vector<2x8x8xf32> -> vector<2x8x8xf32>
    "tpu.trace_stop"() : () -> ()
    %cst_114 = arith.constant 0.353553385 : f32
    %288 = vector.broadcast %cst_114 : f32 to vector<2x8x8xf32>
    %289 = arith.mulf %287, %288 : vector<2x8x8xf32>
    %290 = vector.broadcast %0 : vector<2x1x8xf32> to vector<2x8x8xf32>
    %291 = arith.addf %289, %290 : vector<2x8x8xf32>
    %cst_115 = arith.constant dense<0xFF800000> : vector<2x8xf32>
    %292 = vector.multi_reduction <maximumf>, %291, %cst_115 [2] : vector<2x8x8xf32> to vector<2x8xf32>
    %293 = vector.shape_cast %292 : vector<2x8xf32> to vector<2x8x1xf32>
    %294 = vector.broadcast %293 : vector<2x8x1xf32> to vector<2x8x8xf32>
    %295 = arith.subf %291, %294 : vector<2x8x8xf32>
    %296 = math.exp %295 : vector<2x8x8xf32>
    %cst_116 = arith.constant dense<0.000000e+00> : vector<2x8xf32>
    %297 = vector.multi_reduction <add>, %296, %cst_116 [2] : vector<2x8x8xf32> to vector<2x8xf32>
    %298 = vector.shape_cast %297 : vector<2x8xf32> to vector<2x8x1xf32>
    %299 = tpu.reciprocal %298 {approx = true} : vector<2x8x1xf32> -> vector<2x8x1xf32>
    %300 = vector.broadcast %299 : vector<2x8x1xf32> to vector<2x8x8xf32>
    %301 = arith.mulf %296, %300 : vector<2x8x8xf32>
    "tpu.trace_start"() <{level = 10 : i32, message = "bqk,bkd->bqd"}> : () -> ()
    %cst_117 = arith.constant dense<0.000000e+00> : vector<2x8x8xf32>
    %302 = tpu.matmul %301, %286, %cst_117 {dimension_numbers = #tpu.dot_dimension_numbers<[2], [1], [1], [2], [0, 0, 0, 1, 1, 2], [0], [0]>} : vector<2x8x8xf32>, vector<2x8x8xf32>, vector<2x8x8xf32> -> vector<2x8x8xf32>
    "tpu.trace_stop"() : () -> ()
    %303 = vector.shape_cast %302 : vector<2x8x8xf32> to vector<16x8xf32>
    %304 = vector.extract_strided_slice %225 {offsets = [16, 0], sizes = [8, 32], strides = [1, 1]} : vector<32x32xf32> to vector<8x32xf32>
    %cst_118 = arith.constant dense<0.000000e+00> : vector<16x32xf32>
    %305 = tpu.matmul %303, %304, %cst_118 {dimension_numbers = #tpu.dot_dimension_numbers<[1], [0], [0], [1], [0, 0, 1, 1], [], []>} : vector<16x8xf32>, vector<8x32xf32>, vector<16x32xf32> -> vector<16x32xf32>
    %306 = arith.addf %280, %305 : vector<16x32xf32>
    %307 = vector.extract_strided_slice %223 {offsets = [0, 24], sizes = [16, 8], strides = [1, 1]} : vector<16x96xf32> to vector<16x8xf32>
    %308 = vector.shape_cast %307 : vector<16x8xf32> to vector<2x8x8xf32>
    %309 = vector.extract_strided_slice %223 {offsets = [0, 56], sizes = [16, 8], strides = [1, 1]} : vector<16x96xf32> to vector<16x8xf32>
    %310 = vector.shape_cast %309 : vector<16x8xf32> to vector<2x8x8xf32>
    %311 = vector.extract_strided_slice %223 {offsets = [0, 88], sizes = [16, 8], strides = [1, 1]} : vector<16x96xf32> to vector<16x8xf32>
    %312 = vector.shape_cast %311 : vector<16x8xf32> to vector<2x8x8xf32>
    "tpu.trace_start"() <{level = 10 : i32, message = "bqd,bkd->bqk"}> : () -> ()
    %cst_119 = arith.constant dense<0.000000e+00> : vector<2x8x8xf32>
    %313 = tpu.matmul %308, %310, %cst_119 {dimension_numbers = #tpu.dot_dimension_numbers<[2], [2], [1], [1], [0, 0, 0, 1, 1, 1], [0], [0]>} : vector<2x8x8xf32>, vector<2x8x8xf32>, vector<2x8x8xf32> -> vector<2x8x8xf32>
    "tpu.trace_stop"() : () -> ()
    %cst_120 = arith.constant 0.353553385 : f32
    %314 = vector.broadcast %cst_120 : f32 to vector<2x8x8xf32>
    %315 = arith.mulf %313, %314 : vector<2x8x8xf32>
    %316 = vector.broadcast %0 : vector<2x1x8xf32> to vector<2x8x8xf32>
    %317 = arith.addf %315, %316 : vector<2x8x8xf32>
    %cst_121 = arith.constant dense<0xFF800000> : vector<2x8xf32>
    %318 = vector.multi_reduction <maximumf>, %317, %cst_121 [2] : vector<2x8x8xf32> to vector<2x8xf32>
    %319 = vector.shape_cast %318 : vector<2x8xf32> to vector<2x8x1xf32>
    %320 = vector.broadcast %319 : vector<2x8x1xf32> to vector<2x8x8xf32>
    %321 = arith.subf %317, %320 : vector<2x8x8xf32>
    %322 = math.exp %321 : vector<2x8x8xf32>
    %cst_122 = arith.constant dense<0.000000e+00> : vector<2x8xf32>
    %323 = vector.multi_reduction <add>, %322, %cst_122 [2] : vector<2x8x8xf32> to vector<2x8xf32>
    %324 = vector.shape_cast %323 : vector<2x8xf32> to vector<2x8x1xf32>
    %325 = tpu.reciprocal %324 {approx = true} : vector<2x8x1xf32> -> vector<2x8x1xf32>
    %326 = vector.broadcast %325 : vector<2x8x1xf32> to vector<2x8x8xf32>
    %327 = arith.mulf %322, %326 : vector<2x8x8xf32>
    "tpu.trace_start"() <{level = 10 : i32, message = "bqk,bkd->bqd"}> : () -> ()
    %cst_123 = arith.constant dense<0.000000e+00> : vector<2x8x8xf32>
    %328 = tpu.matmul %327, %312, %cst_123 {dimension_numbers = #tpu.dot_dimension_numbers<[2], [1], [1], [2], [0, 0, 0, 1, 1, 2], [0], [0]>} : vector<2x8x8xf32>, vector<2x8x8xf32>, vector<2x8x8xf32> -> vector<2x8x8xf32>
    "tpu.trace_stop"() : () -> ()
    %329 = vector.shape_cast %328 : vector<2x8x8xf32> to vector<16x8xf32>
    %330 = vector.extract_strided_slice %225 {offsets = [24, 0], sizes = [8, 32], strides = [1, 1]} : vector<32x32xf32> to vector<8x32xf32>
    %cst_124 = arith.constant dense<0.000000e+00> : vector<16x32xf32>
    %331 = tpu.matmul %329, %330, %cst_124 {dimension_numbers = #tpu.dot_dimension_numbers<[1], [0], [0], [1], [0, 0, 1, 1], [], []>} : vector<16x8xf32>, vector<8x32xf32>, vector<16x32xf32> -> vector<16x32xf32>
    %332 = arith.addf %306, %331 : vector<16x32xf32>
    %333 = arith.addf %332, %216 : vector<16x32xf32>
    %c1_125 = arith.constant 1 : index
    %c0_126 = arith.constant 0 : index
    %c0_127 = arith.constant 0 : index
    %334 = vector.load %arg9[%c1_125, %c0_126, %c0_127] : memref<2x1x32xf32, #tpu.memory_space<vmem>>, vector<1x1x32xf32>
    %335 = vector.shape_cast %334 : vector<1x1x32xf32> to vector<1x32xf32>
    %c1_128 = arith.constant 1 : index
    %c0_129 = arith.constant 0 : index
    %c0_130 = arith.constant 0 : index
    %336 = vector.load %arg10[%c1_128, %c0_129, %c0_130] : memref<2x1x32xf32, #tpu.memory_space<vmem>>, vector<1x1x32xf32>
    %337 = vector.shape_cast %336 : vector<1x1x32xf32> to vector<1x32xf32>
    %cst_131 = arith.constant dense<0.000000e+00> : vector<16xf32>
    %338 = vector.multi_reduction <add>, %333, %cst_131 [1] : vector<16x32xf32> to vector<16xf32>
    %339 = vector.shape_cast %338 : vector<16xf32> to vector<16x1xf32>
    %cst_132 = arith.constant 3.200000e+01 : f32
    %340 = vector.broadcast %cst_132 : f32 to vector<16x1xf32>
    %341 = arith.divf %339, %340 : vector<16x1xf32>
    %342 = vector.broadcast %341 : vector<16x1xf32> to vector<16x32xf32>
    %343 = arith.subf %333, %342 : vector<16x32xf32>
    %344 = arith.mulf %343, %343 : vector<16x32xf32>
    %cst_133 = arith.constant dense<0.000000e+00> : vector<16xf32>
    %345 = vector.multi_reduction <add>, %344, %cst_133 [1] : vector<16x32xf32> to vector<16xf32>
    %346 = vector.shape_cast %345 : vector<16xf32> to vector<16x1xf32>
    %cst_134 = arith.constant 3.200000e+01 : f32
    %347 = vector.broadcast %cst_134 : f32 to vector<16x1xf32>
    %348 = arith.divf %346, %347 : vector<16x1xf32>
    %cst_135 = arith.constant 9.99999974E-6 : f32
    %349 = vector.broadcast %cst_135 : f32 to vector<16x1xf32>
    %350 = arith.addf %348, %349 : vector<16x1xf32>
    %351 = math.rsqrt %350 : vector<16x1xf32>
    %352 = vector.broadcast %351 : vector<16x1xf32> to vector<16x32xf32>
    %353 = arith.mulf %343, %352 : vector<16x32xf32>
    %354 = vector.broadcast %335 : vector<1x32xf32> to vector<16x32xf32>
    %355 = arith.mulf %353, %354 : vector<16x32xf32>
    %356 = vector.broadcast %337 : vector<1x32xf32> to vector<16x32xf32>
    %357 = arith.addf %355, %356 : vector<16x32xf32>
    %c1_136 = arith.constant 1 : index
    %c0_137 = arith.constant 0 : index
    %c0_138 = arith.constant 0 : index
    %358 = vector.load %arg11[%c1_136, %c0_137, %c0_138] : memref<2x32x64xf32, #tpu.memory_space<vmem>>, vector<1x32x64xf32>
    %359 = vector.shape_cast %358 : vector<1x32x64xf32> to vector<32x64xf32>
    %cst_139 = arith.constant dense<0.000000e+00> : vector<16x64xf32>
    %360 = tpu.matmul %357, %359, %cst_139 {dimension_numbers = #tpu.dot_dimension_numbers<[1], [0], [0], [1], [0, 0, 1, 1], [], []>} : vector<16x32xf32>, vector<32x64xf32>, vector<16x64xf32> -> vector<16x64xf32>
    %c1_140 = arith.constant 1 : index
    %c0_141 = arith.constant 0 : index
    %c0_142 = arith.constant 0 : index
    %361 = vector.load %arg12[%c1_140, %c0_141, %c0_142] : memref<2x1x64xf32, #tpu.memory_space<vmem>>, vector<1x1x64xf32>
    %362 = vector.shape_cast %361 : vector<1x1x64xf32> to vector<1x64xf32>
    %363 = vector.broadcast %362 : vector<1x64xf32> to vector<16x64xf32>
    %364 = arith.addf %360, %363 : vector<16x64xf32>
    %cst_143 = arith.constant 5.000000e-01 : f32
    %365 = vector.broadcast %cst_143 : f32 to vector<16x64xf32>
    %366 = arith.mulf %365, %364 : vector<16x64xf32>
    %cst_144 = arith.constant 4.471500e-02 : f32
    %367 = vector.broadcast %cst_144 : f32 to vector<16x64xf32>
    %368 = arith.mulf %367, %364 : vector<16x64xf32>
    %369 = arith.mulf %368, %364 : vector<16x64xf32>
    %370 = arith.mulf %369, %364 : vector<16x64xf32>
    %371 = arith.addf %364, %370 : vector<16x64xf32>
    %cst_145 = arith.constant 0.797884583 : f32
    %372 = vector.broadcast %cst_145 : f32 to vector<16x64xf32>
    %373 = arith.mulf %372, %371 : vector<16x64xf32>
    %374 = math.tanh %373 : vector<16x64xf32>
    %cst_146 = arith.constant 1.000000e+00 : f32
    %375 = vector.broadcast %cst_146 : f32 to vector<16x64xf32>
    %376 = arith.addf %375, %374 : vector<16x64xf32>
    %377 = arith.mulf %366, %376 : vector<16x64xf32>
    %c1_147 = arith.constant 1 : index
    %c0_148 = arith.constant 0 : index
    %c0_149 = arith.constant 0 : index
    %378 = vector.load %arg13[%c1_147, %c0_148, %c0_149] : memref<2x64x32xf32, #tpu.memory_space<vmem>>, vector<1x64x32xf32>
    %379 = vector.shape_cast %378 : vector<1x64x32xf32> to vector<64x32xf32>
    %cst_150 = arith.constant dense<0.000000e+00> : vector<16x32xf32>
    %380 = tpu.matmul %377, %379, %cst_150 {dimension_numbers = #tpu.dot_dimension_numbers<[1], [0], [0], [1], [0, 0, 1, 1], [], []>} : vector<16x64xf32>, vector<64x32xf32>, vector<16x32xf32> -> vector<16x32xf32>
    %c1_151 = arith.constant 1 : index
    %c0_152 = arith.constant 0 : index
    %c0_153 = arith.constant 0 : index
    %381 = vector.load %arg14[%c1_151, %c0_152, %c0_153] : memref<2x1x32xf32, #tpu.memory_space<vmem>>, vector<1x1x32xf32>
    %382 = vector.shape_cast %381 : vector<1x1x32xf32> to vector<1x32xf32>
    %383 = vector.broadcast %382 : vector<1x32xf32> to vector<16x32xf32>
    %384 = arith.addf %380, %383 : vector<16x32xf32>
    %385 = arith.addf %384, %357 : vector<16x32xf32>
    %c1_154 = arith.constant 1 : index
    %c0_155 = arith.constant 0 : index
    %c0_156 = arith.constant 0 : index
    %386 = vector.load %arg15[%c1_154, %c0_155, %c0_156] : memref<2x1x32xf32, #tpu.memory_space<vmem>>, vector<1x1x32xf32>
    %387 = vector.shape_cast %386 : vector<1x1x32xf32> to vector<1x32xf32>
    %c1_157 = arith.constant 1 : index
    %c0_158 = arith.constant 0 : index
    %c0_159 = arith.constant 0 : index
    %388 = vector.load %arg16[%c1_157, %c0_158, %c0_159] : memref<2x1x32xf32, #tpu.memory_space<vmem>>, vector<1x1x32xf32>
    %389 = vector.shape_cast %388 : vector<1x1x32xf32> to vector<1x32xf32>
    %cst_160 = arith.constant dense<0.000000e+00> : vector<16xf32>
    %390 = vector.multi_reduction <add>, %385, %cst_160 [1] : vector<16x32xf32> to vector<16xf32>
    %391 = vector.shape_cast %390 : vector<16xf32> to vector<16x1xf32>
    %cst_161 = arith.constant 3.200000e+01 : f32
    %392 = vector.broadcast %cst_161 : f32 to vector<16x1xf32>
    %393 = arith.divf %391, %392 : vector<16x1xf32>
    %394 = vector.broadcast %393 : vector<16x1xf32> to vector<16x32xf32>
    %395 = arith.subf %385, %394 : vector<16x32xf32>
    %396 = arith.mulf %395, %395 : vector<16x32xf32>
    %cst_162 = arith.constant dense<0.000000e+00> : vector<16xf32>
    %397 = vector.multi_reduction <add>, %396, %cst_162 [1] : vector<16x32xf32> to vector<16xf32>
    %398 = vector.shape_cast %397 : vector<16xf32> to vector<16x1xf32>
    %cst_163 = arith.constant 3.200000e+01 : f32
    %399 = vector.broadcast %cst_163 : f32 to vector<16x1xf32>
    %400 = arith.divf %398, %399 : vector<16x1xf32>
    %cst_164 = arith.constant 9.99999974E-6 : f32
    %401 = vector.broadcast %cst_164 : f32 to vector<16x1xf32>
    %402 = arith.addf %400, %401 : vector<16x1xf32>
    %403 = math.rsqrt %402 : vector<16x1xf32>
    %404 = vector.broadcast %403 : vector<16x1xf32> to vector<16x32xf32>
    %405 = arith.mulf %395, %404 : vector<16x32xf32>
    %406 = vector.broadcast %387 : vector<1x32xf32> to vector<16x32xf32>
    %407 = arith.mulf %405, %406 : vector<16x32xf32>
    %408 = vector.broadcast %389 : vector<1x32xf32> to vector<16x32xf32>
    %409 = arith.addf %407, %408 : vector<16x32xf32>
    %c0_165 = arith.constant 0 : index
    %c0_166 = arith.constant 0 : index
    %410 = vector.load %arg19[%c0_165, %c0_166] : memref<16x32xf32, #tpu.memory_space<vmem>>, vector<16x32xf32>
    tpu.vector_store %arg19[%c0_165, %c0_166], %409 {strides = array<i32>} : memref<16x32xf32, #tpu.memory_space<vmem>>, vector<16x32xf32>,
    %411 = vector.extract_strided_slice %409 {offsets = [0, 0], sizes = [1, 32], strides = [1, 1]} : vector<16x32xf32> to vector<1x32xf32>
    %412 = vector.extract_strided_slice %409 {offsets = [8, 0], sizes = [1, 32], strides = [1, 1]} : vector<16x32xf32> to vector<1x32xf32>
    %413 = tpu.concatenate %411, %412 in 0 : vector<1x32xf32>, vector<1x32xf32> -> vector<2x32xf32>
    %c0_167 = arith.constant 0 : index
    %c0_168 = arith.constant 0 : index
    %414 = vector.load %arg17[%c0_167, %c0_168] : memref<32x32xf32, #tpu.memory_space<vmem>>, vector<32x32xf32>
    %cst_169 = arith.constant dense<0.000000e+00> : vector<2x32xf32>
    %415 = tpu.matmul %413, %414, %cst_169 {dimension_numbers = #tpu.dot_dimension_numbers<[1], [0], [0], [1], [0, 0, 1, 1], [], []>} : vector<2x32xf32>, vector<32x32xf32>, vector<2x32xf32> -> vector<2x32xf32>
    %c0_170 = arith.constant 0 : index
    %c0_171 = arith.constant 0 : index
    %416 = vector.load %arg18[%c0_170, %c0_171] : memref<1x32xf32, #tpu.memory_space<vmem>>, vector<1x32xf32>
    %417 = vector.broadcast %416 : vector<1x32xf32> to vector<2x32xf32>
    %418 = arith.addf %415, %417 : vector<2x32xf32>
    %419 = math.tanh %418 : vector<2x32xf32>
    %c0_172 = arith.constant 0 : index
    %c0_173 = arith.constant 0 : index
    %420 = vector.load %arg20[%c0_172, %c0_173] : memref<2x32xf32, #tpu.memory_space<vmem>>, vector<2x32xf32>
    tpu.vector_store %arg20[%c0_172, %c0_173], %419 {strides = array<i32>} : memref<2x32xf32, #tpu.memory_space<vmem>>, vector<2x32xf32>,
    return
  }
  func.func @transform_0(%arg0: i32) -> (i32, i32) {
    %c0_i32 = arith.constant 0 : i32
    %c0_i32_0 = arith.constant 0 : i32
    %c0_i32_1 = arith.constant 0 : i32
    return %c0_i32, %c0_i32_0 : i32, i32
  }
  func.func @transform_1(%arg0: i32) -> (i32, i32, i32) {
    %c0_i32 = arith.constant 0 : i32
    %c0_i32_0 = arith.constant 0 : i32
    %c0_i32_1 = arith.constant 0 : i32
    %c0_i32_2 = arith.constant 0 : i32
    return %c0_i32, %c0_i32_0, %c0_i32_1 : i32, i32, i32
  }
  func.func @transform_2(%arg0: i32) -> (i32, i32) {
    %c0_i32 = arith.constant 0 : i32
    %c0_i32_0 = arith.constant 0 : i32
    %c0_i32_1 = arith.constant 0 : i32
    return %c0_i32, %c0_i32_0 : i32, i32
  }
  func.func @transform_3(%arg0: i32) -> (i32, i32) {
    %c0_i32 = arith.constant 0 : i32
    %c0_i32_0 = arith.constant 0 : i32
    %c0_i32_1 = arith.constant 0 : i32
    return %c0_i32, %c0_i32_0 : i32, i32
  }
  func.func @transform_4(%arg0: i32) -> (i32, i32, i32) {
    %c0_i32 = arith.constant 0 : i32
    %c0_i32_0 = arith.constant 0 : i32
    %c0_i32_1 = arith.constant 0 : i32
    %c0_i32_2 = arith.constant 0 : i32
    return %c0_i32, %c0_i32_0, %c0_i32_1 : i32, i32, i32
  }
  func.func @transform_5(%arg0: i32) -> (i32, i32, i32) {
    %c0_i32 = arith.constant 0 : i32
    %c0_i32_0 = arith.constant 0 : i32
    %c0_i32_1 = arith.constant 0 : i32
    %c0_i32_2 = arith.constant 0 : i32
    return %c0_i32, %c0_i32_0, %c0_i32_1 : i32, i32, i32
  }
  func.func @transform_6(%arg0: i32) -> (i32, i32, i32) {
    %c0_i32 = arith.constant 0 : i32
    %c0_i32_0 = arith.constant 0 : i32
    %c0_i32_1 = arith.constant 0 : i32
    %c0_i32_2 = arith.constant 0 : i32
    return %c0_i32, %c0_i32_0, %c0_i32_1 : i32, i32, i32
  }
  func.func @transform_7(%arg0: i32) -> (i32, i32, i32) {
    %c0_i32 = arith.constant 0 : i32
    %c0_i32_0 = arith.constant 0 : i32
    %c0_i32_1 = arith.constant 0 : i32
    %c0_i32_2 = arith.constant 0 : i32
    return %c0_i32, %c0_i32_0, %c0_i32_1 : i32, i32, i32
  }
  func.func @transform_8(%arg0: i32) -> (i32, i32, i32) {
    %c0_i32 = arith.constant 0 : i32
    %c0_i32_0 = arith.constant 0 : i32
    %c0_i32_1 = arith.constant 0 : i32
    %c0_i32_2 = arith.constant 0 : i32
    return %c0_i32, %c0_i32_0, %c0_i32_1 : i32, i32, i32
  }
  func.func @transform_9(%arg0: i32) -> (i32, i32, i32) {
    %c0_i32 = arith.constant 0 : i32
    %c0_i32_0 = arith.constant 0 : i32
    %c0_i32_1 = arith.constant 0 : i32
    %c0_i32_2 = arith.constant 0 : i32
    return %c0_i32, %c0_i32_0, %c0_i32_1 : i32, i32, i32
  }
  func.func @transform_10(%arg0: i32) -> (i32, i32, i32) {
    %c0_i32 = arith.constant 0 : i32
    %c0_i32_0 = arith.constant 0 : i32
    %c0_i32_1 = arith.constant 0 : i32
    %c0_i32_2 = arith.constant 0 : i32
    return %c0_i32, %c0_i32_0, %c0_i32_1 : i32, i32, i32
  }
  func.func @transform_11(%arg0: i32) -> (i32, i32, i32) {
    %c0_i32 = arith.constant 0 : i32
    %c0_i32_0 = arith.constant 0 : i32
    %c0_i32_1 = arith.constant 0 : i32
    %c0_i32_2 = arith.constant 0 : i32
    return %c0_i32, %c0_i32_0, %c0_i32_1 : i32, i32, i32
  }
  func.func @transform_12(%arg0: i32) -> (i32, i32, i32) {
    %c0_i32 = arith.constant 0 : i32
    %c0_i32_0 = arith.constant 0 : i32
    %c0_i32_1 = arith.constant 0 : i32
    %c0_i32_2 = arith.constant 0 : i32
    return %c0_i32, %c0_i32_0, %c0_i32_1 : i32, i32, i32
  }
  func.func @transform_13(%arg0: i32) -> (i32, i32, i32) {
    %c0_i32 = arith.constant 0 : i32
    %c0_i32_0 = arith.constant 0 : i32
    %c0_i32_1 = arith.constant 0 : i32
    %c0_i32_2 = arith.constant 0 : i32
    return %c0_i32, %c0_i32_0, %c0_i32_1 : i32, i32, i32
  }
  func.func @transform_14(%arg0: i32) -> (i32, i32, i32) {
    %c0_i32 = arith.constant 0 : i32
    %c0_i32_0 = arith.constant 0 : i32
    %c0_i32_1 = arith.constant 0 : i32
    %c0_i32_2 = arith.constant 0 : i32
    return %c0_i32, %c0_i32_0, %c0_i32_1 : i32, i32, i32
  }
  func.func @transform_15(%arg0: i32) -> (i32, i32, i32) {
    %c0_i32 = arith.constant 0 : i32
    %c0_i32_0 = arith.constant 0 : i32
    %c0_i32_1 = arith.constant 0 : i32
    %c0_i32_2 = arith.constant 0 : i32
    return %c0_i32, %c0_i32_0, %c0_i32_1 : i32, i32, i32
  }
  func.func @transform_16(%arg0: i32) -> (i32, i32) {
    %c0_i32 = arith.constant 0 : i32
    %c0_i32_0 = arith.constant 0 : i32
    %c0_i32_1 = arith.constant 0 : i32
    return %c0_i32, %c0_i32_0 : i32, i32
  }
  func.func @transform_17(%arg0: i32) -> (i32, i32) {
    %c0_i32 = arith.constant 0 : i32
    %c0_i32_0 = arith.constant 0 : i32
    %c0_i32_1 = arith.constant 0 : i32
    return %c0_i32, %c0_i32_0 : i32, i32
  }
  func.func @transform_18(%arg0: i32) -> (i32, i32) {
    %c0_i32 = arith.constant 0 : i32
    %c0_i32_0 = arith.constant 0 : i32
    %c0_i32_1 = arith.constant 0 : i32
    return %c0_i32, %c0_i32_0 : i32, i32
  }
  func.func @transform_19(%arg0: i32) -> (i32, i32) {
    %c0_i32 = arith.constant 0 : i32
    %c0_i32_0 = arith.constant 0 : i32
    %c0_i32_1 = arith.constant 0 : i32
    return %c0_i32, %c0_i32_0 : i32, i32
  }
}

</mosaic_0001>

<llo_original>
// kernel: roberta_forward.1
$region0: #{roberta_forward.1}
  #allocation0 [shape = 'u32[]', space=smem, size = 0x4, offset = 0x4, fixed_abs, tag = 'smem constant byte address 0x4 - core index']
  #allocation1 [shape = 'u32[144,128]{1,0:T(1,128)}', space=vmem, size = 0x12000, scoped, tag = 'internal scratch']
  %s0 = inlined_call_operand.vmem [shape: f32[16,32], index: 0, kind: input, shape index: {}]
  %s1 = inlined_call_operand.vmem [shape: f32[2,1,8], index: 1, kind: input, shape index: {}]
  %s2 = inlined_call_operand.vmem [shape: f32[1,32], index: 2, kind: input, shape index: {}]
  %s3 = inlined_call_operand.vmem [shape: f32[1,32], index: 3, kind: input, shape index: {}]
  %s4 = inlined_call_operand.vmem [shape: f32[2,32,96], index: 4, kind: input, shape index: {}]
  %s5 = inlined_call_operand.vmem [shape: f32[2,1,96], index: 5, kind: input, shape index: {}]
  %s6 = inlined_call_operand.vmem [shape: f32[2,32,32], index: 6, kind: input, shape index: {}]
  %s7 = inlined_call_operand.vmem [shape: f32[2,1,32], index: 7, kind: input, shape index: {}]
  %s8 = inlined_call_operand.vmem [shape: f32[2,1,32], index: 8, kind: input, shape index: {}]
  %s9 = inlined_call_operand.vmem [shape: f32[2,1,32], index: 9, kind: input, shape index: {}]
  %s10 = inlined_call_operand.vmem [shape: f32[2,32,64], index: 10, kind: input, shape index: {}]
  %s11 = inlined_call_operand.vmem [shape: f32[2,1,64], index: 11, kind: input, shape index: {}]
  %s12 = inlined_call_operand.vmem [shape: f32[2,64,32], index: 12, kind: input, shape index: {}]
  %s13 = inlined_call_operand.vmem [shape: f32[2,1,32], index: 13, kind: input, shape index: {}]
  %s14 = inlined_call_operand.vmem [shape: f32[2,1,32], index: 14, kind: input, shape index: {}]
  %s15 = inlined_call_operand.vmem [shape: f32[2,1,32], index: 15, kind: input, shape index: {}]
  %s16 = inlined_call_operand.vmem [shape: f32[32,32], index: 16, kind: input, shape index: {}]
  %s17 = inlined_call_operand.vmem [shape: f32[1,32], index: 17, kind: input, shape index: {}]
  %s18 = inlined_call_operand.hbm [shape: f32[16,32], index: 18, kind: output, shape index: {0}]
  %s19 = inlined_call_operand.hbm [shape: f32[2,32], index: 19, kind: output, shape index: {1}]
  %20 = xla_tuple %s18, %s19
  %s21 = sld [smem:[#allocation0]]
  $region90: #{roberta_forward.1} parent=0
    _
  %s23 = ssub.s32 1, %s21
  %s24 = scalar_select 0, %s23, %s21
  $region1: #{roberta_forward.1} parent=0
    #allocation2 [shape = 'u8[8192]{0}', space=vmem, size = 0x2000, scoped, tag = 'output window, operand 0, single buffered']
    #allocation3 [shape = 's32[1]{0}', space=sflag, size = 0x4, scoped, tag = 'scoped memory for roberta_forward.1']
    #allocation4 [shape = 'u8[1024]{0}', space=vmem, size = 0x400, scoped, tag = 'output window, operand 1, single buffered']
    #allocation5 [shape = 's32[1]{0}', space=sflag, size = 0x4, scoped, tag = 'scoped memory for roberta_forward.1']
    %25 = vsyncpa [#allocation3], 0
    %26 = vsyncpa [#allocation5], 0
    // Predicated region
    $region2: #{roberta_forward.1} parent=1 // pred_check
      _
    $region3: #{roberta_forward.1} parent=1 // pred_check_branch
      %28 = sbr.rel (0) target = $region5
    $region4: #{roberta_forward.1} parent=1 // pred_region
      _
    $region5: #{roberta_forward.1} parent=1 // pred_fallthru
      _
    // Predicated region
    $region6: #{roberta_forward.1} parent=1 // pred_check
      _
    $region7: #{roberta_forward.1} parent=1 // pred_check_branch
      %30 = sbr.rel (0) target = $region9
    $region8: #{roberta_forward.1} parent=1 // pred_region
      _
    $region9: #{roberta_forward.1} parent=1 // pred_fallthru
      _
    // Predicated region
    $region10: #{roberta_forward.1} parent=1 // pred_check
      _
    $region11: #{roberta_forward.1} parent=1 // pred_check_branch
      %32 = sbr.rel (0) target = $region13
    $region12: #{roberta_forward.1} parent=1 // pred_region
      _
    $region13: #{roberta_forward.1} parent=1 // pred_fallthru
      _
    // Predicated region
    $region14: #{roberta_forward.1} parent=1 // pred_check
      _
    $region15: #{roberta_forward.1} parent=1 // pred_check_branch
      %34 = sbr.rel (0) target = $region17
    $region16: #{roberta_forward.1} parent=1 // pred_region
      _
    $region17: #{roberta_forward.1} parent=1 // pred_fallthru
      _
    // Predicated region
    $region18: #{roberta_forward.1} parent=1 // pred_check
      _
    $region19: #{roberta_forward.1} parent=1 // pred_check_branch
      %36 = sbr.rel (0) target = $region21
    $region20: #{roberta_forward.1} parent=1 // pred_region
      _
    $region21: #{roberta_forward.1} parent=1 // pred_fallthru
      _
    // Predicated region
    $region22: #{roberta_forward.1} parent=1 // pred_check
      _
    $region23: #{roberta_forward.1} parent=1 // pred_check_branch
      %38 = sbr.rel (0) target = $region25
    $region24: #{roberta_forward.1} parent=1 // pred_region
      _
    $region25: #{roberta_forward.1} parent=1 // pred_fallthru
      _
    // Predicated region
    $region26: #{roberta_forward.1} parent=1 // pred_check
      _
    $region27: #{roberta_forward.1} parent=1 // pred_check_branch
      %40 = sbr.rel (0) target = $region29
    $region28: #{roberta_forward.1} parent=1 // pred_region
      _
    $region29: #{roberta_forward.1} parent=1 // pred_fallthru
      _
    // Predicated region
    $region30: #{roberta_forward.1} parent=1 // pred_check
      _
    $region31: #{roberta_forward.1} parent=1 // pred_check_branch
      %42 = sbr.rel (0) target = $region33
    $region32: #{roberta_forward.1} parent=1 // pred_region
      _
    $region33: #{roberta_forward.1} parent=1 // pred_fallthru
      _
    // Predicated region
    $region34: #{roberta_forward.1} parent=1 // pred_check
      _
    $region35: #{roberta_forward.1} parent=1 // pred_check_branch
      %44 = sbr.rel (0) target = $region37
    $region36: #{roberta_forward.1} parent=1 // pred_region
      _
    $region37: #{roberta_forward.1} parent=1 // pred_fallthru
      _
    // Predicated region
    $region38: #{roberta_forward.1} parent=1 // pred_check
      _
    $region39: #{roberta_forward.1} parent=1 // pred_check_branch
      %46 = sbr.rel (0) target = $region41
    $region40: #{roberta_forward.1} parent=1 // pred_region
      _
    $region41: #{roberta_forward.1} parent=1 // pred_fallthru
      _
    // Predicated region
    $region42: #{roberta_forward.1} parent=1 // pred_check
      _
    $region43: #{roberta_forward.1} parent=1 // pred_check_branch
      %48 = sbr.rel (0) target = $region45
    $region44: #{roberta_forward.1} parent=1 // pred_region
      _
    $region45: #{roberta_forward.1} parent=1 // pred_fallthru
      _
    // Predicated region
    $region46: #{roberta_forward.1} parent=1 // pred_check
      _
    $region47: #{roberta_forward.1} parent=1 // pred_check_branch
      %50 = sbr.rel (0) target = $region49
    $region48: #{roberta_forward.1} parent=1 // pred_region
      _
    $region49: #{roberta_forward.1} parent=1 // pred_fallthru
      _
    // Predicated region
    $region50: #{roberta_forward.1} parent=1 // pred_check
      _
    $region51: #{roberta_forward.1} parent=1 // pred_check_branch
      %52 = sbr.rel (0) target = $region53
    $region52: #{roberta_forward.1} parent=1 // pred_region
      _
    $region53: #{roberta_forward.1} parent=1 // pred_fallthru
      _
    // Predicated region
    $region54: #{roberta_forward.1} parent=1 // pred_check
      _
    $region55: #{roberta_forward.1} parent=1 // pred_check_branch
      %54 = sbr.rel (0) target = $region57
    $region56: #{roberta_forward.1} parent=1 // pred_region
      _
    $region57: #{roberta_forward.1} parent=1 // pred_fallthru
      _
    // Predicated region
    $region58: #{roberta_forward.1} parent=1 // pred_check
      _
    $region59: #{roberta_forward.1} parent=1 // pred_check_branch
      %56 = sbr.rel (0) target = $region61
    $region60: #{roberta_forward.1} parent=1 // pred_region
      _
    $region61: #{roberta_forward.1} parent=1 // pred_fallthru
      _
    // Predicated region
    $region62: #{roberta_forward.1} parent=1 // pred_check
      _
    $region63: #{roberta_forward.1} parent=1 // pred_check_branch
      %58 = sbr.rel (0) target = $region65
    $region64: #{roberta_forward.1} parent=1 // pred_region
      _
    $region65: #{roberta_forward.1} parent=1 // pred_fallthru
      _
    // Predicated region
    $region66: #{roberta_forward.1} parent=1 // pred_check
      _
    $region67: #{roberta_forward.1} parent=1 // pred_check_branch
      %60 = sbr.rel (0) target = $region69
    $region68: #{roberta_forward.1} parent=1 // pred_region
      _
    $region69: #{roberta_forward.1} parent=1 // pred_fallthru
      _
    // Predicated region
    $region70: #{roberta_forward.1} parent=1 // pred_check
      _
    $region71: #{roberta_forward.1} parent=1 // pred_check_branch
      %62 = sbr.rel (0) target = $region73
    $region72: #{roberta_forward.1} parent=1 // pred_region
      _
    $region73: #{roberta_forward.1} parent=1 // pred_fallthru
      _
    %v63 = vld [vmem:[%s1] sm:$0x1]
    %v64 = vld [vmem:[%s1 + $0x1] sm:$0x1]
    %v65 = vld [vmem:[%s0] sm:$0xff]
    %v66 = vld [vmem:[%s0 + $0x8] sm:$0xff]
    %v67 = vld [vmem:[%s2] sm:$0x1]
    %v68 = vld [vmem:[%s3] sm:$0x1]
    %vm69 = vcmask 261120
    %v70 = vsel %vm69, %v65, 0.0
    %71 = vadd.xlane.f32.xlu0 %v70
    %v72 = vpop.xlane.xlu0 %71
    %v73 = vsel %vm69, %v66, 0.0
    %74 = vadd.xlane.f32.xlu0 %v73
    %v75 = vpop.xlane.xlu0 %74
    %v76 = vrcp.pop 32.0
    %v77 = vmul.f32 %v72, %v76
    %v78 = vmul.f32 %v75, %v76
    %v79 = vsub.f32 %v65, %v77
    %v80 = vsub.f32 %v66, %v78
    %v81 = vmul.f32 %v79, %v79
    %v82 = vmul.f32 %v80, %v80
    %v83 = vsel %vm69, %v81, 0.0
    %84 = vadd.xlane.f32.xlu0 %v83
    %v85 = vpop.xlane.xlu0 %84
    %v86 = vsel %vm69, %v82, 0.0
    %87 = vadd.xlane.f32.xlu0 %v86
    %v88 = vpop.xlane.xlu0 %87
    %v89 = vmul.f32 %v85, %v76
    %v90 = vmul.f32 %v88, %v76
    %v91 = vadd.f32 %v89, 1e-05
    %v92 = vadd.f32 %v90, 1e-05
    %v93 = vrsqrt.pop %v91
    %v94 = vrsqrt.pop %v92
    %v95 = vmul.f32 %v79, %v93
    %v96 = vmul.f32 %v80, %v94
    %v98 = vlaneseq
    %v99 = vshrl.u32 %v98, 7
    %v100 = vsub.s32 0, %v99
    %v101 = vrot.slane %v67, %v100
    %v103 = vmul.f32 %v95, %v101
    %v104 = vmul.f32 %v96, %v101
    %v106 = vlaneseq
    %v107 = vshrl.u32 %v106, 7
    %v108 = vsub.s32 0, %v107
    %v109 = vrot.slane %v68, %v108
    %v111 = vadd.f32 %v103, %v109
    %v112 = vadd.f32 %v104, %v109
    %v113 = vld [vmem:[%s4] sm:$0xff]
    %v114 = vld [vmem:[%s4 + $0x8] sm:$0xff]
    %v115 = vld [vmem:[%s4 + $0x10] sm:$0xff]
    %v116 = vld [vmem:[%s4 + $0x18] sm:$0xff]
    %v117 = vld [vmem:[%s5] sm:$0x1]
    %v119 = vlaneseq
    %v120 = vshrl.u32 %v119, 7
    %v121 = vsub.s32 0, %v120
    %v122 = vrot.slane %v117, %v121
    %v125 = vsel %vm69, %v111, 0
    %v128 = vsel %vm69, %v112, 0
    %130 = vmatprep.subr.mxu0 0.0
    %131 = vmatpush1.msra.mxu0 %v113
    %132 = vmatprep.subr.mxu0 0.0
    %133 = vmatpush1.msra.mxu0 %v114
    %134 = vmatprep.subr.mxu0 0.0
    %135 = vmatpush1.msra.mxu0 %v115
    %136 = vmatprep.subr.mxu0 0.0
    %137 = vmatpush1.msra.mxu0 %v116
    %138 = vmatprep.subr.mxu0 0.0
    %139 = vmatpush1.msra.mxu0 0.0
    %140 = vmatprep.subr.mxu0 0.0
    %141 = vmatpush1.msra.mxu0 0.0
    %142 = vmatprep.subr.mxu0 0.0
    %143 = vmatpush1.msra.mxu0 0.0
    %144 = vmatprep.subr.mxu0 0.0
    %145 = vmatpush1.msra.mxu0 0.0
    %146 = vmatprep.subr.mxu0 0.0
    %147 = vmatpush1.msra.mxu0 0.0
    %148 = vmatprep.subr.mxu0 0.0
    %149 = vmatpush1.msra.mxu0 0.0
    %150 = vmatprep.subr.mxu0 0.0
    %151 = vmatpush1.msra.mxu0 0.0
    %152 = vmatprep.subr.mxu0 0.0
    %153 = vmatpush1.msra.mxu0 0.0
    %154 = vmatprep.subr.mxu0 0.0
    %155 = vmatpush1.msra.mxu0 0.0
    %156 = vmatprep.subr.mxu0 0.0
    %157 = vmatpush1.msra.mxu0 0.0
    %158 = vmatprep.subr.mxu0 0.0
    %159 = vmatpush1.msra.mxu0 0.0
    %160 = vmatprep.subr.mxu0 0.0
    %161 = vmatpush1.msra.mxu0 0.0
    %162 = vmatprep.subr.mxu0 0.0
    %163 = vmatpush1.msra.mxu0 0.0
    %164 = vmatprep.subr.mxu0 0.0
    %165 = vmatpush1.msra.mxu0 0.0
    %166 = vmatprep.subr.mxu0 0.0
    %167 = vmatpush1.msra.mxu0 0.0
    %168 = vmatprep.subr.mxu0 0.0
    %169 = vmatpush1.msra.mxu0 0.0
    %170 = vmatprep.subr.mxu0 0.0
    %171 = vmatpush1.msra.mxu0 0.0
    %172 = vmatprep.subr.mxu0 0.0
    %173 = vmatpush1.msra.mxu0 0.0
    %174 = vmatprep.subr.mxu0 0.0
    %175 = vmatpush1.msra.mxu0 0.0
    %176 = vmatprep.subr.mxu0 0.0
    %177 = vmatpush1.msra.mxu0 0.0
    %178 = vmatprep.subr.mxu0 0.0
    %179 = vmatpush1.msra.mxu0 0.0
    %180 = vmatprep.subr.mxu0 0.0
    %181 = vmatpush1.msra.mxu0 0.0
    %182 = vmatprep.subr.mxu0 0.0
    %183 = vmatpush1.msra.mxu0 0.0
    %184 = vmatprep.subr.mxu0 0.0
    %185 = vmatpush1.msra.mxu0 0.0
    %186 = vmatprep.subr.mxu0 0.0
    %187 = vmatpush1.msra.mxu0 0.0
    %188 = vmatprep.subr.mxu0 0.0
    %189 = vmatpush1.msra.mxu0 0.0
    %190 = vmatprep.subr.mxu0 0.0
    %191 = vmatpush1.msra.mxu0 0.0
    %192 = vmatprep.subr.mxu0 0.0
    %193 = vmatpush1.msra.mxu0 0.0
    %194 = vmatprep.mubr.f32.mxu0 0.0
    %195 = vmatmul.mubr.f32.gmra.mrb[0].mxu0 %v125
    %v196 = vpop.f32.mrb[0].mxu0
    %v197 = vadd.f32 %v122, %v196
    %v198 = vpop.f32.mrb[0].mxu0
    %199 = vmatprep.mubr.f32.mxu0 0.0
    %200 = vmatmul.mubr.f32.gmra.mrb[0].mxu0 %v128
    %v201 = vpop.f32.mrb[0].mxu0
    %v202 = vadd.f32 %v122, %v201
    %v203 = vpop.f32.mrb[0].mxu0
    %204 = vdwg.mxu0
    %v205 = vld [vmem:[%s6] sm:$0xff]
    %v206 = vld [vmem:[%s6 + $0x8] sm:$0xff]
    %v207 = vld [vmem:[%s6 + $0x10] sm:$0xff]
    %v208 = vld [vmem:[%s6 + $0x18] sm:$0xff]
    %v209 = vld [vmem:[%s7] sm:$0x1]
    %211 = vrot.lane.b32.xlu0 %v197, 96
    %v212 = vpop.permute.xlu0 %211
    %vm213 = vcmask 64512
    %v214 = vsel %vm213, %v197, 0
    %v216 = vsel %vm213, %v212, 0
    %218 = vmatprep.subr.mxu0 0.0
    %219 = vmatpush1.xpose.msra.mxu0 %v216
    %220 = vmatprep.subr.mxu0 0.0
    %221 = vmatpush1.xpose.msra.mxu0 0.0
    %222 = vmatprep.subr.mxu0 0.0
    %223 = vmatpush1.xpose.msra.mxu0 0.0
    %224 = vmatprep.subr.mxu0 0.0
    %225 = vmatpush1.xpose.msra.mxu0 0.0
    %226 = vmatprep.subr.mxu0 0.0
    %227 = vmatpush1.xpose.msra.mxu0 0.0
    %228 = vmatprep.subr.mxu0 0.0
    %229 = vmatpush1.xpose.msra.mxu0 0.0
    %230 = vmatprep.subr.mxu0 0.0
    %231 = vmatpush1.xpose.msra.mxu0 0.0
    %232 = vmatprep.subr.mxu0 0.0
    %233 = vmatpush1.xpose.msra.mxu0 0.0
    %234 = vmatprep.subr.mxu0 0.0
    %235 = vmatpush1.xpose.msra.mxu0 0.0
    %236 = vmatprep.subr.mxu0 0.0
    %237 = vmatpush1.xpose.msra.mxu0 0.0
    %238 = vmatprep.subr.mxu0 0.0
    %239 = vmatpush1.xpose.msra.mxu0 0.0
    %240 = vmatprep.subr.mxu0 0.0
    %241 = vmatpush1.xpose.msra.mxu0 0.0
    %242 = vmatprep.subr.mxu0 0.0
    %243 = vmatpush1.xpose.msra.mxu0 0.0
    %244 = vmatprep.subr.mxu0 0.0
    %245 = vmatpush1.xpose.msra.mxu0 0.0
    %246 = vmatprep.subr.mxu0 0.0
    %247 = vmatpush1.xpose.msra.mxu0 0.0
    %248 = vmatprep.subr.mxu0 0.0
    %249 = vmatpush1.xpose.msra.mxu0 0.0
    %250 = vmatprep.subr.mxu0 0.0
    %251 = vmatpush1.xpose.msra.mxu0 0.0
    %252 = vmatprep.subr.mxu0 0.0
    %253 = vmatpush1.xpose.msra.mxu0 0.0
    %254 = vmatprep.subr.mxu0 0.0
    %255 = vmatpush1.xpose.msra.mxu0 0.0
    %256 = vmatprep.subr.mxu0 0.0
    %257 = vmatpush1.xpose.msra.mxu0 0.0
    %258 = vmatprep.subr.mxu0 0.0
    %259 = vmatpush1.xpose.msra.mxu0 0.0
    %260 = vmatprep.subr.mxu0 0.0
    %261 = vmatpush1.xpose.msra.mxu0 0.0
    %262 = vmatprep.subr.mxu0 0.0
    %263 = vmatpush1.xpose.msra.mxu0 0.0
    %264 = vmatprep.subr.mxu0 0.0
    %265 = vmatpush1.xpose.msra.mxu0 0.0
    %266 = vmatprep.subr.mxu0 0.0
    %267 = vmatpush1.xpose.msra.mxu0 0.0
    %268 = vmatprep.subr.mxu0 0.0
    %269 = vmatpush1.xpose.msra.mxu0 0.0
    %270 = vmatprep.subr.mxu0 0.0
    %271 = vmatpush1.xpose.msra.mxu0 0.0
    %272 = vmatprep.subr.mxu0 0.0
    %273 = vmatpush1.xpose.msra.mxu0 0.0
    %274 = vmatprep.subr.mxu0 0.0
    %275 = vmatpush1.xpose.msra.mxu0 0.0
    %276 = vmatprep.subr.mxu0 0.0
    %277 = vmatpush1.xpose.msra.mxu0 0.0
    %278 = vmatprep.subr.mxu0 0.0
    %279 = vmatpush1.xpose.msra.mxu0 0.0
    %280 = vmatprep.subr.mxu0 0.0
    %281 = vmatpush1.xpose.msra.mxu0 0.0
    %282 = vmatprep.mubr.f32.mxu0 0.0
    %283 = vmatmul.mubr.f32.gmra.mrb[0].mxu0 %v214
    %v284 = vpop.f32.mrb[0].mxu0
    %v285 = vadd.f32 0.0, %v284
    %v286 = vpop.f32.mrb[0].mxu0
    %287 = vdwg.mxu0
    %289 = vrot.lane.b32.xlu0 %v202, 96
    %v290 = vpop.permute.xlu0 %289
    %v291 = vsel %vm213, %v202, 0
    %v293 = vsel %vm213, %v290, 0
    %295 = vmatprep.subr.mxu0 0.0
    %296 = vmatpush1.xpose.msra.mxu0 %v293
    %297 = vmatprep.subr.mxu0 0.0
    %298 = vmatpush1.xpose.msra.mxu0 0.0
    %299 = vmatprep.subr.mxu0 0.0
    %300 = vmatpush1.xpose.msra.mxu0 0.0
    %301 = vmatprep.subr.mxu0 0.0
    %302 = vmatpush1.xpose.msra.mxu0 0.0
    %303 = vmatprep.subr.mxu0 0.0
    %304 = vmatpush1.xpose.msra.mxu0 0.0
    %305 = vmatprep.subr.mxu0 0.0
    %306 = vmatpush1.xpose.msra.mxu0 0.0
    %307 = vmatprep.subr.mxu0 0.0
    %308 = vmatpush1.xpose.msra.mxu0 0.0
    %309 = vmatprep.subr.mxu0 0.0
    %310 = vmatpush1.xpose.msra.mxu0 0.0
    %311 = vmatprep.subr.mxu0 0.0
    %312 = vmatpush1.xpose.msra.mxu0 0.0
    %313 = vmatprep.subr.mxu0 0.0
    %314 = vmatpush1.xpose.msra.mxu0 0.0
    %315 = vmatprep.subr.mxu0 0.0
    %316 = vmatpush1.xpose.msra.mxu0 0.0
    %317 = vmatprep.subr.mxu0 0.0
    %318 = vmatpush1.xpose.msra.mxu0 0.0
    %319 = vmatprep.subr.mxu0 0.0
    %320 = vmatpush1.xpose.msra.mxu0 0.0
    %321 = vmatprep.subr.mxu0 0.0
    %322 = vmatpush1.xpose.msra.mxu0 0.0
    %323 = vmatprep.subr.mxu0 0.0
    %324 = vmatpush1.xpose.msra.mxu0 0.0
    %325 = vmatprep.subr.mxu0 0.0
    %326 = vmatpush1.xpose.msra.mxu0 0.0
    %327 = vmatprep.subr.mxu0 0.0
    %328 = vmatpush1.xpose.msra.mxu0 0.0
    %329 = vmatprep.subr.mxu0 0.0
    %330 = vmatpush1.xpose.msra.mxu0 0.0
    %331 = vmatprep.subr.mxu0 0.0
    %332 = vmatpush1.xpose.msra.mxu0 0.0
    %333 = vmatprep.subr.mxu0 0.0
    %334 = vmatpush1.xpose.msra.mxu0 0.0
    %335 = vmatprep.subr.mxu0 0.0
    %336 = vmatpush1.xpose.msra.mxu0 0.0
    %337 = vmatprep.subr.mxu0 0.0
    %338 = vmatpush1.xpose.msra.mxu0 0.0
    %339 = vmatprep.subr.mxu0 0.0
    %340 = vmatpush1.xpose.msra.mxu0 0.0
    %341 = vmatprep.subr.mxu0 0.0
    %342 = vmatpush1.xpose.msra.mxu0 0.0
    %343 = vmatprep.subr.mxu0 0.0
    %344 = vmatpush1.xpose.msra.mxu0 0.0
    %345 = vmatprep.subr.mxu0 0.0
    %346 = vmatpush1.xpose.msra.mxu0 0.0
    %347 = vmatprep.subr.mxu0 0.0
    %348 = vmatpush1.xpose.msra.mxu0 0.0
    %349 = vmatprep.subr.mxu0 0.0
    %350 = vmatpush1.xpose.msra.mxu0 0.0
    %351 = vmatprep.subr.mxu0 0.0
    %352 = vmatpush1.xpose.msra.mxu0 0.0
    %353 = vmatprep.subr.mxu0 0.0
    %354 = vmatpush1.xpose.msra.mxu0 0.0
    %355 = vmatprep.subr.mxu0 0.0
    %356 = vmatpush1.xpose.msra.mxu0 0.0
    %357 = vmatprep.subr.mxu0 0.0
    %358 = vmatpush1.xpose.msra.mxu0 0.0
    %359 = vmatprep.mubr.f32.mxu0 0.0
    %360 = vmatmul.mubr.f32.gmra.mrb[0].mxu0 %v291
    %v361 = vpop.f32.mrb[0].mxu0
    %v362 = vadd.f32 0.0, %v361
    %v363 = vpop.f32.mrb[0].mxu0
    %364 = vdwg.mxu0
    %v365 = vmul.f32 %v285, 0.35355338
    %v366 = vmul.f32 %v362, 0.35355338
    %v369 = vlaneseq
    %v370 = vshrl.u32 %v369, 7
    %v371 = vsub.s32 0, %v370
    %v372 = vrot.slane %v63, %v371
    %v373 = vlaneseq
    %v374 = vshrl.u32 %v373, 7
    %v375 = vsub.s32 0, %v374
    %v376 = vrot.slane %v64, %v375
    %v379 = vadd.f32 %v365, %v372
    %v380 = vadd.f32 %v366, %v376
    %v381 = vsel %vm213, %v379, -inf
    %382 = vmax.xlane.f32.xlu0 %v381
    %v383 = vpop.xlane.xlu0 %382
    %v384 = vsel %vm213, %v380, -inf
    %385 = vmax.xlane.f32.xlu0 %v384
    %v386 = vpop.xlane.xlu0 %385
    %v387 = vsub.f32 %v379, %v383
    %v388 = vsub.f32 %v380, %v386
    %v389 = vmul.f32 %v387, 1.442695
    %v390 = vpow.pop %v389
    %v391 = vmul.f32 %v388, 1.442695
    %v392 = vpow.pop %v391
    %v393 = vsel %vm213, %v390, 0.0
    %394 = vadd.xlane.f32.xlu0 %v393
    %v395 = vpop.xlane.xlu0 %394
    %v396 = vsel %vm213, %v392, 0.0
    %397 = vadd.xlane.f32.xlu0 %v396
    %v398 = vpop.xlane.xlu0 %397
    %v399 = vrcp.pop %v395
    %v400 = vrcp.pop %v398
    %v401 = vmul.f32 %v390, %v399
    %v402 = vmul.f32 %v392, %v400
    %403 = vrot.lane.b32.xlu0 %v197, 64
    %v404 = vpop.permute.xlu0 %403
    %v407 = vsel %vm213, %v401, 0
    %409 = vmatprep.subr.mxu0 0.0
    %410 = vmatpush1.msra.mxu0 %v404
    %411 = vmatprep.subr.mxu0 0.0
    %412 = vmatpush1.msra.mxu0 0.0
    %413 = vmatprep.subr.mxu0 0.0
    %414 = vmatpush1.msra.mxu0 0.0
    %415 = vmatprep.subr.mxu0 0.0
    %416 = vmatpush1.msra.mxu0 0.0
    %417 = vmatprep.subr.mxu0 0.0
    %418 = vmatpush1.msra.mxu0 0.0
    %419 = vmatprep.subr.mxu0 0.0
    %420 = vmatpush1.msra.mxu0 0.0
    %421 = vmatprep.subr.mxu0 0.0
    %422 = vmatpush1.msra.mxu0 0.0
    %423 = vmatprep.subr.mxu0 0.0
    %424 = vmatpush1.msra.mxu0 0.0
    %425 = vmatprep.subr.mxu0 0.0
    %426 = vmatpush1.msra.mxu0 0.0
    %427 = vmatprep.subr.mxu0 0.0
    %428 = vmatpush1.msra.mxu0 0.0
    %429 = vmatprep.subr.mxu0 0.0
    %430 = vmatpush1.msra.mxu0 0.0
    %431 = vmatprep.subr.mxu0 0.0
    %432 = vmatpush1.msra.mxu0 0.0
    %433 = vmatprep.subr.mxu0 0.0
    %434 = vmatpush1.msra.mxu0 0.0
    %435 = vmatprep.subr.mxu0 0.0
    %436 = vmatpush1.msra.mxu0 0.0
    %437 = vmatprep.subr.mxu0 0.0
    %438 = vmatpush1.msra.mxu0 0.0
    %439 = vmatprep.subr.mxu0 0.0
    %440 = vmatpush1.msra.mxu0 0.0
    %441 = vmatprep.subr.mxu0 0.0
    %442 = vmatpush1.msra.mxu0 0.0
    %443 = vmatprep.subr.mxu0 0.0
    %444 = vmatpush1.msra.mxu0 0.0
    %445 = vmatprep.subr.mxu0 0.0
    %446 = vmatpush1.msra.mxu0 0.0
    %447 = vmatprep.subr.mxu0 0.0
    %448 = vmatpush1.msra.mxu0 0.0
    %449 = vmatprep.subr.mxu0 0.0
    %450 = vmatpush1.msra.mxu0 0.0
    %451 = vmatprep.subr.mxu0 0.0
    %452 = vmatpush1.msra.mxu0 0.0
    %453 = vmatprep.subr.mxu0 0.0
    %454 = vmatpush1.msra.mxu0 0.0
    %455 = vmatprep.subr.mxu0 0.0
    %456 = vmatpush1.msra.mxu0 0.0
    %457 = vmatprep.subr.mxu0 0.0
    %458 = vmatpush1.msra.mxu0 0.0
    %459 = vmatprep.subr.mxu0 0.0
    %460 = vmatpush1.msra.mxu0 0.0
    %461 = vmatprep.subr.mxu0 0.0
    %462 = vmatpush1.msra.mxu0 0.0
    %463 = vmatprep.subr.mxu0 0.0
    %464 = vmatpush1.msra.mxu0 0.0
    %465 = vmatprep.subr.mxu0 0.0
    %466 = vmatpush1.msra.mxu0 0.0
    %467 = vmatprep.subr.mxu0 0.0
    %468 = vmatpush1.msra.mxu0 0.0
    %469 = vmatprep.subr.mxu0 0.0
    %470 = vmatpush1.msra.mxu0 0.0
    %471 = vmatprep.subr.mxu0 0.0
    %472 = vmatpush1.msra.mxu0 0.0
    %473 = vmatprep.mubr.f32.mxu0 0.0
    %474 = vmatmul.mubr.f32.gmra.mrb[0].mxu0 %v407
    %v475 = vpop.f32.mrb[0].mxu0
    %v476 = vadd.f32 0.0, %v475
    %v477 = vpop.f32.mrb[0].mxu0
    %478 = vdwg.mxu0
    %479 = vrot.lane.b32.xlu0 %v202, 64
    %v480 = vpop.permute.xlu0 %479
    %v483 = vsel %vm213, %v402, 0
    %485 = vmatprep.subr.mxu0 0.0
    %486 = vmatpush1.msra.mxu0 %v480
    %487 = vmatprep.subr.mxu0 0.0
    %488 = vmatpush1.msra.mxu0 0.0
    %489 = vmatprep.subr.mxu0 0.0
    %490 = vmatpush1.msra.mxu0 0.0
    %491 = vmatprep.subr.mxu0 0.0
    %492 = vmatpush1.msra.mxu0 0.0
    %493 = vmatprep.subr.mxu0 0.0
    %494 = vmatpush1.msra.mxu0 0.0
    %495 = vmatprep.subr.mxu0 0.0
    %496 = vmatpush1.msra.mxu0 0.0
    %497 = vmatprep.subr.mxu0 0.0
    %498 = vmatpush1.msra.mxu0 0.0
    %499 = vmatprep.subr.mxu0 0.0
    %500 = vmatpush1.msra.mxu0 0.0
    %501 = vmatprep.subr.mxu0 0.0
    %502 = vmatpush1.msra.mxu0 0.0
    %503 = vmatprep.subr.mxu0 0.0
    %504 = vmatpush1.msra.mxu0 0.0
    %505 = vmatprep.subr.mxu0 0.0
    %506 = vmatpush1.msra.mxu0 0.0
    %507 = vmatprep.subr.mxu0 0.0
    %508 = vmatpush1.msra.mxu0 0.0
    %509 = vmatprep.subr.mxu0 0.0
    %510 = vmatpush1.msra.mxu0 0.0
    %511 = vmatprep.subr.mxu0 0.0
    %512 = vmatpush1.msra.mxu0 0.0
    %513 = vmatprep.subr.mxu0 0.0
    %514 = vmatpush1.msra.mxu0 0.0
    %515 = vmatprep.subr.mxu0 0.0
    %516 = vmatpush1.msra.mxu0 0.0
    %517 = vmatprep.subr.mxu0 0.0
    %518 = vmatpush1.msra.mxu0 0.0
    %519 = vmatprep.subr.mxu0 0.0
    %520 = vmatpush1.msra.mxu0 0.0
    %521 = vmatprep.subr.mxu0 0.0
    %522 = vmatpush1.msra.mxu0 0.0
    %523 = vmatprep.subr.mxu0 0.0
    %524 = vmatpush1.msra.mxu0 0.0
    %525 = vmatprep.subr.mxu0 0.0
    %526 = vmatpush1.msra.mxu0 0.0
    %527 = vmatprep.subr.mxu0 0.0
    %528 = vmatpush1.msra.mxu0 0.0
    %529 = vmatprep.subr.mxu0 0.0
    %530 = vmatpush1.msra.mxu0 0.0
    %531 = vmatprep.subr.mxu0 0.0
    %532 = vmatpush1.msra.mxu0 0.0
    %533 = vmatprep.subr.mxu0 0.0
    %534 = vmatpush1.msra.mxu0 0.0
    %535 = vmatprep.subr.mxu0 0.0
    %536 = vmatpush1.msra.mxu0 0.0
    %537 = vmatprep.subr.mxu0 0.0
    %538 = vmatpush1.msra.mxu0 0.0
    %539 = vmatprep.subr.mxu0 0.0
    %540 = vmatpush1.msra.mxu0 0.0
    %541 = vmatprep.subr.mxu0 0.0
    %542 = vmatpush1.msra.mxu0 0.0
    %543 = vmatprep.subr.mxu0 0.0
    %544 = vmatpush1.msra.mxu0 0.0
    %545 = vmatprep.subr.mxu0 0.0
    %546 = vmatpush1.msra.mxu0 0.0
    %547 = vmatprep.subr.mxu0 0.0
    %548 = vmatpush1.msra.mxu0 0.0
    %549 = vmatprep.mubr.f32.mxu0 0.0
    %550 = vmatmul.mubr.f32.gmra.mrb[0].mxu0 %v483
    %v551 = vpop.f32.mrb[0].mxu0
    %v552 = vadd.f32 0.0, %v551
    %v553 = vpop.f32.mrb[0].mxu0
    %554 = vdwg.mxu0
    %v556 = vsel %vm213, %v476, 0
    %v559 = vsel %vm213, %v552, 0
    %561 = vmatprep.subr.mxu0 0.0
    %562 = vmatpush1.msra.mxu0 %v205
    %563 = vmatprep.subr.mxu0 0.0
    %564 = vmatpush1.msra.mxu0 0.0
    %565 = vmatprep.subr.mxu0 0.0
    %566 = vmatpush1.msra.mxu0 0.0
    %567 = vmatprep.subr.mxu0 0.0
    %568 = vmatpush1.msra.mxu0 0.0
    %569 = vmatprep.subr.mxu0 0.0
    %570 = vmatpush1.msra.mxu0 0.0
    %571 = vmatprep.subr.mxu0 0.0
    %572 = vmatpush1.msra.mxu0 0.0
    %573 = vmatprep.subr.mxu0 0.0
    %574 = vmatpush1.msra.mxu0 0.0
    %575 = vmatprep.subr.mxu0 0.0
    %576 = vmatpush1.msra.mxu0 0.0
    %577 = vmatprep.subr.mxu0 0.0
    %578 = vmatpush1.msra.mxu0 0.0
    %579 = vmatprep.subr.mxu0 0.0
    %580 = vmatpush1.msra.mxu0 0.0
    %581 = vmatprep.subr.mxu0 0.0
    %582 = vmatpush1.msra.mxu0 0.0
    %583 = vmatprep.subr.mxu0 0.0
    %584 = vmatpush1.msra.mxu0 0.0
    %585 = vmatprep.subr.mxu0 0.0
    %586 = vmatpush1.msra.mxu0 0.0
    %587 = vmatprep.subr.mxu0 0.0
    %588 = vmatpush1.msra.mxu0 0.0
    %589 = vmatprep.subr.mxu0 0.0
    %590 = vmatpush1.msra.mxu0 0.0
    %591 = vmatprep.subr.mxu0 0.0
    %592 = vmatpush1.msra.mxu0 0.0
    %593 = vmatprep.subr.mxu0 0.0
    %594 = vmatpush1.msra.mxu0 0.0
    %595 = vmatprep.subr.mxu0 0.0
    %596 = vmatpush1.msra.mxu0 0.0
    %597 = vmatprep.subr.mxu0 0.0
    %598 = vmatpush1.msra.mxu0 0.0
    %599 = vmatprep.subr.mxu0 0.0
    %600 = vmatpush1.msra.mxu0 0.0
    %601 = vmatprep.subr.mxu0 0.0
    %602 = vmatpush1.msra.mxu0 0.0
    %603 = vmatprep.subr.mxu0 0.0
    %604 = vmatpush1.msra.mxu0 0.0
    %605 = vmatprep.subr.mxu0 0.0
    %606 = vmatpush1.msra.mxu0 0.0
    %607 = vmatprep.subr.mxu0 0.0
    %608 = vmatpush1.msra.mxu0 0.0
    %609 = vmatprep.subr.mxu0 0.0
    %610 = vmatpush1.msra.mxu0 0.0
    %611 = vmatprep.subr.mxu0 0.0
    %612 = vmatpush1.msra.mxu0 0.0
    %613 = vmatprep.subr.mxu0 0.0
    %614 = vmatpush1.msra.mxu0 0.0
    %615 = vmatprep.subr.mxu0 0.0
    %616 = vmatpush1.msra.mxu0 0.0
    %617 = vmatprep.subr.mxu0 0.0
    %618 = vmatpush1.msra.mxu0 0.0
    %619 = vmatprep.subr.mxu0 0.0
    %620 = vmatpush1.msra.mxu0 0.0
    %621 = vmatprep.subr.mxu0 0.0
    %622 = vmatpush1.msra.mxu0 0.0
    %623 = vmatprep.subr.mxu0 0.0
    %624 = vmatpush1.msra.mxu0 0.0
    %625 = vmatprep.mubr.f32.mxu0 0.0
    %626 = vmatmul.mubr.f32.gmra.mrb[0].mxu0 %v556
    %v627 = vpop.f32.mrb[0].mxu0
    %v628 = vadd.f32 0.0, %v627
    %v629 = vpop.f32.mrb[0].mxu0
    %630 = vmatprep.mubr.f32.mxu0 0.0
    %631 = vmatmul.mubr.f32.gmra.mrb[0].mxu0 %v559
    %v632 = vpop.f32.mrb[0].mxu0
    %v633 = vadd.f32 0.0, %v632
    %v634 = vpop.f32.mrb[0].mxu0
    %635 = vdwg.mxu0
    %v637 = vlaneseq
    %v638 = vshrl.u32 %v637, 7
    %v639 = vsub.s32 0, %v638
    %v640 = vrot.slane %v209, %v639
    %v642 = vadd.f32 %v640, %v628
    %v643 = vadd.f32 %v640, %v633
    %644 = vrot.lane.b32.xlu0 %v197, 120
    %v645 = vpop.permute.xlu0 %644
    %646 = vrot.lane.b32.xlu0 %v197, 88
    %v647 = vpop.permute.xlu0 %646
    %v648 = vsel %vm213, %v645, 0
    %v650 = vsel %vm213, %v647, 0
    %652 = vmatprep.subr.mxu0 0.0
    %653 = vmatpush1.xpose.msra.mxu0 %v650
    %654 = vmatprep.subr.mxu0 0.0
    %655 = vmatpush1.xpose.msra.mxu0 0.0
    %656 = vmatprep.subr.mxu0 0.0
    %657 = vmatpush1.xpose.msra.mxu0 0.0
    %658 = vmatprep.subr.mxu0 0.0
    %659 = vmatpush1.xpose.msra.mxu0 0.0
    %660 = vmatprep.subr.mxu0 0.0
    %661 = vmatpush1.xpose.msra.mxu0 0.0
    %662 = vmatprep.subr.mxu0 0.0
    %663 = vmatpush1.xpose.msra.mxu0 0.0
    %664 = vmatprep.subr.mxu0 0.0
    %665 = vmatpush1.xpose.msra.mxu0 0.0
    %666 = vmatprep.subr.mxu0 0.0
    %667 = vmatpush1.xpose.msra.mxu0 0.0
    %668 = vmatprep.subr.mxu0 0.0
    %669 = vmatpush1.xpose.msra.mxu0 0.0
    %670 = vmatprep.subr.mxu0 0.0
    %671 = vmatpush1.xpose.msra.mxu0 0.0
    %672 = vmatprep.subr.mxu0 0.0
    %673 = vmatpush1.xpose.msra.mxu0 0.0
    %674 = vmatprep.subr.mxu0 0.0
    %675 = vmatpush1.xpose.msra.mxu0 0.0
    %676 = vmatprep.subr.mxu0 0.0
    %677 = vmatpush1.xpose.msra.mxu0 0.0
    %678 = vmatprep.subr.mxu0 0.0
    %679 = vmatpush1.xpose.msra.mxu0 0.0
    %680 = vmatprep.subr.mxu0 0.0
    %681 = vmatpush1.xpose.msra.mxu0 0.0
    %682 = vmatprep.subr.mxu0 0.0
    %683 = vmatpush1.xpose.msra.mxu0 0.0
    %684 = vmatprep.subr.mxu0 0.0
    %685 = vmatpush1.xpose.msra.mxu0 0.0
    %686 = vmatprep.subr.mxu0 0.0
    %687 = vmatpush1.xpose.msra.mxu0 0.0
    %688 = vmatprep.subr.mxu0 0.0
    %689 = vmatpush1.xpose.msra.mxu0 0.0
    %690 = vmatprep.subr.mxu0 0.0
    %691 = vmatpush1.xpose.msra.mxu0 0.0
    %692 = vmatprep.subr.mxu0 0.0
    %693 = vmatpush1.xpose.msra.mxu0 0.0
    %694 = vmatprep.subr.mxu0 0.0
    %695 = vmatpush1.xpose.msra.mxu0 0.0
    %696 = vmatprep.subr.mxu0 0.0
    %697 = vmatpush1.xpose.msra.mxu0 0.0
    %698 = vmatprep.subr.mxu0 0.0
    %699 = vmatpush1.xpose.msra.mxu0 0.0
    %700 = vmatprep.subr.mxu0 0.0
    %701 = vmatpush1.xpose.msra.mxu0 0.0
    %702 = vmatprep.subr.mxu0 0.0
    %703 = vmatpush1.xpose.msra.mxu0 0.0
    %704 = vmatprep.subr.mxu0 0.0
    %705 = vmatpush1.xpose.msra.mxu0 0.0
    %706 = vmatprep.subr.mxu0 0.0
    %707 = vmatpush1.xpose.msra.mxu0 0.0
    %708 = vmatprep.subr.mxu0 0.0
    %709 = vmatpush1.xpose.msra.mxu0 0.0
    %710 = vmatprep.subr.mxu0 0.0
    %711 = vmatpush1.xpose.msra.mxu0 0.0
    %712 = vmatprep.subr.mxu0 0.0
    %713 = vmatpush1.xpose.msra.mxu0 0.0
    %714 = vmatprep.subr.mxu0 0.0
    %715 = vmatpush1.xpose.msra.mxu0 0.0
    %716 = vmatprep.mubr.f32.mxu0 0.0
    %717 = vmatmul.mubr.f32.gmra.mrb[0].mxu0 %v648
    %v718 = vpop.f32.mrb[0].mxu0
    %v719 = vadd.f32 0.0, %v718
    %v720 = vpop.f32.mrb[0].mxu0
    %721 = vdwg.mxu0
    %722 = vrot.lane.b32.xlu0 %v202, 120
    %v723 = vpop.permute.xlu0 %722
    %724 = vrot.lane.b32.xlu0 %v202, 88
    %v725 = vpop.permute.xlu0 %724
    %v726 = vsel %vm213, %v723, 0
    %v728 = vsel %vm213, %v725, 0
    %730 = vmatprep.subr.mxu0 0.0
    %731 = vmatpush1.xpose.msra.mxu0 %v728
    %732 = vmatprep.subr.mxu0 0.0
    %733 = vmatpush1.xpose.msra.mxu0 0.0
    %734 = vmatprep.subr.mxu0 0.0
    %735 = vmatpush1.xpose.msra.mxu0 0.0
    %736 = vmatprep.subr.mxu0 0.0
    %737 = vmatpush1.xpose.msra.mxu0 0.0
    %738 = vmatprep.subr.mxu0 0.0
    %739 = vmatpush1.xpose.msra.mxu0 0.0
    %740 = vmatprep.subr.mxu0 0.0
    %741 = vmatpush1.xpose.msra.mxu0 0.0
    %742 = vmatprep.subr.mxu0 0.0
    %743 = vmatpush1.xpose.msra.mxu0 0.0
    %744 = vmatprep.subr.mxu0 0.0
    %745 = vmatpush1.xpose.msra.mxu0 0.0
    %746 = vmatprep.subr.mxu0 0.0
    %747 = vmatpush1.xpose.msra.mxu0 0.0
    %748 = vmatprep.subr.mxu0 0.0
    %749 = vmatpush1.xpose.msra.mxu0 0.0
    %750 = vmatprep.subr.mxu0 0.0
    %751 = vmatpush1.xpose.msra.mxu0 0.0
    %752 = vmatprep.subr.mxu0 0.0
    %753 = vmatpush1.xpose.msra.mxu0 0.0
    %754 = vmatprep.subr.mxu0 0.0
    %755 = vmatpush1.xpose.msra.mxu0 0.0
    %756 = vmatprep.subr.mxu0 0.0
    %757 = vmatpush1.xpose.msra.mxu0 0.0
    %758 = vmatprep.subr.mxu0 0.0
    %759 = vmatpush1.xpose.msra.mxu0 0.0
    %760 = vmatprep.subr.mxu0 0.0
    %761 = vmatpush1.xpose.msra.mxu0 0.0
    %762 = vmatprep.subr.mxu0 0.0
    %763 = vmatpush1.xpose.msra.mxu0 0.0
    %764 = vmatprep.subr.mxu0 0.0
    %765 = vmatpush1.xpose.msra.mxu0 0.0
    %766 = vmatprep.subr.mxu0 0.0
    %767 = vmatpush1.xpose.msra.mxu0 0.0
    %768 = vmatprep.subr.mxu0 0.0
    %769 = vmatpush1.xpose.msra.mxu0 0.0
    %770 = vmatprep.subr.mxu0 0.0
    %771 = vmatpush1.xpose.msra.mxu0 0.0
    %772 = vmatprep.subr.mxu0 0.0
    %773 = vmatpush1.xpose.msra.mxu0 0.0
    %774 = vmatprep.subr.mxu0 0.0
    %775 = vmatpush1.xpose.msra.mxu0 0.0
    %776 = vmatprep.subr.mxu0 0.0
    %777 = vmatpush1.xpose.msra.mxu0 0.0
    %778 = vmatprep.subr.mxu0 0.0
    %779 = vmatpush1.xpose.msra.mxu0 0.0
    %780 = vmatprep.subr.mxu0 0.0
    %781 = vmatpush1.xpose.msra.mxu0 0.0
    %782 = vmatprep.subr.mxu0 0.0
    %783 = vmatpush1.xpose.msra.mxu0 0.0
    %784 = vmatprep.subr.mxu0 0.0
    %785 = vmatpush1.xpose.msra.mxu0 0.0
    %786 = vmatprep.subr.mxu0 0.0
    %787 = vmatpush1.xpose.msra.mxu0 0.0
    %788 = vmatprep.subr.mxu0 0.0
    %789 = vmatpush1.xpose.msra.mxu0 0.0
    %790 = vmatprep.subr.mxu0 0.0
    %791 = vmatpush1.xpose.msra.mxu0 0.0
    %792 = vmatprep.subr.mxu0 0.0
    %793 = vmatpush1.xpose.msra.mxu0 0.0
    %794 = vmatprep.mubr.f32.mxu0 0.0
    %795 = vmatmul.mubr.f32.gmra.mrb[0].mxu0 %v726
    %v796 = vpop.f32.mrb[0].mxu0
    %v797 = vadd.f32 0.0, %v796
    %v798 = vpop.f32.mrb[0].mxu0
    %799 = vdwg.mxu0
    %v800 = vmul.f32 %v719, 0.35355338
    %v801 = vmul.f32 %v797, 0.35355338
    %v802 = vadd.f32 %v800, %v372
    %v803 = vadd.f32 %v801, %v376
    %v804 = vsel %vm213, %v802, -inf
    %805 = vmax.xlane.f32.xlu0 %v804
    %v806 = vpop.xlane.xlu0 %805
    %v807 = vsel %vm213, %v803, -inf
    %808 = vmax.xlane.f32.xlu0 %v807
    %v809 = vpop.xlane.xlu0 %808
    %v810 = vsub.f32 %v802, %v806
    %v811 = vsub.f32 %v803, %v809
    %v812 = vmul.f32 %v810, 1.442695
    %v813 = vpow.pop %v812
    %v814 = vmul.f32 %v811, 1.442695
    %v815 = vpow.pop %v814
    %v816 = vsel %vm213, %v813, 0.0
    %817 = vadd.xlane.f32.xlu0 %v816
    %v818 = vpop.xlane.xlu0 %817
    %v819 = vsel %vm213, %v815, 0.0
    %820 = vadd.xlane.f32.xlu0 %v819
    %v821 = vpop.xlane.xlu0 %820
    %v822 = vrcp.pop %v818
    %v823 = vrcp.pop %v821
    %v824 = vmul.f32 %v813, %v822
    %v825 = vmul.f32 %v815, %v823
    %826 = vrot.lane.b32.xlu0 %v197, 56
    %v827 = vpop.permute.xlu0 %826
    %v830 = vsel %vm213, %v824, 0
    %832 = vmatprep.subr.mxu0 0.0
    %833 = vmatpush1.msra.mxu0 %v827
    %834 = vmatprep.subr.mxu0 0.0
    %835 = vmatpush1.msra.mxu0 0.0
    %836 = vmatprep.subr.mxu0 0.0
    %837 = vmatpush1.msra.mxu0 0.0
    %838 = vmatprep.subr.mxu0 0.0
    %839 = vmatpush1.msra.mxu0 0.0
    %840 = vmatprep.subr.mxu0 0.0
    %841 = vmatpush1.msra.mxu0 0.0
    %842 = vmatprep.subr.mxu0 0.0
    %843 = vmatpush1.msra.mxu0 0.0
    %844 = vmatprep.subr.mxu0 0.0
    %845 = vmatpush1.msra.mxu0 0.0
    %846 = vmatprep.subr.mxu0 0.0
    %847 = vmatpush1.msra.mxu0 0.0
    %848 = vmatprep.subr.mxu0 0.0
    %849 = vmatpush1.msra.mxu0 0.0
    %850 = vmatprep.subr.mxu0 0.0
    %851 = vmatpush1.msra.mxu0 0.0
    %852 = vmatprep.subr.mxu0 0.0
    %853 = vmatpush1.msra.mxu0 0.0
    %854 = vmatprep.subr.mxu0 0.0
    %855 = vmatpush1.msra.mxu0 0.0
    %856 = vmatprep.subr.mxu0 0.0
    %857 = vmatpush1.msra.mxu0 0.0
    %858 = vmatprep.subr.mxu0 0.0
    %859 = vmatpush1.msra.mxu0 0.0
    %860 = vmatprep.subr.mxu0 0.0
    %861 = vmatpush1.msra.mxu0 0.0
    %862 = vmatprep.subr.mxu0 0.0
    %863 = vmatpush1.msra.mxu0 0.0
    %864 = vmatprep.subr.mxu0 0.0
    %865 = vmatpush1.msra.mxu0 0.0
    %866 = vmatprep.subr.mxu0 0.0
    %867 = vmatpush1.msra.mxu0 0.0
    %868 = vmatprep.subr.mxu0 0.0
    %869 = vmatpush1.msra.mxu0 0.0
    %870 = vmatprep.subr.mxu0 0.0
    %871 = vmatpush1.msra.mxu0 0.0
    %872 = vmatprep.subr.mxu0 0.0
    %873 = vmatpush1.msra.mxu0 0.0
    %874 = vmatprep.subr.mxu0 0.0
    %875 = vmatpush1.msra.mxu0 0.0
    %876 = vmatprep.subr.mxu0 0.0
    %877 = vmatpush1.msra.mxu0 0.0
    %878 = vmatprep.subr.mxu0 0.0
    %879 = vmatpush1.msra.mxu0 0.0
    %880 = vmatprep.subr.mxu0 0.0
    %881 = vmatpush1.msra.mxu0 0.0
    %882 = vmatprep.subr.mxu0 0.0
    %883 = vmatpush1.msra.mxu0 0.0
    %884 = vmatprep.subr.mxu0 0.0
    %885 = vmatpush1.msra.mxu0 0.0
    %886 = vmatprep.subr.mxu0 0.0
    %887 = vmatpush1.msra.mxu0 0.0
    %888 = vmatprep.subr.mxu0 0.0
    %889 = vmatpush1.msra.mxu0 0.0
    %890 = vmatprep.subr.mxu0 0.0
    %891 = vmatpush1.msra.mxu0 0.0
    %892 = vmatprep.subr.mxu0 0.0
    %893 = vmatpush1.msra.mxu0 0.0
    %894 = vmatprep.subr.mxu0 0.0
    %895 = vmatpush1.msra.mxu0 0.0
    %896 = vmatprep.mubr.f32.mxu0 0.0
    %897 = vmatmul.mubr.f32.gmra.mrb[0].mxu0 %v830
    %v898 = vpop.f32.mrb[0].mxu0
    %v899 = vadd.f32 0.0, %v898
    %v900 = vpop.f32.mrb[0].mxu0
    %901 = vdwg.mxu0
    %902 = vrot.lane.b32.xlu0 %v202, 56
    %v903 = vpop.permute.xlu0 %902
    %v906 = vsel %vm213, %v825, 0
    %908 = vmatprep.subr.mxu0 0.0
    %909 = vmatpush1.msra.mxu0 %v903
    %910 = vmatprep.subr.mxu0 0.0
    %911 = vmatpush1.msra.mxu0 0.0
    %912 = vmatprep.subr.mxu0 0.0
    %913 = vmatpush1.msra.mxu0 0.0
    %914 = vmatprep.subr.mxu0 0.0
    %915 = vmatpush1.msra.mxu0 0.0
    %916 = vmatprep.subr.mxu0 0.0
    %917 = vmatpush1.msra.mxu0 0.0
    %918 = vmatprep.subr.mxu0 0.0
    %919 = vmatpush1.msra.mxu0 0.0
    %920 = vmatprep.subr.mxu0 0.0
    %921 = vmatpush1.msra.mxu0 0.0
    %922 = vmatprep.subr.mxu0 0.0
    %923 = vmatpush1.msra.mxu0 0.0
    %924 = vmatprep.subr.mxu0 0.0
    %925 = vmatpush1.msra.mxu0 0.0
    %926 = vmatprep.subr.mxu0 0.0
    %927 = vmatpush1.msra.mxu0 0.0
    %928 = vmatprep.subr.mxu0 0.0
    %929 = vmatpush1.msra.mxu0 0.0
    %930 = vmatprep.subr.mxu0 0.0
    %931 = vmatpush1.msra.mxu0 0.0
    %932 = vmatprep.subr.mxu0 0.0
    %933 = vmatpush1.msra.mxu0 0.0
    %934 = vmatprep.subr.mxu0 0.0
    %935 = vmatpush1.msra.mxu0 0.0
    %936 = vmatprep.subr.mxu0 0.0
    %937 = vmatpush1.msra.mxu0 0.0
    %938 = vmatprep.subr.mxu0 0.0
    %939 = vmatpush1.msra.mxu0 0.0
    %940 = vmatprep.subr.mxu0 0.0
    %941 = vmatpush1.msra.mxu0 0.0
    %942 = vmatprep.subr.mxu0 0.0
    %943 = vmatpush1.msra.mxu0 0.0
    %944 = vmatprep.subr.mxu0 0.0
    %945 = vmatpush1.msra.mxu0 0.0
    %946 = vmatprep.subr.mxu0 0.0
    %947 = vmatpush1.msra.mxu0 0.0
    %948 = vmatprep.subr.mxu0 0.0
    %949 = vmatpush1.msra.mxu0 0.0
    %950 = vmatprep.subr.mxu0 0.0
    %951 = vmatpush1.msra.mxu0 0.0
    %952 = vmatprep.subr.mxu0 0.0
    %953 = vmatpush1.msra.mxu0 0.0
    %954 = vmatprep.subr.mxu0 0.0
    %955 = vmatpush1.msra.mxu0 0.0
    %956 = vmatprep.subr.mxu0 0.0
    %957 = vmatpush1.msra.mxu0 0.0
    %958 = vmatprep.subr.mxu0 0.0
    %959 = vmatpush1.msra.mxu0 0.0
    %960 = vmatprep.subr.mxu0 0.0
    %961 = vmatpush1.msra.mxu0 0.0
    %962 = vmatprep.subr.mxu0 0.0
    %963 = vmatpush1.msra.mxu0 0.0
    %964 = vmatprep.subr.mxu0 0.0
    %965 = vmatpush1.msra.mxu0 0.0
    %966 = vmatprep.subr.mxu0 0.0
    %967 = vmatpush1.msra.mxu0 0.0
    %968 = vmatprep.subr.mxu0 0.0
    %969 = vmatpush1.msra.mxu0 0.0
    %970 = vmatprep.subr.mxu0 0.0
    %971 = vmatpush1.msra.mxu0 0.0
    %972 = vmatprep.mubr.f32.mxu0 0.0
    %973 = vmatmul.mubr.f32.gmra.mrb[0].mxu0 %v906
    %v974 = vpop.f32.mrb[0].mxu0
    %v975 = vadd.f32 0.0, %v974
    %v976 = vpop.f32.mrb[0].mxu0
    %977 = vdwg.mxu0
    %v979 = vsel %vm213, %v899, 0
    %v982 = vsel %vm213, %v975, 0
    %984 = vmatprep.subr.mxu0 0.0
    %985 = vmatpush1.msra.mxu0 %v206
    %986 = vmatprep.subr.mxu0 0.0
    %987 = vmatpush1.msra.mxu0 0.0
    %988 = vmatprep.subr.mxu0 0.0
    %989 = vmatpush1.msra.mxu0 0.0
    %990 = vmatprep.subr.mxu0 0.0
    %991 = vmatpush1.msra.mxu0 0.0
    %992 = vmatprep.subr.mxu0 0.0
    %993 = vmatpush1.msra.mxu0 0.0
    %994 = vmatprep.subr.mxu0 0.0
    %995 = vmatpush1.msra.mxu0 0.0
    %996 = vmatprep.subr.mxu0 0.0
    %997 = vmatpush1.msra.mxu0 0.0
    %998 = vmatprep.subr.mxu0 0.0
    %999 = vmatpush1.msra.mxu0 0.0
    %1000 = vmatprep.subr.mxu0 0.0
    %1001 = vmatpush1.msra.mxu0 0.0
    %1002 = vmatprep.subr.mxu0 0.0
    %1003 = vmatpush1.msra.mxu0 0.0
    %1004 = vmatprep.subr.mxu0 0.0
    %1005 = vmatpush1.msra.mxu0 0.0
    %1006 = vmatprep.subr.mxu0 0.0
    %1007 = vmatpush1.msra.mxu0 0.0
    %1008 = vmatprep.subr.mxu0 0.0
    %1009 = vmatpush1.msra.mxu0 0.0
    %1010 = vmatprep.subr.mxu0 0.0
    %1011 = vmatpush1.msra.mxu0 0.0
    %1012 = vmatprep.subr.mxu0 0.0
    %1013 = vmatpush1.msra.mxu0 0.0
    %1014 = vmatprep.subr.mxu0 0.0
    %1015 = vmatpush1.msra.mxu0 0.0
    %1016 = vmatprep.subr.mxu0 0.0
    %1017 = vmatpush1.msra.mxu0 0.0
    %1018 = vmatprep.subr.mxu0 0.0
    %1019 = vmatpush1.msra.mxu0 0.0
    %1020 = vmatprep.subr.mxu0 0.0
    %1021 = vmatpush1.msra.mxu0 0.0
    %1022 = vmatprep.subr.mxu0 0.0
    %1023 = vmatpush1.msra.mxu0 0.0
    %1024 = vmatprep.subr.mxu0 0.0
    %1025 = vmatpush1.msra.mxu0 0.0
    %1026 = vmatprep.subr.mxu0 0.0
    %1027 = vmatpush1.msra.mxu0 0.0
    %1028 = vmatprep.subr.mxu0 0.0
    %1029 = vmatpush1.msra.mxu0 0.0
    %1030 = vmatprep.subr.mxu0 0.0
    %1031 = vmatpush1.msra.mxu0 0.0
    %1032 = vmatprep.subr.mxu0 0.0
    %1033 = vmatpush1.msra.mxu0 0.0
    %1034 = vmatprep.subr.mxu0 0.0
    %1035 = vmatpush1.msra.mxu0 0.0
    %1036 = vmatprep.subr.mxu0 0.0
    %1037 = vmatpush1.msra.mxu0 0.0
    %1038 = vmatprep.subr.mxu0 0.0
    %1039 = vmatpush1.msra.mxu0 0.0
    %1040 = vmatprep.subr.mxu0 0.0
    %1041 = vmatpush1.msra.mxu0 0.0
    %1042 = vmatprep.subr.mxu0 0.0
    %1043 = vmatpush1.msra.mxu0 0.0
    %1044 = vmatprep.subr.mxu0 0.0
    %1045 = vmatpush1.msra.mxu0 0.0
    %1046 = vmatprep.subr.mxu0 0.0
    %1047 = vmatpush1.msra.mxu0 0.0
    %1048 = vmatprep.mubr.f32.mxu0 0.0
    %1049 = vmatmul.mubr.f32.gmra.mrb[0].mxu0 %v979
    %v1050 = vpop.f32.mrb[0].mxu0
    %v1051 = vadd.f32 0.0, %v1050
    %v1052 = vpop.f32.mrb[0].mxu0
    %1053 = vmatprep.mubr.f32.mxu0 0.0
    %1054 = vmatmul.mubr.f32.gmra.mrb[0].mxu0 %v982
    %v1055 = vpop.f32.mrb[0].mxu0
    %v1056 = vadd.f32 0.0, %v1055
    %v1057 = vpop.f32.mrb[0].mxu0
    %1058 = vdwg.mxu0
    %v1059 = vadd.f32 %v642, %v1051
    %v1060 = vadd.f32 %v643, %v1056
    %1061 = vrot.lane.b32.xlu0 %v197, 112
    %v1062 = vpop.permute.xlu0 %1061
    %1063 = vrot.lane.b32.xlu0 %v197, 80
    %v1064 = vpop.permute.xlu0 %1063
    %v1065 = vsel %vm213, %v1062, 0
    %v1067 = vsel %vm213, %v1064, 0
    %1069 = vmatprep.subr.mxu0 0.0
    %1070 = vmatpush1.xpose.msra.mxu0 %v1067
    %1071 = vmatprep.subr.mxu0 0.0
    %1072 = vmatpush1.xpose.msra.mxu0 0.0
    %1073 = vmatprep.subr.mxu0 0.0
    %1074 = vmatpush1.xpose.msra.mxu0 0.0
    %1075 = vmatprep.subr.mxu0 0.0
    %1076 = vmatpush1.xpose.msra.mxu0 0.0
    %1077 = vmatprep.subr.mxu0 0.0
    %1078 = vmatpush1.xpose.msra.mxu0 0.0
    %1079 = vmatprep.subr.mxu0 0.0
    %1080 = vmatpush1.xpose.msra.mxu0 0.0
    %1081 = vmatprep.subr.mxu0 0.0
    %1082 = vmatpush1.xpose.msra.mxu0 0.0
    %1083 = vmatprep.subr.mxu0 0.0
    %1084 = vmatpush1.xpose.msra.mxu0 0.0
    %1085 = vmatprep.subr.mxu0 0.0
    %1086 = vmatpush1.xpose.msra.mxu0 0.0
    %1087 = vmatprep.subr.mxu0 0.0
    %1088 = vmatpush1.xpose.msra.mxu0 0.0
    %1089 = vmatprep.subr.mxu0 0.0
    %1090 = vmatpush1.xpose.msra.mxu0 0.0
    %1091 = vmatprep.subr.mxu0 0.0
    %1092 = vmatpush1.xpose.msra.mxu0 0.0
    %1093 = vmatprep.subr.mxu0 0.0
    %1094 = vmatpush1.xpose.msra.mxu0 0.0
    %1095 = vmatprep.subr.mxu0 0.0
    %1096 = vmatpush1.xpose.msra.mxu0 0.0
    %1097 = vmatprep.subr.mxu0 0.0
    %1098 = vmatpush1.xpose.msra.mxu0 0.0
    %1099 = vmatprep.subr.mxu0 0.0
    %1100 = vmatpush1.xpose.msra.mxu0 0.0
    %1101 = vmatprep.subr.mxu0 0.0
    %1102 = vmatpush1.xpose.msra.mxu0 0.0
    %1103 = vmatprep.subr.mxu0 0.0
    %1104 = vmatpush1.xpose.msra.mxu0 0.0
    %1105 = vmatprep.subr.mxu0 0.0
    %1106 = vmatpush1.xpose.msra.mxu0 0.0
    %1107 = vmatprep.subr.mxu0 0.0
    %1108 = vmatpush1.xpose.msra.mxu0 0.0
    %1109 = vmatprep.subr.mxu0 0.0
    %1110 = vmatpush1.xpose.msra.mxu0 0.0
    %1111 = vmatprep.subr.mxu0 0.0
    %1112 = vmatpush1.xpose.msra.mxu0 0.0
    %1113 = vmatprep.subr.mxu0 0.0
    %1114 = vmatpush1.xpose.msra.mxu0 0.0
    %1115 = vmatprep.subr.mxu0 0.0
    %1116 = vmatpush1.xpose.msra.mxu0 0.0
    %1117 = vmatprep.subr.mxu0 0.0
    %1118 = vmatpush1.xpose.msra.mxu0 0.0
    %1119 = vmatprep.subr.mxu0 0.0
    %1120 = vmatpush1.xpose.msra.mxu0 0.0
    %1121 = vmatprep.subr.mxu0 0.0
    %1122 = vmatpush1.xpose.msra.mxu0 0.0
    %1123 = vmatprep.subr.mxu0 0.0
    %1124 = vmatpush1.xpose.msra.mxu0 0.0
    %1125 = vmatprep.subr.mxu0 0.0
    %1126 = vmatpush1.xpose.msra.mxu0 0.0
    %1127 = vmatprep.subr.mxu0 0.0
    %1128 = vmatpush1.xpose.msra.mxu0 0.0
    %1129 = vmatprep.subr.mxu0 0.0
    %1130 = vmatpush1.xpose.msra.mxu0 0.0
    %1131 = vmatprep.subr.mxu0 0.0
    %1132 = vmatpush1.xpose.msra.mxu0 0.0
    %1133 = vmatprep.mubr.f32.mxu0 0.0
    %1134 = vmatmul.mubr.f32.gmra.mrb[0].mxu0 %v1065
    %v1135 = vpop.f32.mrb[0].mxu0
    %v1136 = vadd.f32 0.0, %v1135
    %v1137 = vpop.f32.mrb[0].mxu0
    %1138 = vdwg.mxu0
    %1139 = vrot.lane.b32.xlu0 %v202, 112
    %v1140 = vpop.permute.xlu0 %1139
    %1141 = vrot.lane.b32.xlu0 %v202, 80
    %v1142 = vpop.permute.xlu0 %1141
    %v1143 = vsel %vm213, %v1140, 0
    %v1145 = vsel %vm213, %v1142, 0
    %1147 = vmatprep.subr.mxu0 0.0
    %1148 = vmatpush1.xpose.msra.mxu0 %v1145
    %1149 = vmatprep.subr.mxu0 0.0
    %1150 = vmatpush1.xpose.msra.mxu0 0.0
    %1151 = vmatprep.subr.mxu0 0.0
    %1152 = vmatpush1.xpose.msra.mxu0 0.0
    %1153 = vmatprep.subr.mxu0 0.0
    %1154 = vmatpush1.xpose.msra.mxu0 0.0
    %1155 = vmatprep.subr.mxu0 0.0
    %1156 = vmatpush1.xpose.msra.mxu0 0.0
    %1157 = vmatprep.subr.mxu0 0.0
    %1158 = vmatpush1.xpose.msra.mxu0 0.0
    %1159 = vmatprep.subr.mxu0 0.0
    %1160 = vmatpush1.xpose.msra.mxu0 0.0
    %1161 = vmatprep.subr.mxu0 0.0
    %1162 = vmatpush1.xpose.msra.mxu0 0.0
    %1163 = vmatprep.subr.mxu0 0.0
    %1164 = vmatpush1.xpose.msra.mxu0 0.0
    %1165 = vmatprep.subr.mxu0 0.0
    %1166 = vmatpush1.xpose.msra.mxu0 0.0
    %1167 = vmatprep.subr.mxu0 0.0
    %1168 = vmatpush1.xpose.msra.mxu0 0.0
    %1169 = vmatprep.subr.mxu0 0.0
    %1170 = vmatpush1.xpose.msra.mxu0 0.0
    %1171 = vmatprep.subr.mxu0 0.0
    %1172 = vmatpush1.xpose.msra.mxu0 0.0
    %1173 = vmatprep.subr.mxu0 0.0
    %1174 = vmatpush1.xpose.msra.mxu0 0.0
    %1175 = vmatprep.subr.mxu0 0.0
    %1176 = vmatpush1.xpose.msra.mxu0 0.0
    %1177 = vmatprep.subr.mxu0 0.0
    %1178 = vmatpush1.xpose.msra.mxu0 0.0
    %1179 = vmatprep.subr.mxu0 0.0
    %1180 = vmatpush1.xpose.msra.mxu0 0.0
    %1181 = vmatprep.subr.mxu0 0.0
    %1182 = vmatpush1.xpose.msra.mxu0 0.0
    %1183 = vmatprep.subr.mxu0 0.0
    %1184 = vmatpush1.xpose.msra.mxu0 0.0
    %1185 = vmatprep.subr.mxu0 0.0
    %1186 = vmatpush1.xpose.msra.mxu0 0.0
    %1187 = vmatprep.subr.mxu0 0.0
    %1188 = vmatpush1.xpose.msra.mxu0 0.0
    %1189 = vmatprep.subr.mxu0 0.0
    %1190 = vmatpush1.xpose.msra.mxu0 0.0
    %1191 = vmatprep.subr.mxu0 0.0
    %1192 = vmatpush1.xpose.msra.mxu0 0.0
    %1193 = vmatprep.subr.mxu0 0.0
    %1194 = vmatpush1.xpose.msra.mxu0 0.0
    %1195 = vmatprep.subr.mxu0 0.0
    %1196 = vmatpush1.xpose.msra.mxu0 0.0
    %1197 = vmatprep.subr.mxu0 0.0
    %1198 = vmatpush1.xpose.msra.mxu0 0.0
    %1199 = vmatprep.subr.mxu0 0.0
    %1200 = vmatpush1.xpose.msra.mxu0 0.0
    %1201 = vmatprep.subr.mxu0 0.0
    %1202 = vmatpush1.xpose.msra.mxu0 0.0
    %1203 = vmatprep.subr.mxu0 0.0
    %1204 = vmatpush1.xpose.msra.mxu0 0.0
    %1205 = vmatprep.subr.mxu0 0.0
    %1206 = vmatpush1.xpose.msra.mxu0 0.0
    %1207 = vmatprep.subr.mxu0 0.0
    %1208 = vmatpush1.xpose.msra.mxu0 0.0
    %1209 = vmatprep.subr.mxu0 0.0
    %1210 = vmatpush1.xpose.msra.mxu0 0.0
    %1211 = vmatprep.mubr.f32.mxu0 0.0
    %1212 = vmatmul.mubr.f32.gmra.mrb[0].mxu0 %v1143
    %v1213 = vpop.f32.mrb[0].mxu0
    %v1214 = vadd.f32 0.0, %v1213
    %v1215 = vpop.f32.mrb[0].mxu0
    %1216 = vdwg.mxu0
    %v1217 = vmul.f32 %v1136, 0.35355338
    %v1218 = vmul.f32 %v1214, 0.35355338
    %v1219 = vadd.f32 %v1217, %v372
    %v1220 = vadd.f32 %v1218, %v376
    %v1221 = vsel %vm213, %v1219, -inf
    %1222 = vmax.xlane.f32.xlu0 %v1221
    %v1223 = vpop.xlane.xlu0 %1222
    %v1224 = vsel %vm213, %v1220, -inf
    %1225 = vmax.xlane.f32.xlu0 %v1224
    %v1226 = vpop.xlane.xlu0 %1225
    %v1227 = vsub.f32 %v1219, %v1223
    %v1228 = vsub.f32 %v1220, %v1226
    %v1229 = vmul.f32 %v1227, 1.442695
    %v1230 = vpow.pop %v1229
    %v1231 = vmul.f32 %v1228, 1.442695
    %v1232 = vpow.pop %v1231
    %v1233 = vsel %vm213, %v1230, 0.0
    %1234 = vadd.xlane.f32.xlu0 %v1233
    %v1235 = vpop.xlane.xlu0 %1234
    %v1236 = vsel %vm213, %v1232, 0.0
    %1237 = vadd.xlane.f32.xlu0 %v1236
    %v1238 = vpop.xlane.xlu0 %1237
    %v1239 = vrcp.pop %v1235
    %v1240 = vrcp.pop %v1238
    %v1241 = vmul.f32 %v1230, %v1239
    %v1242 = vmul.f32 %v1232, %v1240
    %1243 = vrot.lane.b32.xlu0 %v197, 48
    %v1244 = vpop.permute.xlu0 %1243
    %v1247 = vsel %vm213, %v1241, 0
    %1249 = vmatprep.subr.mxu0 0.0
    %1250 = vmatpush1.msra.mxu0 %v1244
    %1251 = vmatprep.subr.mxu0 0.0
    %1252 = vmatpush1.msra.mxu0 0.0
    %1253 = vmatprep.subr.mxu0 0.0
    %1254 = vmatpush1.msra.mxu0 0.0
    %1255 = vmatprep.subr.mxu0 0.0
    %1256 = vmatpush1.msra.mxu0 0.0
    %1257 = vmatprep.subr.mxu0 0.0
    %1258 = vmatpush1.msra.mxu0 0.0
    %1259 = vmatprep.subr.mxu0 0.0
    %1260 = vmatpush1.msra.mxu0 0.0
    %1261 = vmatprep.subr.mxu0 0.0
    %1262 = vmatpush1.msra.mxu0 0.0
    %1263 = vmatprep.subr.mxu0 0.0
    %1264 = vmatpush1.msra.mxu0 0.0
    %1265 = vmatprep.subr.mxu0 0.0
    %1266 = vmatpush1.msra.mxu0 0.0
    %1267 = vmatprep.subr.mxu0 0.0
    %1268 = vmatpush1.msra.mxu0 0.0
    %1269 = vmatprep.subr.mxu0 0.0
    %1270 = vmatpush1.msra.mxu0 0.0
    %1271 = vmatprep.subr.mxu0 0.0
    %1272 = vmatpush1.msra.mxu0 0.0
    %1273 = vmatprep.subr.mxu0 0.0
    %1274 = vmatpush1.msra.mxu0 0.0
    %1275 = vmatprep.subr.mxu0 0.0
    %1276 = vmatpush1.msra.mxu0 0.0
    %1277 = vmatprep.subr.mxu0 0.0
    %1278 = vmatpush1.msra.mxu0 0.0
    %1279 = vmatprep.subr.mxu0 0.0
    %1280 = vmatpush1.msra.mxu0 0.0
    %1281 = vmatprep.subr.mxu0 0.0
    %1282 = vmatpush1.msra.mxu0 0.0
    %1283 = vmatprep.subr.mxu0 0.0
    %1284 = vmatpush1.msra.mxu0 0.0
    %1285 = vmatprep.subr.mxu0 0.0
    %1286 = vmatpush1.msra.mxu0 0.0
    %1287 = vmatprep.subr.mxu0 0.0
    %1288 = vmatpush1.msra.mxu0 0.0
    %1289 = vmatprep.subr.mxu0 0.0
    %1290 = vmatpush1.msra.mxu0 0.0
    %1291 = vmatprep.subr.mxu0 0.0
    %1292 = vmatpush1.msra.mxu0 0.0
    %1293 = vmatprep.subr.mxu0 0.0
    %1294 = vmatpush1.msra.mxu0 0.0
    %1295 = vmatprep.subr.mxu0 0.0
    %1296 = vmatpush1.msra.mxu0 0.0
    %1297 = vmatprep.subr.mxu0 0.0
    %1298 = vmatpush1.msra.mxu0 0.0
    %1299 = vmatprep.subr.mxu0 0.0
    %1300 = vmatpush1.msra.mxu0 0.0
    %1301 = vmatprep.subr.mxu0 0.0
    %1302 = vmatpush1.msra.mxu0 0.0
    %1303 = vmatprep.subr.mxu0 0.0
    %1304 = vmatpush1.msra.mxu0 0.0
    %1305 = vmatprep.subr.mxu0 0.0
    %1306 = vmatpush1.msra.mxu0 0.0
    %1307 = vmatprep.subr.mxu0 0.0
    %1308 = vmatpush1.msra.mxu0 0.0
    %1309 = vmatprep.subr.mxu0 0.0
    %1310 = vmatpush1.msra.mxu0 0.0
    %1311 = vmatprep.subr.mxu0 0.0
    %1312 = vmatpush1.msra.mxu0 0.0
    %1313 = vmatprep.mubr.f32.mxu0 0.0
    %1314 = vmatmul.mubr.f32.gmra.mrb[0].mxu0 %v1247
    %v1315 = vpop.f32.mrb[0].mxu0
    %v1316 = vadd.f32 0.0, %v1315
    %v1317 = vpop.f32.mrb[0].mxu0
    %1318 = vdwg.mxu0
    %1319 = vrot.lane.b32.xlu0 %v202, 48
    %v1320 = vpop.permute.xlu0 %1319
    %v1323 = vsel %vm213, %v1242, 0
    %1325 = vmatprep.subr.mxu0 0.0
    %1326 = vmatpush1.msra.mxu0 %v1320
    %1327 = vmatprep.subr.mxu0 0.0
    %1328 = vmatpush1.msra.mxu0 0.0
    %1329 = vmatprep.subr.mxu0 0.0
    %1330 = vmatpush1.msra.mxu0 0.0
    %1331 = vmatprep.subr.mxu0 0.0
    %1332 = vmatpush1.msra.mxu0 0.0
    %1333 = vmatprep.subr.mxu0 0.0
    %1334 = vmatpush1.msra.mxu0 0.0
    %1335 = vmatprep.subr.mxu0 0.0
    %1336 = vmatpush1.msra.mxu0 0.0
    %1337 = vmatprep.subr.mxu0 0.0
    %1338 = vmatpush1.msra.mxu0 0.0
    %1339 = vmatprep.subr.mxu0 0.0
    %1340 = vmatpush1.msra.mxu0 0.0
    %1341 = vmatprep.subr.mxu0 0.0
    %1342 = vmatpush1.msra.mxu0 0.0
    %1343 = vmatprep.subr.mxu0 0.0
    %1344 = vmatpush1.msra.mxu0 0.0
    %1345 = vmatprep.subr.mxu0 0.0
    %1346 = vmatpush1.msra.mxu0 0.0
    %1347 = vmatprep.subr.mxu0 0.0
    %1348 = vmatpush1.msra.mxu0 0.0
    %1349 = vmatprep.subr.mxu0 0.0
    %1350 = vmatpush1.msra.mxu0 0.0
    %1351 = vmatprep.subr.mxu0 0.0
    %1352 = vmatpush1.msra.mxu0 0.0
    %1353 = vmatprep.subr.mxu0 0.0
    %1354 = vmatpush1.msra.mxu0 0.0
    %1355 = vmatprep.subr.mxu0 0.0
    %1356 = vmatpush1.msra.mxu0 0.0
    %1357 = vmatprep.subr.mxu0 0.0
    %1358 = vmatpush1.msra.mxu0 0.0
    %1359 = vmatprep.subr.mxu0 0.0
    %1360 = vmatpush1.msra.mxu0 0.0
    %1361 = vmatprep.subr.mxu0 0.0
    %1362 = vmatpush1.msra.mxu0 0.0
    %1363 = vmatprep.subr.mxu0 0.0
    %1364 = vmatpush1.msra.mxu0 0.0
    %1365 = vmatprep.subr.mxu0 0.0
    %1366 = vmatpush1.msra.mxu0 0.0
    %1367 = vmatprep.subr.mxu0 0.0
    %1368 = vmatpush1.msra.mxu0 0.0
    %1369 = vmatprep.subr.mxu0 0.0
    %1370 = vmatpush1.msra.mxu0 0.0
    %1371 = vmatprep.subr.mxu0 0.0
    %1372 = vmatpush1.msra.mxu0 0.0
    %1373 = vmatprep.subr.mxu0 0.0
    %1374 = vmatpush1.msra.mxu0 0.0
    %1375 = vmatprep.subr.mxu0 0.0
    %1376 = vmatpush1.msra.mxu0 0.0
    %1377 = vmatprep.subr.mxu0 0.0
    %1378 = vmatpush1.msra.mxu0 0.0
    %1379 = vmatprep.subr.mxu0 0.0
    %1380 = vmatpush1.msra.mxu0 0.0
    %1381 = vmatprep.subr.mxu0 0.0
    %1382 = vmatpush1.msra.mxu0 0.0
    %1383 = vmatprep.subr.mxu0 0.0
    %1384 = vmatpush1.msra.mxu0 0.0
    %1385 = vmatprep.subr.mxu0 0.0
    %1386 = vmatpush1.msra.mxu0 0.0
    %1387 = vmatprep.subr.mxu0 0.0
    %1388 = vmatpush1.msra.mxu0 0.0
    %1389 = vmatprep.mubr.f32.mxu0 0.0
    %1390 = vmatmul.mubr.f32.gmra.mrb[0].mxu0 %v1323
    %v1391 = vpop.f32.mrb[0].mxu0
    %v1392 = vadd.f32 0.0, %v1391
    %v1393 = vpop.f32.mrb[0].mxu0
    %1394 = vdwg.mxu0
    %v1396 = vsel %vm213, %v1316, 0
    %v1399 = vsel %vm213, %v1392, 0
    %1401 = vmatprep.subr.mxu0 0.0
    %1402 = vmatpush1.msra.mxu0 %v207
    %1403 = vmatprep.subr.mxu0 0.0
    %1404 = vmatpush1.msra.mxu0 0.0
    %1405 = vmatprep.subr.mxu0 0.0
    %1406 = vmatpush1.msra.mxu0 0.0
    %1407 = vmatprep.subr.mxu0 0.0
    %1408 = vmatpush1.msra.mxu0 0.0
    %1409 = vmatprep.subr.mxu0 0.0
    %1410 = vmatpush1.msra.mxu0 0.0
    %1411 = vmatprep.subr.mxu0 0.0
    %1412 = vmatpush1.msra.mxu0 0.0
    %1413 = vmatprep.subr.mxu0 0.0
    %1414 = vmatpush1.msra.mxu0 0.0
    %1415 = vmatprep.subr.mxu0 0.0
    %1416 = vmatpush1.msra.mxu0 0.0
    %1417 = vmatprep.subr.mxu0 0.0
    %1418 = vmatpush1.msra.mxu0 0.0
    %1419 = vmatprep.subr.mxu0 0.0
    %1420 = vmatpush1.msra.mxu0 0.0
    %1421 = vmatprep.subr.mxu0 0.0
    %1422 = vmatpush1.msra.mxu0 0.0
    %1423 = vmatprep.subr.mxu0 0.0
    %1424 = vmatpush1.msra.mxu0 0.0
    %1425 = vmatprep.subr.mxu0 0.0
    %1426 = vmatpush1.msra.mxu0 0.0
    %1427 = vmatprep.subr.mxu0 0.0
    %1428 = vmatpush1.msra.mxu0 0.0
    %1429 = vmatprep.subr.mxu0 0.0
    %1430 = vmatpush1.msra.mxu0 0.0
    %1431 = vmatprep.subr.mxu0 0.0
    %1432 = vmatpush1.msra.mxu0 0.0
    %1433 = vmatprep.subr.mxu0 0.0
    %1434 = vmatpush1.msra.mxu0 0.0
    %1435 = vmatprep.subr.mxu0 0.0
    %1436 = vmatpush1.msra.mxu0 0.0
    %1437 = vmatprep.subr.mxu0 0.0
    %1438 = vmatpush1.msra.mxu0 0.0
    %1439 = vmatprep.subr.mxu0 0.0
    %1440 = vmatpush1.msra.mxu0 0.0
    %1441 = vmatprep.subr.mxu0 0.0
    %1442 = vmatpush1.msra.mxu0 0.0
    %1443 = vmatprep.subr.mxu0 0.0
    %1444 = vmatpush1.msra.mxu0 0.0
    %1445 = vmatprep.subr.mxu0 0.0
    %1446 = vmatpush1.msra.mxu0 0.0
    %1447 = vmatprep.subr.mxu0 0.0
    %1448 = vmatpush1.msra.mxu0 0.0
    %1449 = vmatprep.subr.mxu0 0.0
    %1450 = vmatpush1.msra.mxu0 0.0
    %1451 = vmatprep.subr.mxu0 0.0
    %1452 = vmatpush1.msra.mxu0 0.0
    %1453 = vmatprep.subr.mxu0 0.0
    %1454 = vmatpush1.msra.mxu0 0.0
    %1455 = vmatprep.subr.mxu0 0.0
    %1456 = vmatpush1.msra.mxu0 0.0
    %1457 = vmatprep.subr.mxu0 0.0
    %1458 = vmatpush1.msra.mxu0 0.0
    %1459 = vmatprep.subr.mxu0 0.0
    %1460 = vmatpush1.msra.mxu0 0.0
    %1461 = vmatprep.subr.mxu0 0.0
    %1462 = vmatpush1.msra.mxu0 0.0
    %1463 = vmatprep.subr.mxu0 0.0
    %1464 = vmatpush1.msra.mxu0 0.0
    %1465 = vmatprep.mubr.f32.mxu0 0.0
    %1466 = vmatmul.mubr.f32.gmra.mrb[0].mxu0 %v1396
    %v1467 = vpop.f32.mrb[0].mxu0
    %v1468 = vadd.f32 0.0, %v1467
    %v1469 = vpop.f32.mrb[0].mxu0
    %1470 = vmatprep.mubr.f32.mxu0 0.0
    %1471 = vmatmul.mubr.f32.gmra.mrb[0].mxu0 %v1399
    %v1472 = vpop.f32.mrb[0].mxu0
    %v1473 = vadd.f32 0.0, %v1472
    %v1474 = vpop.f32.mrb[0].mxu0
    %1475 = vdwg.mxu0
    %v1476 = vadd.f32 %v1059, %v1468
    %v1477 = vadd.f32 %v1060, %v1473
    %1478 = vrot.lane.b32.xlu0 %v197, 104
    %v1479 = vpop.permute.xlu0 %1478
    %1480 = vrot.lane.b32.xlu0 %v197, 72
    %v1481 = vpop.permute.xlu0 %1480
    %v1482 = vsel %vm213, %v1479, 0
    %v1484 = vsel %vm213, %v1481, 0
    %1486 = vmatprep.subr.mxu0 0.0
    %1487 = vmatpush1.xpose.msra.mxu0 %v1484
    %1488 = vmatprep.subr.mxu0 0.0
    %1489 = vmatpush1.xpose.msra.mxu0 0.0
    %1490 = vmatprep.subr.mxu0 0.0
    %1491 = vmatpush1.xpose.msra.mxu0 0.0
    %1492 = vmatprep.subr.mxu0 0.0
    %1493 = vmatpush1.xpose.msra.mxu0 0.0
    %1494 = vmatprep.subr.mxu0 0.0
    %1495 = vmatpush1.xpose.msra.mxu0 0.0
    %1496 = vmatprep.subr.mxu0 0.0
    %1497 = vmatpush1.xpose.msra.mxu0 0.0
    %1498 = vmatprep.subr.mxu0 0.0
    %1499 = vmatpush1.xpose.msra.mxu0 0.0
    %1500 = vmatprep.subr.mxu0 0.0
    %1501 = vmatpush1.xpose.msra.mxu0 0.0
    %1502 = vmatprep.subr.mxu0 0.0
    %1503 = vmatpush1.xpose.msra.mxu0 0.0
    %1504 = vmatprep.subr.mxu0 0.0
    %1505 = vmatpush1.xpose.msra.mxu0 0.0
    %1506 = vmatprep.subr.mxu0 0.0
    %1507 = vmatpush1.xpose.msra.mxu0 0.0
    %1508 = vmatprep.subr.mxu0 0.0
    %1509 = vmatpush1.xpose.msra.mxu0 0.0
    %1510 = vmatprep.subr.mxu0 0.0
    %1511 = vmatpush1.xpose.msra.mxu0 0.0
    %1512 = vmatprep.subr.mxu0 0.0
    %1513 = vmatpush1.xpose.msra.mxu0 0.0
    %1514 = vmatprep.subr.mxu0 0.0
    %1515 = vmatpush1.xpose.msra.mxu0 0.0
    %1516 = vmatprep.subr.mxu0 0.0
    %1517 = vmatpush1.xpose.msra.mxu0 0.0
    %1518 = vmatprep.subr.mxu0 0.0
    %1519 = vmatpush1.xpose.msra.mxu0 0.0
    %1520 = vmatprep.subr.mxu0 0.0
    %1521 = vmatpush1.xpose.msra.mxu0 0.0
    %1522 = vmatprep.subr.mxu0 0.0
    %1523 = vmatpush1.xpose.msra.mxu0 0.0
    %1524 = vmatprep.subr.mxu0 0.0
    %1525 = vmatpush1.xpose.msra.mxu0 0.0
    %1526 = vmatprep.subr.mxu0 0.0
    %1527 = vmatpush1.xpose.msra.mxu0 0.0
    %1528 = vmatprep.subr.mxu0 0.0
    %1529 = vmatpush1.xpose.msra.mxu0 0.0
    %1530 = vmatprep.subr.mxu0 0.0
    %1531 = vmatpush1.xpose.msra.mxu0 0.0
    %1532 = vmatprep.subr.mxu0 0.0
    %1533 = vmatpush1.xpose.msra.mxu0 0.0
    %1534 = vmatprep.subr.mxu0 0.0
    %1535 = vmatpush1.xpose.msra.mxu0 0.0
    %1536 = vmatprep.subr.mxu0 0.0
    %1537 = vmatpush1.xpose.msra.mxu0 0.0
    %1538 = vmatprep.subr.mxu0 0.0
    %1539 = vmatpush1.xpose.msra.mxu0 0.0
    %1540 = vmatprep.subr.mxu0 0.0
    %1541 = vmatpush1.xpose.msra.mxu0 0.0
    %1542 = vmatprep.subr.mxu0 0.0
    %1543 = vmatpush1.xpose.msra.mxu0 0.0
    %1544 = vmatprep.subr.mxu0 0.0
    %1545 = vmatpush1.xpose.msra.mxu0 0.0
    %1546 = vmatprep.subr.mxu0 0.0
    %1547 = vmatpush1.xpose.msra.mxu0 0.0
    %1548 = vmatprep.subr.mxu0 0.0
    %1549 = vmatpush1.xpose.msra.mxu0 0.0
    %1550 = vmatprep.mubr.f32.mxu0 0.0
    %1551 = vmatmul.mubr.f32.gmra.mrb[0].mxu0 %v1482
    %v1552 = vpop.f32.mrb[0].mxu0
    %v1553 = vadd.f32 0.0, %v1552
    %v1554 = vpop.f32.mrb[0].mxu0
    %1555 = vdwg.mxu0
    %1556 = vrot.lane.b32.xlu0 %v202, 104
    %v1557 = vpop.permute.xlu0 %1556
    %1558 = vrot.lane.b32.xlu0 %v202, 72
    %v1559 = vpop.permute.xlu0 %1558
    %v1560 = vsel %vm213, %v1557, 0
    %v1562 = vsel %vm213, %v1559, 0
    %1564 = vmatprep.subr.mxu0 0.0
    %1565 = vmatpush1.xpose.msra.mxu0 %v1562
    %1566 = vmatprep.subr.mxu0 0.0
    %1567 = vmatpush1.xpose.msra.mxu0 0.0
    %1568 = vmatprep.subr.mxu0 0.0
    %1569 = vmatpush1.xpose.msra.mxu0 0.0
    %1570 = vmatprep.subr.mxu0 0.0
    %1571 = vmatpush1.xpose.msra.mxu0 0.0
    %1572 = vmatprep.subr.mxu0 0.0
    %1573 = vmatpush1.xpose.msra.mxu0 0.0
    %1574 = vmatprep.subr.mxu0 0.0
    %1575 = vmatpush1.xpose.msra.mxu0 0.0
    %1576 = vmatprep.subr.mxu0 0.0
    %1577 = vmatpush1.xpose.msra.mxu0 0.0
    %1578 = vmatprep.subr.mxu0 0.0
    %1579 = vmatpush1.xpose.msra.mxu0 0.0
    %1580 = vmatprep.subr.mxu0 0.0
    %1581 = vmatpush1.xpose.msra.mxu0 0.0
    %1582 = vmatprep.subr.mxu0 0.0
    %1583 = vmatpush1.xpose.msra.mxu0 0.0
    %1584 = vmatprep.subr.mxu0 0.0
    %1585 = vmatpush1.xpose.msra.mxu0 0.0
    %1586 = vmatprep.subr.mxu0 0.0
    %1587 = vmatpush1.xpose.msra.mxu0 0.0
    %1588 = vmatprep.subr.mxu0 0.0
    %1589 = vmatpush1.xpose.msra.mxu0 0.0
    %1590 = vmatprep.subr.mxu0 0.0
    %1591 = vmatpush1.xpose.msra.mxu0 0.0
    %1592 = vmatprep.subr.mxu0 0.0
    %1593 = vmatpush1.xpose.msra.mxu0 0.0
    %1594 = vmatprep.subr.mxu0 0.0
    %1595 = vmatpush1.xpose.msra.mxu0 0.0
    %1596 = vmatprep.subr.mxu0 0.0
    %1597 = vmatpush1.xpose.msra.mxu0 0.0
    %1598 = vmatprep.subr.mxu0 0.0
    %1599 = vmatpush1.xpose.msra.mxu0 0.0
    %1600 = vmatprep.subr.mxu0 0.0
    %1601 = vmatpush1.xpose.msra.mxu0 0.0
    %1602 = vmatprep.subr.mxu0 0.0
    %1603 = vmatpush1.xpose.msra.mxu0 0.0
    %1604 = vmatprep.subr.mxu0 0.0
    %1605 = vmatpush1.xpose.msra.mxu0 0.0
    %1606 = vmatprep.subr.mxu0 0.0
    %1607 = vmatpush1.xpose.msra.mxu0 0.0
    %1608 = vmatprep.subr.mxu0 0.0
    %1609 = vmatpush1.xpose.msra.mxu0 0.0
    %1610 = vmatprep.subr.mxu0 0.0
    %1611 = vmatpush1.xpose.msra.mxu0 0.0
    %1612 = vmatprep.subr.mxu0 0.0
    %1613 = vmatpush1.xpose.msra.mxu0 0.0
    %1614 = vmatprep.subr.mxu0 0.0
    %1615 = vmatpush1.xpose.msra.mxu0 0.0
    %1616 = vmatprep.subr.mxu0 0.0
    %1617 = vmatpush1.xpose.msra.mxu0 0.0
    %1618 = vmatprep.subr.mxu0 0.0
    %1619 = vmatpush1.xpose.msra.mxu0 0.0
    %1620 = vmatprep.subr.mxu0 0.0
    %1621 = vmatpush1.xpose.msra.mxu0 0.0
    %1622 = vmatprep.subr.mxu0 0.0
    %1623 = vmatpush1.xpose.msra.mxu0 0.0
    %1624 = vmatprep.subr.mxu0 0.0
    %1625 = vmatpush1.xpose.msra.mxu0 0.0
    %1626 = vmatprep.subr.mxu0 0.0
    %1627 = vmatpush1.xpose.msra.mxu0 0.0
    %1628 = vmatprep.mubr.f32.mxu0 0.0
    %1629 = vmatmul.mubr.f32.gmra.mrb[0].mxu0 %v1560
    %v1630 = vpop.f32.mrb[0].mxu0
    %v1631 = vadd.f32 0.0, %v1630
    %v1632 = vpop.f32.mrb[0].mxu0
    %1633 = vdwg.mxu0
    %v1634 = vmul.f32 %v1553, 0.35355338
    %v1635 = vmul.f32 %v1631, 0.35355338
    %v1636 = vadd.f32 %v1634, %v372
    %v1637 = vadd.f32 %v1635, %v376
    %v1638 = vsel %vm213, %v1636, -inf
    %1639 = vmax.xlane.f32.xlu0 %v1638
    %v1640 = vpop.xlane.xlu0 %1639
    %v1641 = vsel %vm213, %v1637, -inf
    %1642 = vmax.xlane.f32.xlu0 %v1641
    %v1643 = vpop.xlane.xlu0 %1642
    %v1644 = vsub.f32 %v1636, %v1640
    %v1645 = vsub.f32 %v1637, %v1643
    %v1646 = vmul.f32 %v1644, 1.442695
    %v1647 = vpow.pop %v1646
    %v1648 = vmul.f32 %v1645, 1.442695
    %v1649 = vpow.pop %v1648
    %v1650 = vsel %vm213, %v1647, 0.0
    %1651 = vadd.xlane.f32.xlu0 %v1650
    %v1652 = vpop.xlane.xlu0 %1651
    %v1653 = vsel %vm213, %v1649, 0.0
    %1654 = vadd.xlane.f32.xlu0 %v1653
    %v1655 = vpop.xlane.xlu0 %1654
    %v1656 = vrcp.pop %v1652
    %v1657 = vrcp.pop %v1655
    %v1658 = vmul.f32 %v1647, %v1656
    %v1659 = vmul.f32 %v1649, %v1657
    %1660 = vrot.lane.b32.xlu0 %v197, 40
    %v1661 = vpop.permute.xlu0 %1660
    %v1664 = vsel %vm213, %v1658, 0
    %1666 = vmatprep.subr.mxu0 0.0
    %1667 = vmatpush1.msra.mxu0 %v1661
    %1668 = vmatprep.subr.mxu0 0.0
    %1669 = vmatpush1.msra.mxu0 0.0
    %1670 = vmatprep.subr.mxu0 0.0
    %1671 = vmatpush1.msra.mxu0 0.0
    %1672 = vmatprep.subr.mxu0 0.0
    %1673 = vmatpush1.msra.mxu0 0.0
    %1674 = vmatprep.subr.mxu0 0.0
    %1675 = vmatpush1.msra.mxu0 0.0
    %1676 = vmatprep.subr.mxu0 0.0
    %1677 = vmatpush1.msra.mxu0 0.0
    %1678 = vmatprep.subr.mxu0 0.0
    %1679 = vmatpush1.msra.mxu0 0.0
    %1680 = vmatprep.subr.mxu0 0.0
    %1681 = vmatpush1.msra.mxu0 0.0
    %1682 = vmatprep.subr.mxu0 0.0
    %1683 = vmatpush1.msra.mxu0 0.0
    %1684 = vmatprep.subr.mxu0 0.0
    %1685 = vmatpush1.msra.mxu0 0.0
    %1686 = vmatprep.subr.mxu0 0.0
    %1687 = vmatpush1.msra.mxu0 0.0
    %1688 = vmatprep.subr.mxu0 0.0
    %1689 = vmatpush1.msra.mxu0 0.0
    %1690 = vmatprep.subr.mxu0 0.0
    %1691 = vmatpush1.msra.mxu0 0.0
    %1692 = vmatprep.subr.mxu0 0.0
    %1693 = vmatpush1.msra.mxu0 0.0
    %1694 = vmatprep.subr.mxu0 0.0
    %1695 = vmatpush1.msra.mxu0 0.0
    %1696 = vmatprep.subr.mxu0 0.0
    %1697 = vmatpush1.msra.mxu0 0.0
    %1698 = vmatprep.subr.mxu0 0.0
    %1699 = vmatpush1.msra.mxu0 0.0
    %1700 = vmatprep.subr.mxu0 0.0
    %1701 = vmatpush1.msra.mxu0 0.0
    %1702 = vmatprep.subr.mxu0 0.0
    %1703 = vmatpush1.msra.mxu0 0.0
    %1704 = vmatprep.subr.mxu0 0.0
    %1705 = vmatpush1.msra.mxu0 0.0
    %1706 = vmatprep.subr.mxu0 0.0
    %1707 = vmatpush1.msra.mxu0 0.0
    %1708 = vmatprep.subr.mxu0 0.0
    %1709 = vmatpush1.msra.mxu0 0.0
    %1710 = vmatprep.subr.mxu0 0.0
    %1711 = vmatpush1.msra.mxu0 0.0
    %1712 = vmatprep.subr.mxu0 0.0
    %1713 = vmatpush1.msra.mxu0 0.0
    %1714 = vmatprep.subr.mxu0 0.0
    %1715 = vmatpush1.msra.mxu0 0.0
    %1716 = vmatprep.subr.mxu0 0.0
    %1717 = vmatpush1.msra.mxu0 0.0
    %1718 = vmatprep.subr.mxu0 0.0
    %1719 = vmatpush1.msra.mxu0 0.0
    %1720 = vmatprep.subr.mxu0 0.0
    %1721 = vmatpush1.msra.mxu0 0.0
    %1722 = vmatprep.subr.mxu0 0.0
    %1723 = vmatpush1.msra.mxu0 0.0
    %1724 = vmatprep.subr.mxu0 0.0
    %1725 = vmatpush1.msra.mxu0 0.0
    %1726 = vmatprep.subr.mxu0 0.0
    %1727 = vmatpush1.msra.mxu0 0.0
    %1728 = vmatprep.subr.mxu0 0.0
    %1729 = vmatpush1.msra.mxu0 0.0
    %1730 = vmatprep.mubr.f32.mxu0 0.0
    %1731 = vmatmul.mubr.f32.gmra.mrb[0].mxu0 %v1664
    %v1732 = vpop.f32.mrb[0].mxu0
    %v1733 = vadd.f32 0.0, %v1732
    %v1734 = vpop.f32.mrb[0].mxu0
    %1735 = vdwg.mxu0
    %1736 = vrot.lane.b32.xlu0 %v202, 40
    %v1737 = vpop.permute.xlu0 %1736
    %v1740 = vsel %vm213, %v1659, 0
    %1742 = vmatprep.subr.mxu0 0.0
    %1743 = vmatpush1.msra.mxu0 %v1737
    %1744 = vmatprep.subr.mxu0 0.0
    %1745 = vmatpush1.msra.mxu0 0.0
    %1746 = vmatprep.subr.mxu0 0.0
    %1747 = vmatpush1.msra.mxu0 0.0
    %1748 = vmatprep.subr.mxu0 0.0
    %1749 = vmatpush1.msra.mxu0 0.0
    %1750 = vmatprep.subr.mxu0 0.0
    %1751 = vmatpush1.msra.mxu0 0.0
    %1752 = vmatprep.subr.mxu0 0.0
    %1753 = vmatpush1.msra.mxu0 0.0
    %1754 = vmatprep.subr.mxu0 0.0
    %1755 = vmatpush1.msra.mxu0 0.0
    %1756 = vmatprep.subr.mxu0 0.0
    %1757 = vmatpush1.msra.mxu0 0.0
    %1758 = vmatprep.subr.mxu0 0.0
    %1759 = vmatpush1.msra.mxu0 0.0
    %1760 = vmatprep.subr.mxu0 0.0
    %1761 = vmatpush1.msra.mxu0 0.0
    %1762 = vmatprep.subr.mxu0 0.0
    %1763 = vmatpush1.msra.mxu0 0.0
    %1764 = vmatprep.subr.mxu0 0.0
    %1765 = vmatpush1.msra.mxu0 0.0
    %1766 = vmatprep.subr.mxu0 0.0
    %1767 = vmatpush1.msra.mxu0 0.0
    %1768 = vmatprep.subr.mxu0 0.0
    %1769 = vmatpush1.msra.mxu0 0.0
    %1770 = vmatprep.subr.mxu0 0.0
    %1771 = vmatpush1.msra.mxu0 0.0
    %1772 = vmatprep.subr.mxu0 0.0
    %1773 = vmatpush1.msra.mxu0 0.0
    %1774 = vmatprep.subr.mxu0 0.0
    %1775 = vmatpush1.msra.mxu0 0.0
    %1776 = vmatprep.subr.mxu0 0.0
    %1777 = vmatpush1.msra.mxu0 0.0
    %1778 = vmatprep.subr.mxu0 0.0
    %1779 = vmatpush1.msra.mxu0 0.0
    %1780 = vmatprep.subr.mxu0 0.0
    %1781 = vmatpush1.msra.mxu0 0.0
    %1782 = vmatprep.subr.mxu0 0.0
    %1783 = vmatpush1.msra.mxu0 0.0
    %1784 = vmatprep.subr.mxu0 0.0
    %1785 = vmatpush1.msra.mxu0 0.0
    %1786 = vmatprep.subr.mxu0 0.0
    %1787 = vmatpush1.msra.mxu0 0.0
    %1788 = vmatprep.subr.mxu0 0.0
    %1789 = vmatpush1.msra.mxu0 0.0
    %1790 = vmatprep.subr.mxu0 0.0
    %1791 = vmatpush1.msra.mxu0 0.0
    %1792 = vmatprep.subr.mxu0 0.0
    %1793 = vmatpush1.msra.mxu0 0.0
    %1794 = vmatprep.subr.mxu0 0.0
    %1795 = vmatpush1.msra.mxu0 0.0
    %1796 = vmatprep.subr.mxu0 0.0
    %1797 = vmatpush1.msra.mxu0 0.0
    %1798 = vmatprep.subr.mxu0 0.0
    %1799 = vmatpush1.msra.mxu0 0.0
    %1800 = vmatprep.subr.mxu0 0.0
    %1801 = vmatpush1.msra.mxu0 0.0
    %1802 = vmatprep.subr.mxu0 0.0
    %1803 = vmatpush1.msra.mxu0 0.0
    %1804 = vmatprep.subr.mxu0 0.0
    %1805 = vmatpush1.msra.mxu0 0.0
    %1806 = vmatprep.mubr.f32.mxu0 0.0
    %1807 = vmatmul.mubr.f32.gmra.mrb[0].mxu0 %v1740
    %v1808 = vpop.f32.mrb[0].mxu0
    %v1809 = vadd.f32 0.0, %v1808
    %v1810 = vpop.f32.mrb[0].mxu0
    %1811 = vdwg.mxu0
    %v1813 = vsel %vm213, %v1733, 0
    %v1816 = vsel %vm213, %v1809, 0
    %1818 = vmatprep.subr.mxu0 0.0
    %1819 = vmatpush1.msra.mxu0 %v208
    %1820 = vmatprep.subr.mxu0 0.0
    %1821 = vmatpush1.msra.mxu0 0.0
    %1822 = vmatprep.subr.mxu0 0.0
    %1823 = vmatpush1.msra.mxu0 0.0
    %1824 = vmatprep.subr.mxu0 0.0
    %1825 = vmatpush1.msra.mxu0 0.0
    %1826 = vmatprep.subr.mxu0 0.0
    %1827 = vmatpush1.msra.mxu0 0.0
    %1828 = vmatprep.subr.mxu0 0.0
    %1829 = vmatpush1.msra.mxu0 0.0
    %1830 = vmatprep.subr.mxu0 0.0
    %1831 = vmatpush1.msra.mxu0 0.0
    %1832 = vmatprep.subr.mxu0 0.0
    %1833 = vmatpush1.msra.mxu0 0.0
    %1834 = vmatprep.subr.mxu0 0.0
    %1835 = vmatpush1.msra.mxu0 0.0
    %1836 = vmatprep.subr.mxu0 0.0
    %1837 = vmatpush1.msra.mxu0 0.0
    %1838 = vmatprep.subr.mxu0 0.0
    %1839 = vmatpush1.msra.mxu0 0.0
    %1840 = vmatprep.subr.mxu0 0.0
    %1841 = vmatpush1.msra.mxu0 0.0
    %1842 = vmatprep.subr.mxu0 0.0
    %1843 = vmatpush1.msra.mxu0 0.0
    %1844 = vmatprep.subr.mxu0 0.0
    %1845 = vmatpush1.msra.mxu0 0.0
    %1846 = vmatprep.subr.mxu0 0.0
    %1847 = vmatpush1.msra.mxu0 0.0
    %1848 = vmatprep.subr.mxu0 0.0
    %1849 = vmatpush1.msra.mxu0 0.0
    %1850 = vmatprep.subr.mxu0 0.0
    %1851 = vmatpush1.msra.mxu0 0.0
    %1852 = vmatprep.subr.mxu0 0.0
    %1853 = vmatpush1.msra.mxu0 0.0
    %1854 = vmatprep.subr.mxu0 0.0
    %1855 = vmatpush1.msra.mxu0 0.0
    %1856 = vmatprep.subr.mxu0 0.0
    %1857 = vmatpush1.msra.mxu0 0.0
    %1858 = vmatprep.subr.mxu0 0.0
    %1859 = vmatpush1.msra.mxu0 0.0
    %1860 = vmatprep.subr.mxu0 0.0
    %1861 = vmatpush1.msra.mxu0 0.0
    %1862 = vmatprep.subr.mxu0 0.0
    %1863 = vmatpush1.msra.mxu0 0.0
    %1864 = vmatprep.subr.mxu0 0.0
    %1865 = vmatpush1.msra.mxu0 0.0
    %1866 = vmatprep.subr.mxu0 0.0
    %1867 = vmatpush1.msra.mxu0 0.0
    %1868 = vmatprep.subr.mxu0 0.0
    %1869 = vmatpush1.msra.mxu0 0.0
    %1870 = vmatprep.subr.mxu0 0.0
    %1871 = vmatpush1.msra.mxu0 0.0
    %1872 = vmatprep.subr.mxu0 0.0
    %1873 = vmatpush1.msra.mxu0 0.0
    %1874 = vmatprep.subr.mxu0 0.0
    %1875 = vmatpush1.msra.mxu0 0.0
    %1876 = vmatprep.subr.mxu0 0.0
    %1877 = vmatpush1.msra.mxu0 0.0
    %1878 = vmatprep.subr.mxu0 0.0
    %1879 = vmatpush1.msra.mxu0 0.0
    %1880 = vmatprep.subr.mxu0 0.0
    %1881 = vmatpush1.msra.mxu0 0.0
    %1882 = vmatprep.mubr.f32.mxu0 0.0
    %1883 = vmatmul.mubr.f32.gmra.mrb[0].mxu0 %v1813
    %v1884 = vpop.f32.mrb[0].mxu0
    %v1885 = vadd.f32 0.0, %v1884
    %v1886 = vpop.f32.mrb[0].mxu0
    %1887 = vmatprep.mubr.f32.mxu0 0.0
    %1888 = vmatmul.mubr.f32.gmra.mrb[0].mxu0 %v1816
    %v1889 = vpop.f32.mrb[0].mxu0
    %v1890 = vadd.f32 0.0, %v1889
    %v1891 = vpop.f32.mrb[0].mxu0
    %1892 = vdwg.mxu0
    %v1893 = vadd.f32 %v1476, %v1885
    %v1894 = vadd.f32 %v1477, %v1890
    %v1895 = vadd.f32 %v1893, %v111
    %v1896 = vadd.f32 %v1894, %v112
    %v1897 = vld [vmem:[%s8] sm:$0x1]
    %v1898 = vld [vmem:[%s9] sm:$0x1]
    %v1899 = vsel %vm69, %v1895, 0.0
    %1900 = vadd.xlane.f32.xlu0 %v1899
    %v1901 = vpop.xlane.xlu0 %1900
    %v1902 = vsel %vm69, %v1896, 0.0
    %1903 = vadd.xlane.f32.xlu0 %v1902
    %v1904 = vpop.xlane.xlu0 %1903
    %v1905 = vmul.f32 %v1901, %v76
    %v1906 = vmul.f32 %v1904, %v76
    %v1907 = vsub.f32 %v1895, %v1905
    %v1908 = vsub.f32 %v1896, %v1906
    %v1909 = vmul.f32 %v1907, %v1907
    %v1910 = vmul.f32 %v1908, %v1908
    %v1911 = vsel %vm69, %v1909, 0.0
    %1912 = vadd.xlane.f32.xlu0 %v1911
    %v1913 = vpop.xlane.xlu0 %1912
    %v1914 = vsel %vm69, %v1910, 0.0
    %1915 = vadd.xlane.f32.xlu0 %v1914
    %v1916 = vpop.xlane.xlu0 %1915
    %v1917 = vmul.f32 %v1913, %v76
    %v1918 = vmul.f32 %v1916, %v76
    %v1919 = vadd.f32 %v1917, 1e-05
    %v1920 = vadd.f32 %v1918, 1e-05
    %v1921 = vrsqrt.pop %v1919
    %v1922 = vrsqrt.pop %v1920
    %v1923 = vmul.f32 %v1907, %v1921
    %v1924 = vmul.f32 %v1908, %v1922
    %v1926 = vlaneseq
    %v1927 = vshrl.u32 %v1926, 7
    %v1928 = vsub.s32 0, %v1927
    %v1929 = vrot.slane %v1897, %v1928
    %v1931 = vmul.f32 %v1923, %v1929
    %v1932 = vmul.f32 %v1924, %v1929
    %v1934 = vlaneseq
    %v1935 = vshrl.u32 %v1934, 7
    %v1936 = vsub.s32 0, %v1935
    %v1937 = vrot.slane %v1898, %v1936
    %v1939 = vadd.f32 %v1931, %v1937
    %v1940 = vadd.f32 %v1932, %v1937
    %v1941 = vld [vmem:[%s10] sm:$0xff]
    %v1942 = vld [vmem:[%s10 + $0x8] sm:$0xff]
    %v1943 = vld [vmem:[%s10 + $0x10] sm:$0xff]
    %v1944 = vld [vmem:[%s10 + $0x18] sm:$0xff]
    %v1945 = vld [vmem:[%s11] sm:$0x1]
    %v1947 = vlaneseq
    %v1948 = vshrl.u32 %v1947, 7
    %v1949 = vsub.s32 0, %v1948
    %v1950 = vrot.slane %v1945, %v1949
    %v1953 = vsel %vm69, %v1939, 0
    %v1956 = vsel %vm69, %v1940, 0
    %1958 = vmatprep.subr.mxu0 0.0
    %1959 = vmatpush1.msra.mxu0 %v1941
    %1960 = vmatprep.subr.mxu0 0.0
    %1961 = vmatpush1.msra.mxu0 %v1942
    %1962 = vmatprep.subr.mxu0 0.0
    %1963 = vmatpush1.msra.mxu0 %v1943
    %1964 = vmatprep.subr.mxu0 0.0
    %1965 = vmatpush1.msra.mxu0 %v1944
    %1966 = vmatprep.subr.mxu0 0.0
    %1967 = vmatpush1.msra.mxu0 0.0
    %1968 = vmatprep.subr.mxu0 0.0
    %1969 = vmatpush1.msra.mxu0 0.0
    %1970 = vmatprep.subr.mxu0 0.0
    %1971 = vmatpush1.msra.mxu0 0.0
    %1972 = vmatprep.subr.mxu0 0.0
    %1973 = vmatpush1.msra.mxu0 0.0
    %1974 = vmatprep.subr.mxu0 0.0
    %1975 = vmatpush1.msra.mxu0 0.0
    %1976 = vmatprep.subr.mxu0 0.0
    %1977 = vmatpush1.msra.mxu0 0.0
    %1978 = vmatprep.subr.mxu0 0.0
    %1979 = vmatpush1.msra.mxu0 0.0
    %1980 = vmatprep.subr.mxu0 0.0
    %1981 = vmatpush1.msra.mxu0 0.0
    %1982 = vmatprep.subr.mxu0 0.0
    %1983 = vmatpush1.msra.mxu0 0.0
    %1984 = vmatprep.subr.mxu0 0.0
    %1985 = vmatpush1.msra.mxu0 0.0
    %1986 = vmatprep.subr.mxu0 0.0
    %1987 = vmatpush1.msra.mxu0 0.0
    %1988 = vmatprep.subr.mxu0 0.0
    %1989 = vmatpush1.msra.mxu0 0.0
    %1990 = vmatprep.subr.mxu0 0.0
    %1991 = vmatpush1.msra.mxu0 0.0
    %1992 = vmatprep.subr.mxu0 0.0
    %1993 = vmatpush1.msra.mxu0 0.0
    %1994 = vmatprep.subr.mxu0 0.0
    %1995 = vmatpush1.msra.mxu0 0.0
    %1996 = vmatprep.subr.mxu0 0.0
    %1997 = vmatpush1.msra.mxu0 0.0
    %1998 = vmatprep.subr.mxu0 0.0
    %1999 = vmatpush1.msra.mxu0 0.0
    %2000 = vmatprep.subr.mxu0 0.0
    %2001 = vmatpush1.msra.mxu0 0.0
    %2002 = vmatprep.subr.mxu0 0.0
    %2003 = vmatpush1.msra.mxu0 0.0
    %2004 = vmatprep.subr.mxu0 0.0
    %2005 = vmatpush1.msra.mxu0 0.0
    %2006 = vmatprep.subr.mxu0 0.0
    %2007 = vmatpush1.msra.mxu0 0.0
    %2008 = vmatprep.subr.mxu0 0.0
    %2009 = vmatpush1.msra.mxu0 0.0
    %2010 = vmatprep.subr.mxu0 0.0
    %2011 = vmatpush1.msra.mxu0 0.0
    %2012 = vmatprep.subr.mxu0 0.0
    %2013 = vmatpush1.msra.mxu0 0.0
    %2014 = vmatprep.subr.mxu0 0.0
    %2015 = vmatpush1.msra.mxu0 0.0
    %2016 = vmatprep.subr.mxu0 0.0
    %2017 = vmatpush1.msra.mxu0 0.0
    %2018 = vmatprep.subr.mxu0 0.0
    %2019 = vmatpush1.msra.mxu0 0.0
    %2020 = vmatprep.subr.mxu0 0.0
    %2021 = vmatpush1.msra.mxu0 0.0
    %2022 = vmatprep.mubr.f32.mxu0 0.0
    %2023 = vmatmul.mubr.f32.gmra.mrb[0].mxu0 %v1953
    %v2024 = vpop.f32.mrb[0].mxu0
    %v2025 = vadd.f32 %v1950, %v2024
    %v2026 = vpop.f32.mrb[0].mxu0
    %2027 = vmatprep.mubr.f32.mxu0 0.0
    %2028 = vmatmul.mubr.f32.gmra.mrb[0].mxu0 %v1956
    %v2029 = vpop.f32.mrb[0].mxu0
    %v2030 = vadd.f32 %v1950, %v2029
    %v2031 = vpop.f32.mrb[0].mxu0
    %2032 = vdwg.mxu0
    %v2033 = vmul.f32 %v2025, 0.5
    %v2034 = vmul.f32 %v2030, 0.5
    %v2035 = vmul.f32 %v2025, 0.044715
    %v2036 = vmul.f32 %v2030, 0.044715
    %v2037 = vmul.f32 %v2035, %v2025
    %v2038 = vmul.f32 %v2036, %v2030
    %v2039 = vmul.f32 %v2037, %v2025
    %v2040 = vmul.f32 %v2038, %v2030
    %v2041 = vadd.f32 %v2025, %v2039
    %v2042 = vadd.f32 %v2030, %v2040
    %v2043 = vmul.f32 %v2041, 0.7978846
    %v2044 = vmul.f32 %v2042, 0.7978846
    %v2045 = vtanh.pop %v2043
    %v2046 = vtanh.pop %v2044
    %v2047 = vadd.f32 %v2045, 1.0
    %v2048 = vadd.f32 %v2046, 1.0
    %v2049 = vmul.f32 %v2033, %v2047
    %v2050 = vmul.f32 %v2034, %v2048
    %v2051 = vld [vmem:[%s12] sm:$0xff]
    %v2052 = vld [vmem:[%s12 + $0x8] sm:$0xff]
    %v2053 = vld [vmem:[%s12 + $0x10] sm:$0xff]
    %v2054 = vld [vmem:[%s12 + $0x18] sm:$0xff]
    %v2055 = vld [vmem:[%s12 + $0x20] sm:$0xff]
    %v2056 = vld [vmem:[%s12 + $0x28] sm:$0xff]
    %v2057 = vld [vmem:[%s12 + $0x30] sm:$0xff]
    %v2058 = vld [vmem:[%s12 + $0x38] sm:$0xff]
    %v2059 = vld [vmem:[%s13] sm:$0x1]
    %v2061 = vlaneseq
    %v2062 = vshrl.u32 %v2061, 7
    %v2063 = vsub.s32 0, %v2062
    %v2064 = vrot.slane %v2059, %v2063
    %vm2066 = vcmask 523264
    %v2068 = vsel %vm2066, %v2049, 0
    %v2071 = vsel %vm2066, %v2050, 0
    %2073 = vmatprep.subr.mxu0 0.0
    %2074 = vmatpush1.msra.mxu0 %v2051
    %2075 = vmatprep.subr.mxu0 0.0
    %2076 = vmatpush1.msra.mxu0 %v2052
    %2077 = vmatprep.subr.mxu0 0.0
    %2078 = vmatpush1.msra.mxu0 %v2053
    %2079 = vmatprep.subr.mxu0 0.0
    %2080 = vmatpush1.msra.mxu0 %v2054
    %2081 = vmatprep.subr.mxu0 0.0
    %2082 = vmatpush1.msra.mxu0 %v2055
    %2083 = vmatprep.subr.mxu0 0.0
    %2084 = vmatpush1.msra.mxu0 %v2056
    %2085 = vmatprep.subr.mxu0 0.0
    %2086 = vmatpush1.msra.mxu0 %v2057
    %2087 = vmatprep.subr.mxu0 0.0
    %2088 = vmatpush1.msra.mxu0 %v2058
    %2089 = vmatprep.subr.mxu0 0.0
    %2090 = vmatpush1.msra.mxu0 0.0
    %2091 = vmatprep.subr.mxu0 0.0
    %2092 = vmatpush1.msra.mxu0 0.0
    %2093 = vmatprep.subr.mxu0 0.0
    %2094 = vmatpush1.msra.mxu0 0.0
    %2095 = vmatprep.subr.mxu0 0.0
    %2096 = vmatpush1.msra.mxu0 0.0
    %2097 = vmatprep.subr.mxu0 0.0
    %2098 = vmatpush1.msra.mxu0 0.0
    %2099 = vmatprep.subr.mxu0 0.0
    %2100 = vmatpush1.msra.mxu0 0.0
    %2101 = vmatprep.subr.mxu0 0.0
    %2102 = vmatpush1.msra.mxu0 0.0
    %2103 = vmatprep.subr.mxu0 0.0
    %2104 = vmatpush1.msra.mxu0 0.0
    %2105 = vmatprep.subr.mxu0 0.0
    %2106 = vmatpush1.msra.mxu0 0.0
    %2107 = vmatprep.subr.mxu0 0.0
    %2108 = vmatpush1.msra.mxu0 0.0
    %2109 = vmatprep.subr.mxu0 0.0
    %2110 = vmatpush1.msra.mxu0 0.0
    %2111 = vmatprep.subr.mxu0 0.0
    %2112 = vmatpush1.msra.mxu0 0.0
    %2113 = vmatprep.subr.mxu0 0.0
    %2114 = vmatpush1.msra.mxu0 0.0
    %2115 = vmatprep.subr.mxu0 0.0
    %2116 = vmatpush1.msra.mxu0 0.0
    %2117 = vmatprep.subr.mxu0 0.0
    %2118 = vmatpush1.msra.mxu0 0.0
    %2119 = vmatprep.subr.mxu0 0.0
    %2120 = vmatpush1.msra.mxu0 0.0
    %2121 = vmatprep.subr.mxu0 0.0
    %2122 = vmatpush1.msra.mxu0 0.0
    %2123 = vmatprep.subr.mxu0 0.0
    %2124 = vmatpush1.msra.mxu0 0.0
    %2125 = vmatprep.subr.mxu0 0.0
    %2126 = vmatpush1.msra.mxu0 0.0
    %2127 = vmatprep.subr.mxu0 0.0
    %2128 = vmatpush1.msra.mxu0 0.0
    %2129 = vmatprep.subr.mxu0 0.0
    %2130 = vmatpush1.msra.mxu0 0.0
    %2131 = vmatprep.subr.mxu0 0.0
    %2132 = vmatpush1.msra.mxu0 0.0
    %2133 = vmatprep.subr.mxu0 0.0
    %2134 = vmatpush1.msra.mxu0 0.0
    %2135 = vmatprep.subr.mxu0 0.0
    %2136 = vmatpush1.msra.mxu0 0.0
    %2137 = vmatprep.mubr.f32.mxu0 0.0
    %2138 = vmatmul.mubr.f32.gmra.mrb[0].mxu0 %v2068
    %v2139 = vpop.f32.mrb[0].mxu0
    %v2140 = vadd.f32 %v2064, %v2139
    %v2141 = vpop.f32.mrb[0].mxu0
    %2142 = vmatprep.mubr.f32.mxu0 0.0
    %2143 = vmatmul.mubr.f32.gmra.mrb[0].mxu0 %v2071
    %v2144 = vpop.f32.mrb[0].mxu0
    %v2145 = vadd.f32 %v2064, %v2144
    %v2146 = vpop.f32.mrb[0].mxu0
    %2147 = vdwg.mxu0
    %v2148 = vadd.f32 %v2140, %v1939
    %v2149 = vadd.f32 %v2145, %v1940
    %v2150 = vld [vmem:[%s14] sm:$0x1]
    %v2151 = vld [vmem:[%s15] sm:$0x1]
    %v2152 = vsel %vm69, %v2148, 0.0
    %2153 = vadd.xlane.f32.xlu0 %v2152
    %v2154 = vpop.xlane.xlu0 %2153
    %v2155 = vsel %vm69, %v2149, 0.0
    %2156 = vadd.xlane.f32.xlu0 %v2155
    %v2157 = vpop.xlane.xlu0 %2156
    %v2158 = vmul.f32 %v2154, %v76
    %v2159 = vmul.f32 %v2157, %v76
    %v2160 = vsub.f32 %v2148, %v2158
    %v2161 = vsub.f32 %v2149, %v2159
    %v2162 = vmul.f32 %v2160, %v2160
    %v2163 = vmul.f32 %v2161, %v2161
    %v2164 = vsel %vm69, %v2162, 0.0
    %2165 = vadd.xlane.f32.xlu0 %v2164
    %v2166 = vpop.xlane.xlu0 %2165
    %v2167 = vsel %vm69, %v2163, 0.0
    %2168 = vadd.xlane.f32.xlu0 %v2167
    %v2169 = vpop.xlane.xlu0 %2168
    %v2170 = vmul.f32 %v2166, %v76
    %v2171 = vmul.f32 %v2169, %v76
    %v2172 = vadd.f32 %v2170, 1e-05
    %v2173 = vadd.f32 %v2171, 1e-05
    %v2174 = vrsqrt.pop %v2172
    %v2175 = vrsqrt.pop %v2173
    %v2176 = vmul.f32 %v2160, %v2174
    %v2177 = vmul.f32 %v2161, %v2175
    %v2179 = vlaneseq
    %v2180 = vshrl.u32 %v2179, 7
    %v2181 = vsub.s32 0, %v2180
    %v2182 = vrot.slane %v2150, %v2181
    %v2184 = vmul.f32 %v2176, %v2182
    %v2185 = vmul.f32 %v2177, %v2182
    %v2187 = vlaneseq
    %v2188 = vshrl.u32 %v2187, 7
    %v2189 = vsub.s32 0, %v2188
    %v2190 = vrot.slane %v2151, %v2189
    %v2192 = vadd.f32 %v2184, %v2190
    %v2193 = vadd.f32 %v2185, %v2190
    %s2194 = scalar_lea.vmem %s4, 32
    %v2195 = vld [vmem:[%s2194] sm:$0xff]
    %v2196 = vld [vmem:[%s2194 + $0x8] sm:$0xff]
    %v2197 = vld [vmem:[%s2194 + $0x10] sm:$0xff]
    %v2198 = vld [vmem:[%s2194 + $0x18] sm:$0xff]
    %s2199 = scalar_lea.vmem %s5, 1
    %v2200 = vld [vmem:[%s2199] sm:$0x1]
    %v2202 = vlaneseq
    %v2203 = vshrl.u32 %v2202, 7
    %v2204 = vsub.s32 0, %v2203
    %v2205 = vrot.slane %v2200, %v2204
    %v2208 = vsel %vm69, %v2192, 0
    %v2211 = vsel %vm69, %v2193, 0
    %2213 = vmatprep.subr.mxu0 0.0
    %2214 = vmatpush1.msra.mxu0 %v2195
    %2215 = vmatprep.subr.mxu0 0.0
    %2216 = vmatpush1.msra.mxu0 %v2196
    %2217 = vmatprep.subr.mxu0 0.0
    %2218 = vmatpush1.msra.mxu0 %v2197
    %2219 = vmatprep.subr.mxu0 0.0
    %2220 = vmatpush1.msra.mxu0 %v2198
    %2221 = vmatprep.subr.mxu0 0.0
    %2222 = vmatpush1.msra.mxu0 0.0
    %2223 = vmatprep.subr.mxu0 0.0
    %2224 = vmatpush1.msra.mxu0 0.0
    %2225 = vmatprep.subr.mxu0 0.0
    %2226 = vmatpush1.msra.mxu0 0.0
    %2227 = vmatprep.subr.mxu0 0.0
    %2228 = vmatpush1.msra.mxu0 0.0
    %2229 = vmatprep.subr.mxu0 0.0
    %2230 = vmatpush1.msra.mxu0 0.0
    %2231 = vmatprep.subr.mxu0 0.0
    %2232 = vmatpush1.msra.mxu0 0.0
    %2233 = vmatprep.subr.mxu0 0.0
    %2234 = vmatpush1.msra.mxu0 0.0
    %2235 = vmatprep.subr.mxu0 0.0
    %2236 = vmatpush1.msra.mxu0 0.0
    %2237 = vmatprep.subr.mxu0 0.0
    %2238 = vmatpush1.msra.mxu0 0.0
    %2239 = vmatprep.subr.mxu0 0.0
    %2240 = vmatpush1.msra.mxu0 0.0
    %2241 = vmatprep.subr.mxu0 0.0
    %2242 = vmatpush1.msra.mxu0 0.0
    %2243 = vmatprep.subr.mxu0 0.0
    %2244 = vmatpush1.msra.mxu0 0.0
    %2245 = vmatprep.subr.mxu0 0.0
    %2246 = vmatpush1.msra.mxu0 0.0
    %2247 = vmatprep.subr.mxu0 0.0
    %2248 = vmatpush1.msra.mxu0 0.0
    %2249 = vmatprep.subr.mxu0 0.0
    %2250 = vmatpush1.msra.mxu0 0.0
    %2251 = vmatprep.subr.mxu0 0.0
    %2252 = vmatpush1.msra.mxu0 0.0
    %2253 = vmatprep.subr.mxu0 0.0
    %2254 = vmatpush1.msra.mxu0 0.0
    %2255 = vmatprep.subr.mxu0 0.0
    %2256 = vmatpush1.msra.mxu0 0.0
    %2257 = vmatprep.subr.mxu0 0.0
    %2258 = vmatpush1.msra.mxu0 0.0
    %2259 = vmatprep.subr.mxu0 0.0
    %2260 = vmatpush1.msra.mxu0 0.0
    %2261 = vmatprep.subr.mxu0 0.0
    %2262 = vmatpush1.msra.mxu0 0.0
    %2263 = vmatprep.subr.mxu0 0.0
    %2264 = vmatpush1.msra.mxu0 0.0
    %2265 = vmatprep.subr.mxu0 0.0
    %2266 = vmatpush1.msra.mxu0 0.0
    %2267 = vmatprep.subr.mxu0 0.0
    %2268 = vmatpush1.msra.mxu0 0.0
    %2269 = vmatprep.subr.mxu0 0.0
    %2270 = vmatpush1.msra.mxu0 0.0
    %2271 = vmatprep.subr.mxu0 0.0
    %2272 = vmatpush1.msra.mxu0 0.0
    %2273 = vmatprep.subr.mxu0 0.0
    %2274 = vmatpush1.msra.mxu0 0.0
    %2275 = vmatprep.subr.mxu0 0.0
    %2276 = vmatpush1.msra.mxu0 0.0
    %2277 = vmatprep.mubr.f32.mxu0 0.0
    %2278 = vmatmul.mubr.f32.gmra.mrb[0].mxu0 %v2208
    %v2279 = vpop.f32.mrb[0].mxu0
    %v2280 = vadd.f32 %v2205, %v2279
    %v2281 = vpop.f32.mrb[0].mxu0
    %2282 = vmatprep.mubr.f32.mxu0 0.0
    %2283 = vmatmul.mubr.f32.gmra.mrb[0].mxu0 %v2211
    %v2284 = vpop.f32.mrb[0].mxu0
    %v2285 = vadd.f32 %v2205, %v2284
    %v2286 = vpop.f32.mrb[0].mxu0
    %2287 = vdwg.mxu0
    %s2288 = scalar_lea.vmem %s6, 32
    %v2289 = vld [vmem:[%s2288] sm:$0xff]
    %v2290 = vld [vmem:[%s2288 + $0x8] sm:$0xff]
    %v2291 = vld [vmem:[%s2288 + $0x10] sm:$0xff]
    %v2292 = vld [vmem:[%s2288 + $0x18] sm:$0xff]
    %s2293 = scalar_lea.vmem %s7, 1
    %v2294 = vld [vmem:[%s2293] sm:$0x1]
    %2296 = vrot.lane.b32.xlu0 %v2280, 96
    %v2297 = vpop.permute.xlu0 %2296
    %v2298 = vsel %vm213, %v2280, 0
    %v2300 = vsel %vm213, %v2297, 0
    %2302 = vmatprep.subr.mxu0 0.0
    %2303 = vmatpush1.xpose.msra.mxu0 %v2300
    %2304 = vmatprep.subr.mxu0 0.0
    %2305 = vmatpush1.xpose.msra.mxu0 0.0
    %2306 = vmatprep.subr.mxu0 0.0
    %2307 = vmatpush1.xpose.msra.mxu0 0.0
    %2308 = vmatprep.subr.mxu0 0.0
    %2309 = vmatpush1.xpose.msra.mxu0 0.0
    %2310 = vmatprep.subr.mxu0 0.0
    %2311 = vmatpush1.xpose.msra.mxu0 0.0
    %2312 = vmatprep.subr.mxu0 0.0
    %2313 = vmatpush1.xpose.msra.mxu0 0.0
    %2314 = vmatprep.subr.mxu0 0.0
    %2315 = vmatpush1.xpose.msra.mxu0 0.0
    %2316 = vmatprep.subr.mxu0 0.0
    %2317 = vmatpush1.xpose.msra.mxu0 0.0
    %2318 = vmatprep.subr.mxu0 0.0
    %2319 = vmatpush1.xpose.msra.mxu0 0.0
    %2320 = vmatprep.subr.mxu0 0.0
    %2321 = vmatpush1.xpose.msra.mxu0 0.0
    %2322 = vmatprep.subr.mxu0 0.0
    %2323 = vmatpush1.xpose.msra.mxu0 0.0
    %2324 = vmatprep.subr.mxu0 0.0
    %2325 = vmatpush1.xpose.msra.mxu0 0.0
    %2326 = vmatprep.subr.mxu0 0.0
    %2327 = vmatpush1.xpose.msra.mxu0 0.0
    %2328 = vmatprep.subr.mxu0 0.0
    %2329 = vmatpush1.xpose.msra.mxu0 0.0
    %2330 = vmatprep.subr.mxu0 0.0
    %2331 = vmatpush1.xpose.msra.mxu0 0.0
    %2332 = vmatprep.subr.mxu0 0.0
    %2333 = vmatpush1.xpose.msra.mxu0 0.0
    %2334 = vmatprep.subr.mxu0 0.0
    %2335 = vmatpush1.xpose.msra.mxu0 0.0
    %2336 = vmatprep.subr.mxu0 0.0
    %2337 = vmatpush1.xpose.msra.mxu0 0.0
    %2338 = vmatprep.subr.mxu0 0.0
    %2339 = vmatpush1.xpose.msra.mxu0 0.0
    %2340 = vmatprep.subr.mxu0 0.0
    %2341 = vmatpush1.xpose.msra.mxu0 0.0
    %2342 = vmatprep.subr.mxu0 0.0
    %2343 = vmatpush1.xpose.msra.mxu0 0.0
    %2344 = vmatprep.subr.mxu0 0.0
    %2345 = vmatpush1.xpose.msra.mxu0 0.0
    %2346 = vmatprep.subr.mxu0 0.0
    %2347 = vmatpush1.xpose.msra.mxu0 0.0
    %2348 = vmatprep.subr.mxu0 0.0
    %2349 = vmatpush1.xpose.msra.mxu0 0.0
    %2350 = vmatprep.subr.mxu0 0.0
    %2351 = vmatpush1.xpose.msra.mxu0 0.0
    %2352 = vmatprep.subr.mxu0 0.0
    %2353 = vmatpush1.xpose.msra.mxu0 0.0
    %2354 = vmatprep.subr.mxu0 0.0
    %2355 = vmatpush1.xpose.msra.mxu0 0.0
    %2356 = vmatprep.subr.mxu0 0.0
    %2357 = vmatpush1.xpose.msra.mxu0 0.0
    %2358 = vmatprep.subr.mxu0 0.0
    %2359 = vmatpush1.xpose.msra.mxu0 0.0
    %2360 = vmatprep.subr.mxu0 0.0
    %2361 = vmatpush1.xpose.msra.mxu0 0.0
    %2362 = vmatprep.subr.mxu0 0.0
    %2363 = vmatpush1.xpose.msra.mxu0 0.0
    %2364 = vmatprep.subr.mxu0 0.0
    %2365 = vmatpush1.xpose.msra.mxu0 0.0
    %2366 = vmatprep.mubr.f32.mxu0 0.0
    %2367 = vmatmul.mubr.f32.gmra.mrb[0].mxu0 %v2298
    %v2368 = vpop.f32.mrb[0].mxu0
    %v2369 = vadd.f32 0.0, %v2368
    %v2370 = vpop.f32.mrb[0].mxu0
    %2371 = vdwg.mxu0
    %2373 = vrot.lane.b32.xlu0 %v2285, 96
    %v2374 = vpop.permute.xlu0 %2373
    %v2375 = vsel %vm213, %v2285, 0
    %v2377 = vsel %vm213, %v2374, 0
    %2379 = vmatprep.subr.mxu0 0.0
    %2380 = vmatpush1.xpose.msra.mxu0 %v2377
    %2381 = vmatprep.subr.mxu0 0.0
    %2382 = vmatpush1.xpose.msra.mxu0 0.0
    %2383 = vmatprep.subr.mxu0 0.0
    %2384 = vmatpush1.xpose.msra.mxu0 0.0
    %2385 = vmatprep.subr.mxu0 0.0
    %2386 = vmatpush1.xpose.msra.mxu0 0.0
    %2387 = vmatprep.subr.mxu0 0.0
    %2388 = vmatpush1.xpose.msra.mxu0 0.0
    %2389 = vmatprep.subr.mxu0 0.0
    %2390 = vmatpush1.xpose.msra.mxu0 0.0
    %2391 = vmatprep.subr.mxu0 0.0
    %2392 = vmatpush1.xpose.msra.mxu0 0.0
    %2393 = vmatprep.subr.mxu0 0.0
    %2394 = vmatpush1.xpose.msra.mxu0 0.0
    %2395 = vmatprep.subr.mxu0 0.0
    %2396 = vmatpush1.xpose.msra.mxu0 0.0
    %2397 = vmatprep.subr.mxu0 0.0
    %2398 = vmatpush1.xpose.msra.mxu0 0.0
    %2399 = vmatprep.subr.mxu0 0.0
    %2400 = vmatpush1.xpose.msra.mxu0 0.0
    %2401 = vmatprep.subr.mxu0 0.0
    %2402 = vmatpush1.xpose.msra.mxu0 0.0
    %2403 = vmatprep.subr.mxu0 0.0
    %2404 = vmatpush1.xpose.msra.mxu0 0.0
    %2405 = vmatprep.subr.mxu0 0.0
    %2406 = vmatpush1.xpose.msra.mxu0 0.0
    %2407 = vmatprep.subr.mxu0 0.0
    %2408 = vmatpush1.xpose.msra.mxu0 0.0
    %2409 = vmatprep.subr.mxu0 0.0
    %2410 = vmatpush1.xpose.msra.mxu0 0.0
    %2411 = vmatprep.subr.mxu0 0.0
    %2412 = vmatpush1.xpose.msra.mxu0 0.0
    %2413 = vmatprep.subr.mxu0 0.0
    %2414 = vmatpush1.xpose.msra.mxu0 0.0
    %2415 = vmatprep.subr.mxu0 0.0
    %2416 = vmatpush1.xpose.msra.mxu0 0.0
    %2417 = vmatprep.subr.mxu0 0.0
    %2418 = vmatpush1.xpose.msra.mxu0 0.0
    %2419 = vmatprep.subr.mxu0 0.0
    %2420 = vmatpush1.xpose.msra.mxu0 0.0
    %2421 = vmatprep.subr.mxu0 0.0
    %2422 = vmatpush1.xpose.msra.mxu0 0.0
    %2423 = vmatprep.subr.mxu0 0.0
    %2424 = vmatpush1.xpose.msra.mxu0 0.0
    %2425 = vmatprep.subr.mxu0 0.0
    %2426 = vmatpush1.xpose.msra.mxu0 0.0
    %2427 = vmatprep.subr.mxu0 0.0
    %2428 = vmatpush1.xpose.msra.mxu0 0.0
    %2429 = vmatprep.subr.mxu0 0.0
    %2430 = vmatpush1.xpose.msra.mxu0 0.0
    %2431 = vmatprep.subr.mxu0 0.0
    %2432 = vmatpush1.xpose.msra.mxu0 0.0
    %2433 = vmatprep.subr.mxu0 0.0
    %2434 = vmatpush1.xpose.msra.mxu0 0.0
    %2435 = vmatprep.subr.mxu0 0.0
    %2436 = vmatpush1.xpose.msra.mxu0 0.0
    %2437 = vmatprep.subr.mxu0 0.0
    %2438 = vmatpush1.xpose.msra.mxu0 0.0
    %2439 = vmatprep.subr.mxu0 0.0
    %2440 = vmatpush1.xpose.msra.mxu0 0.0
    %2441 = vmatprep.subr.mxu0 0.0
    %2442 = vmatpush1.xpose.msra.mxu0 0.0
    %2443 = vmatprep.mubr.f32.mxu0 0.0
    %2444 = vmatmul.mubr.f32.gmra.mrb[0].mxu0 %v2375
    %v2445 = vpop.f32.mrb[0].mxu0
    %v2446 = vadd.f32 0.0, %v2445
    %v2447 = vpop.f32.mrb[0].mxu0
    %2448 = vdwg.mxu0
    %v2449 = vmul.f32 %v2369, 0.35355338
    %v2450 = vmul.f32 %v2446, 0.35355338
    %v2451 = vadd.f32 %v2449, %v372
    %v2452 = vadd.f32 %v2450, %v376
    %v2453 = vsel %vm213, %v2451, -inf
    %2454 = vmax.xlane.f32.xlu0 %v2453
    %v2455 = vpop.xlane.xlu0 %2454
    %v2456 = vsel %vm213, %v2452, -inf
    %2457 = vmax.xlane.f32.xlu0 %v2456
    %v2458 = vpop.xlane.xlu0 %2457
    %v2459 = vsub.f32 %v2451, %v2455
    %v2460 = vsub.f32 %v2452, %v2458
    %v2461 = vmul.f32 %v2459, 1.442695
    %v2462 = vpow.pop %v2461
    %v2463 = vmul.f32 %v2460, 1.442695
    %v2464 = vpow.pop %v2463
    %v2465 = vsel %vm213, %v2462, 0.0
    %2466 = vadd.xlane.f32.xlu0 %v2465
    %v2467 = vpop.xlane.xlu0 %2466
    %v2468 = vsel %vm213, %v2464, 0.0
    %2469 = vadd.xlane.f32.xlu0 %v2468
    %v2470 = vpop.xlane.xlu0 %2469
    %v2471 = vrcp.pop %v2467
    %v2472 = vrcp.pop %v2470
    %v2473 = vmul.f32 %v2462, %v2471
    %v2474 = vmul.f32 %v2464, %v2472
    %2475 = vrot.lane.b32.xlu0 %v2280, 64
    %v2476 = vpop.permute.xlu0 %2475
    %v2479 = vsel %vm213, %v2473, 0
    %2481 = vmatprep.subr.mxu0 0.0
    %2482 = vmatpush1.msra.mxu0 %v2476
    %2483 = vmatprep.subr.mxu0 0.0
    %2484 = vmatpush1.msra.mxu0 0.0
    %2485 = vmatprep.subr.mxu0 0.0
    %2486 = vmatpush1.msra.mxu0 0.0
    %2487 = vmatprep.subr.mxu0 0.0
    %2488 = vmatpush1.msra.mxu0 0.0
    %2489 = vmatprep.subr.mxu0 0.0
    %2490 = vmatpush1.msra.mxu0 0.0
    %2491 = vmatprep.subr.mxu0 0.0
    %2492 = vmatpush1.msra.mxu0 0.0
    %2493 = vmatprep.subr.mxu0 0.0
    %2494 = vmatpush1.msra.mxu0 0.0
    %2495 = vmatprep.subr.mxu0 0.0
    %2496 = vmatpush1.msra.mxu0 0.0
    %2497 = vmatprep.subr.mxu0 0.0
    %2498 = vmatpush1.msra.mxu0 0.0
    %2499 = vmatprep.subr.mxu0 0.0
    %2500 = vmatpush1.msra.mxu0 0.0
    %2501 = vmatprep.subr.mxu0 0.0
    %2502 = vmatpush1.msra.mxu0 0.0
    %2503 = vmatprep.subr.mxu0 0.0
    %2504 = vmatpush1.msra.mxu0 0.0
    %2505 = vmatprep.subr.mxu0 0.0
    %2506 = vmatpush1.msra.mxu0 0.0
    %2507 = vmatprep.subr.mxu0 0.0
    %2508 = vmatpush1.msra.mxu0 0.0
    %2509 = vmatprep.subr.mxu0 0.0
    %2510 = vmatpush1.msra.mxu0 0.0
    %2511 = vmatprep.subr.mxu0 0.0
    %2512 = vmatpush1.msra.mxu0 0.0
    %2513 = vmatprep.subr.mxu0 0.0
    %2514 = vmatpush1.msra.mxu0 0.0
    %2515 = vmatprep.subr.mxu0 0.0
    %2516 = vmatpush1.msra.mxu0 0.0
    %2517 = vmatprep.subr.mxu0 0.0
    %2518 = vmatpush1.msra.mxu0 0.0
    %2519 = vmatprep.subr.mxu0 0.0
    %2520 = vmatpush1.msra.mxu0 0.0
    %2521 = vmatprep.subr.mxu0 0.0
    %2522 = vmatpush1.msra.mxu0 0.0
    %2523 = vmatprep.subr.mxu0 0.0
    %2524 = vmatpush1.msra.mxu0 0.0
    %2525 = vmatprep.subr.mxu0 0.0
    %2526 = vmatpush1.msra.mxu0 0.0
    %2527 = vmatprep.subr.mxu0 0.0
    %2528 = vmatpush1.msra.mxu0 0.0
    %2529 = vmatprep.subr.mxu0 0.0
    %2530 = vmatpush1.msra.mxu0 0.0
    %2531 = vmatprep.subr.mxu0 0.0
    %2532 = vmatpush1.msra.mxu0 0.0
    %2533 = vmatprep.subr.mxu0 0.0
    %2534 = vmatpush1.msra.mxu0 0.0
    %2535 = vmatprep.subr.mxu0 0.0
    %2536 = vmatpush1.msra.mxu0 0.0
    %2537 = vmatprep.subr.mxu0 0.0
    %2538 = vmatpush1.msra.mxu0 0.0
    %2539 = vmatprep.subr.mxu0 0.0
    %2540 = vmatpush1.msra.mxu0 0.0
    %2541 = vmatprep.subr.mxu0 0.0
    %2542 = vmatpush1.msra.mxu0 0.0
    %2543 = vmatprep.subr.mxu0 0.0
    %2544 = vmatpush1.msra.mxu0 0.0
    %2545 = vmatprep.mubr.f32.mxu0 0.0
    %2546 = vmatmul.mubr.f32.gmra.mrb[0].mxu0 %v2479
    %v2547 = vpop.f32.mrb[0].mxu0
    %v2548 = vadd.f32 0.0, %v2547
    %v2549 = vpop.f32.mrb[0].mxu0
    %2550 = vdwg.mxu0
    %2551 = vrot.lane.b32.xlu0 %v2285, 64
    %v2552 = vpop.permute.xlu0 %2551
    %v2555 = vsel %vm213, %v2474, 0
    %2557 = vmatprep.subr.mxu0 0.0
    %2558 = vmatpush1.msra.mxu0 %v2552
    %2559 = vmatprep.subr.mxu0 0.0
    %2560 = vmatpush1.msra.mxu0 0.0
    %2561 = vmatprep.subr.mxu0 0.0
    %2562 = vmatpush1.msra.mxu0 0.0
    %2563 = vmatprep.subr.mxu0 0.0
    %2564 = vmatpush1.msra.mxu0 0.0
    %2565 = vmatprep.subr.mxu0 0.0
    %2566 = vmatpush1.msra.mxu0 0.0
    %2567 = vmatprep.subr.mxu0 0.0
    %2568 = vmatpush1.msra.mxu0 0.0
    %2569 = vmatprep.subr.mxu0 0.0
    %2570 = vmatpush1.msra.mxu0 0.0
    %2571 = vmatprep.subr.mxu0 0.0
    %2572 = vmatpush1.msra.mxu0 0.0
    %2573 = vmatprep.subr.mxu0 0.0
    %2574 = vmatpush1.msra.mxu0 0.0
    %2575 = vmatprep.subr.mxu0 0.0
    %2576 = vmatpush1.msra.mxu0 0.0
    %2577 = vmatprep.subr.mxu0 0.0
    %2578 = vmatpush1.msra.mxu0 0.0
    %2579 = vmatprep.subr.mxu0 0.0
    %2580 = vmatpush1.msra.mxu0 0.0
    %2581 = vmatprep.subr.mxu0 0.0
    %2582 = vmatpush1.msra.mxu0 0.0
    %2583 = vmatprep.subr.mxu0 0.0
    %2584 = vmatpush1.msra.mxu0 0.0
    %2585 = vmatprep.subr.mxu0 0.0
    %2586 = vmatpush1.msra.mxu0 0.0
    %2587 = vmatprep.subr.mxu0 0.0
    %2588 = vmatpush1.msra.mxu0 0.0
    %2589 = vmatprep.subr.mxu0 0.0
    %2590 = vmatpush1.msra.mxu0 0.0
    %2591 = vmatprep.subr.mxu0 0.0
    %2592 = vmatpush1.msra.mxu0 0.0
    %2593 = vmatprep.subr.mxu0 0.0
    %2594 = vmatpush1.msra.mxu0 0.0
    %2595 = vmatprep.subr.mxu0 0.0
    %2596 = vmatpush1.msra.mxu0 0.0
    %2597 = vmatprep.subr.mxu0 0.0
    %2598 = vmatpush1.msra.mxu0 0.0
    %2599 = vmatprep.subr.mxu0 0.0
    %2600 = vmatpush1.msra.mxu0 0.0
    %2601 = vmatprep.subr.mxu0 0.0
    %2602 = vmatpush1.msra.mxu0 0.0
    %2603 = vmatprep.subr.mxu0 0.0
    %2604 = vmatpush1.msra.mxu0 0.0
    %2605 = vmatprep.subr.mxu0 0.0
    %2606 = vmatpush1.msra.mxu0 0.0
    %2607 = vmatprep.subr.mxu0 0.0
    %2608 = vmatpush1.msra.mxu0 0.0
    %2609 = vmatprep.subr.mxu0 0.0
    %2610 = vmatpush1.msra.mxu0 0.0
    %2611 = vmatprep.subr.mxu0 0.0
    %2612 = vmatpush1.msra.mxu0 0.0
    %2613 = vmatprep.subr.mxu0 0.0
    %2614 = vmatpush1.msra.mxu0 0.0
    %2615 = vmatprep.subr.mxu0 0.0
    %2616 = vmatpush1.msra.mxu0 0.0
    %2617 = vmatprep.subr.mxu0 0.0
    %2618 = vmatpush1.msra.mxu0 0.0
    %2619 = vmatprep.subr.mxu0 0.0
    %2620 = vmatpush1.msra.mxu0 0.0
    %2621 = vmatprep.mubr.f32.mxu0 0.0
    %2622 = vmatmul.mubr.f32.gmra.mrb[0].mxu0 %v2555
    %v2623 = vpop.f32.mrb[0].mxu0
    %v2624 = vadd.f32 0.0, %v2623
    %v2625 = vpop.f32.mrb[0].mxu0
    %2626 = vdwg.mxu0
    %v2628 = vsel %vm213, %v2548, 0
    %v2631 = vsel %vm213, %v2624, 0
    %2633 = vmatprep.subr.mxu0 0.0
    %2634 = vmatpush1.msra.mxu0 %v2289
    %2635 = vmatprep.subr.mxu0 0.0
    %2636 = vmatpush1.msra.mxu0 0.0
    %2637 = vmatprep.subr.mxu0 0.0
    %2638 = vmatpush1.msra.mxu0 0.0
    %2639 = vmatprep.subr.mxu0 0.0
    %2640 = vmatpush1.msra.mxu0 0.0
    %2641 = vmatprep.subr.mxu0 0.0
    %2642 = vmatpush1.msra.mxu0 0.0
    %2643 = vmatprep.subr.mxu0 0.0
    %2644 = vmatpush1.msra.mxu0 0.0
    %2645 = vmatprep.subr.mxu0 0.0
    %2646 = vmatpush1.msra.mxu0 0.0
    %2647 = vmatprep.subr.mxu0 0.0
    %2648 = vmatpush1.msra.mxu0 0.0
    %2649 = vmatprep.subr.mxu0 0.0
    %2650 = vmatpush1.msra.mxu0 0.0
    %2651 = vmatprep.subr.mxu0 0.0
    %2652 = vmatpush1.msra.mxu0 0.0
    %2653 = vmatprep.subr.mxu0 0.0
    %2654 = vmatpush1.msra.mxu0 0.0
    %2655 = vmatprep.subr.mxu0 0.0
    %2656 = vmatpush1.msra.mxu0 0.0
    %2657 = vmatprep.subr.mxu0 0.0
    %2658 = vmatpush1.msra.mxu0 0.0
    %2659 = vmatprep.subr.mxu0 0.0
    %2660 = vmatpush1.msra.mxu0 0.0
    %2661 = vmatprep.subr.mxu0 0.0
    %2662 = vmatpush1.msra.mxu0 0.0
    %2663 = vmatprep.subr.mxu0 0.0
    %2664 = vmatpush1.msra.mxu0 0.0
    %2665 = vmatprep.subr.mxu0 0.0
    %2666 = vmatpush1.msra.mxu0 0.0
    %2667 = vmatprep.subr.mxu0 0.0
    %2668 = vmatpush1.msra.mxu0 0.0
    %2669 = vmatprep.subr.mxu0 0.0
    %2670 = vmatpush1.msra.mxu0 0.0
    %2671 = vmatprep.subr.mxu0 0.0
    %2672 = vmatpush1.msra.mxu0 0.0
    %2673 = vmatprep.subr.mxu0 0.0
    %2674 = vmatpush1.msra.mxu0 0.0
    %2675 = vmatprep.subr.mxu0 0.0
    %2676 = vmatpush1.msra.mxu0 0.0
    %2677 = vmatprep.subr.mxu0 0.0
    %2678 = vmatpush1.msra.mxu0 0.0
    %2679 = vmatprep.subr.mxu0 0.0
    %2680 = vmatpush1.msra.mxu0 0.0
    %2681 = vmatprep.subr.mxu0 0.0
    %2682 = vmatpush1.msra.mxu0 0.0
    %2683 = vmatprep.subr.mxu0 0.0
    %2684 = vmatpush1.msra.mxu0 0.0
    %2685 = vmatprep.subr.mxu0 0.0
    %2686 = vmatpush1.msra.mxu0 0.0
    %2687 = vmatprep.subr.mxu0 0.0
    %2688 = vmatpush1.msra.mxu0 0.0
    %2689 = vmatprep.subr.mxu0 0.0
    %2690 = vmatpush1.msra.mxu0 0.0
    %2691 = vmatprep.subr.mxu0 0.0
    %2692 = vmatpush1.msra.mxu0 0.0
    %2693 = vmatprep.subr.mxu0 0.0
    %2694 = vmatpush1.msra.mxu0 0.0
    %2695 = vmatprep.subr.mxu0 0.0
    %2696 = vmatpush1.msra.mxu0 0.0
    %2697 = vmatprep.mubr.f32.mxu0 0.0
    %2698 = vmatmul.mubr.f32.gmra.mrb[0].mxu0 %v2628
    %v2699 = vpop.f32.mrb[0].mxu0
    %v2700 = vadd.f32 0.0, %v2699
    %v2701 = vpop.f32.mrb[0].mxu0
    %2702 = vmatprep.mubr.f32.mxu0 0.0
    %2703 = vmatmul.mubr.f32.gmra.mrb[0].mxu0 %v2631
    %v2704 = vpop.f32.mrb[0].mxu0
    %v2705 = vadd.f32 0.0, %v2704
    %v2706 = vpop.f32.mrb[0].mxu0
    %2707 = vdwg.mxu0
    %v2709 = vlaneseq
    %v2710 = vshrl.u32 %v2709, 7
    %v2711 = vsub.s32 0, %v2710
    %v2712 = vrot.slane %v2294, %v2711
    %v2714 = vadd.f32 %v2712, %v2700
    %v2715 = vadd.f32 %v2712, %v2705
    %2716 = vrot.lane.b32.xlu0 %v2280, 120
    %v2717 = vpop.permute.xlu0 %2716
    %2718 = vrot.lane.b32.xlu0 %v2280, 88
    %v2719 = vpop.permute.xlu0 %2718
    %v2720 = vsel %vm213, %v2717, 0
    %v2722 = vsel %vm213, %v2719, 0
    %2724 = vmatprep.subr.mxu0 0.0
    %2725 = vmatpush1.xpose.msra.mxu0 %v2722
    %2726 = vmatprep.subr.mxu0 0.0
    %2727 = vmatpush1.xpose.msra.mxu0 0.0
    %2728 = vmatprep.subr.mxu0 0.0
    %2729 = vmatpush1.xpose.msra.mxu0 0.0
    %2730 = vmatprep.subr.mxu0 0.0
    %2731 = vmatpush1.xpose.msra.mxu0 0.0
    %2732 = vmatprep.subr.mxu0 0.0
    %2733 = vmatpush1.xpose.msra.mxu0 0.0
    %2734 = vmatprep.subr.mxu0 0.0
    %2735 = vmatpush1.xpose.msra.mxu0 0.0
    %2736 = vmatprep.subr.mxu0 0.0
    %2737 = vmatpush1.xpose.msra.mxu0 0.0
    %2738 = vmatprep.subr.mxu0 0.0
    %2739 = vmatpush1.xpose.msra.mxu0 0.0
    %2740 = vmatprep.subr.mxu0 0.0
    %2741 = vmatpush1.xpose.msra.mxu0 0.0
    %2742 = vmatprep.subr.mxu0 0.0
    %2743 = vmatpush1.xpose.msra.mxu0 0.0
    %2744 = vmatprep.subr.mxu0 0.0
    %2745 = vmatpush1.xpose.msra.mxu0 0.0
    %2746 = vmatprep.subr.mxu0 0.0
    %2747 = vmatpush1.xpose.msra.mxu0 0.0
    %2748 = vmatprep.subr.mxu0 0.0
    %2749 = vmatpush1.xpose.msra.mxu0 0.0
    %2750 = vmatprep.subr.mxu0 0.0
    %2751 = vmatpush1.xpose.msra.mxu0 0.0
    %2752 = vmatprep.subr.mxu0 0.0
    %2753 = vmatpush1.xpose.msra.mxu0 0.0
    %2754 = vmatprep.subr.mxu0 0.0
    %2755 = vmatpush1.xpose.msra.mxu0 0.0
    %2756 = vmatprep.subr.mxu0 0.0
    %2757 = vmatpush1.xpose.msra.mxu0 0.0
    %2758 = vmatprep.subr.mxu0 0.0
    %2759 = vmatpush1.xpose.msra.mxu0 0.0
    %2760 = vmatprep.subr.mxu0 0.0
    %2761 = vmatpush1.xpose.msra.mxu0 0.0
    %2762 = vmatprep.subr.mxu0 0.0
    %2763 = vmatpush1.xpose.msra.mxu0 0.0
    %2764 = vmatprep.subr.mxu0 0.0
    %2765 = vmatpush1.xpose.msra.mxu0 0.0
    %2766 = vmatprep.subr.mxu0 0.0
    %2767 = vmatpush1.xpose.msra.mxu0 0.0
    %2768 = vmatprep.subr.mxu0 0.0
    %2769 = vmatpush1.xpose.msra.mxu0 0.0
    %2770 = vmatprep.subr.mxu0 0.0
    %2771 = vmatpush1.xpose.msra.mxu0 0.0
    %2772 = vmatprep.subr.mxu0 0.0
    %2773 = vmatpush1.xpose.msra.mxu0 0.0
    %2774 = vmatprep.subr.mxu0 0.0
    %2775 = vmatpush1.xpose.msra.mxu0 0.0
    %2776 = vmatprep.subr.mxu0 0.0
    %2777 = vmatpush1.xpose.msra.mxu0 0.0
    %2778 = vmatprep.subr.mxu0 0.0
    %2779 = vmatpush1.xpose.msra.mxu0 0.0
    %2780 = vmatprep.subr.mxu0 0.0
    %2781 = vmatpush1.xpose.msra.mxu0 0.0
    %2782 = vmatprep.subr.mxu0 0.0
    %2783 = vmatpush1.xpose.msra.mxu0 0.0
    %2784 = vmatprep.subr.mxu0 0.0
    %2785 = vmatpush1.xpose.msra.mxu0 0.0
    %2786 = vmatprep.subr.mxu0 0.0
    %2787 = vmatpush1.xpose.msra.mxu0 0.0
    %2788 = vmatprep.mubr.f32.mxu0 0.0
    %2789 = vmatmul.mubr.f32.gmra.mrb[0].mxu0 %v2720
    %v2790 = vpop.f32.mrb[0].mxu0
    %v2791 = vadd.f32 0.0, %v2790
    %v2792 = vpop.f32.mrb[0].mxu0
    %2793 = vdwg.mxu0
    %2794 = vrot.lane.b32.xlu0 %v2285, 120
    %v2795 = vpop.permute.xlu0 %2794
    %2796 = vrot.lane.b32.xlu0 %v2285, 88
    %v2797 = vpop.permute.xlu0 %2796
    %v2798 = vsel %vm213, %v2795, 0
    %v2800 = vsel %vm213, %v2797, 0
    %2802 = vmatprep.subr.mxu0 0.0
    %2803 = vmatpush1.xpose.msra.mxu0 %v2800
    %2804 = vmatprep.subr.mxu0 0.0
    %2805 = vmatpush1.xpose.msra.mxu0 0.0
    %2806 = vmatprep.subr.mxu0 0.0
    %2807 = vmatpush1.xpose.msra.mxu0 0.0
    %2808 = vmatprep.subr.mxu0 0.0
    %2809 = vmatpush1.xpose.msra.mxu0 0.0
    %2810 = vmatprep.subr.mxu0 0.0
    %2811 = vmatpush1.xpose.msra.mxu0 0.0
    %2812 = vmatprep.subr.mxu0 0.0
    %2813 = vmatpush1.xpose.msra.mxu0 0.0
    %2814 = vmatprep.subr.mxu0 0.0
    %2815 = vmatpush1.xpose.msra.mxu0 0.0
    %2816 = vmatprep.subr.mxu0 0.0
    %2817 = vmatpush1.xpose.msra.mxu0 0.0
    %2818 = vmatprep.subr.mxu0 0.0
    %2819 = vmatpush1.xpose.msra.mxu0 0.0
    %2820 = vmatprep.subr.mxu0 0.0
    %2821 = vmatpush1.xpose.msra.mxu0 0.0
    %2822 = vmatprep.subr.mxu0 0.0
    %2823 = vmatpush1.xpose.msra.mxu0 0.0
    %2824 = vmatprep.subr.mxu0 0.0
    %2825 = vmatpush1.xpose.msra.mxu0 0.0
    %2826 = vmatprep.subr.mxu0 0.0
    %2827 = vmatpush1.xpose.msra.mxu0 0.0
    %2828 = vmatprep.subr.mxu0 0.0
    %2829 = vmatpush1.xpose.msra.mxu0 0.0
    %2830 = vmatprep.subr.mxu0 0.0
    %2831 = vmatpush1.xpose.msra.mxu0 0.0
    %2832 = vmatprep.subr.mxu0 0.0
    %2833 = vmatpush1.xpose.msra.mxu0 0.0
    %2834 = vmatprep.subr.mxu0 0.0
    %2835 = vmatpush1.xpose.msra.mxu0 0.0
    %2836 = vmatprep.subr.mxu0 0.0
    %2837 = vmatpush1.xpose.msra.mxu0 0.0
    %2838 = vmatprep.subr.mxu0 0.0
    %2839 = vmatpush1.xpose.msra.mxu0 0.0
    %2840 = vmatprep.subr.mxu0 0.0
    %2841 = vmatpush1.xpose.msra.mxu0 0.0
    %2842 = vmatprep.subr.mxu0 0.0
    %2843 = vmatpush1.xpose.msra.mxu0 0.0
    %2844 = vmatprep.subr.mxu0 0.0
    %2845 = vmatpush1.xpose.msra.mxu0 0.0
    %2846 = vmatprep.subr.mxu0 0.0
    %2847 = vmatpush1.xpose.msra.mxu0 0.0
    %2848 = vmatprep.subr.mxu0 0.0
    %2849 = vmatpush1.xpose.msra.mxu0 0.0
    %2850 = vmatprep.subr.mxu0 0.0
    %2851 = vmatpush1.xpose.msra.mxu0 0.0
    %2852 = vmatprep.subr.mxu0 0.0
    %2853 = vmatpush1.xpose.msra.mxu0 0.0
    %2854 = vmatprep.subr.mxu0 0.0
    %2855 = vmatpush1.xpose.msra.mxu0 0.0
    %2856 = vmatprep.subr.mxu0 0.0
    %2857 = vmatpush1.xpose.msra.mxu0 0.0
    %2858 = vmatprep.subr.mxu0 0.0
    %2859 = vmatpush1.xpose.msra.mxu0 0.0
    %2860 = vmatprep.subr.mxu0 0.0
    %2861 = vmatpush1.xpose.msra.mxu0 0.0
    %2862 = vmatprep.subr.mxu0 0.0
    %2863 = vmatpush1.xpose.msra.mxu0 0.0
    %2864 = vmatprep.subr.mxu0 0.0
    %2865 = vmatpush1.xpose.msra.mxu0 0.0
    %2866 = vmatprep.mubr.f32.mxu0 0.0
    %2867 = vmatmul.mubr.f32.gmra.mrb[0].mxu0 %v2798
    %v2868 = vpop.f32.mrb[0].mxu0
    %v2869 = vadd.f32 0.0, %v2868
    %v2870 = vpop.f32.mrb[0].mxu0
    %2871 = vdwg.mxu0
    %v2872 = vmul.f32 %v2791, 0.35355338
    %v2873 = vmul.f32 %v2869, 0.35355338
    %v2874 = vadd.f32 %v2872, %v372
    %v2875 = vadd.f32 %v2873, %v376
    %v2876 = vsel %vm213, %v2874, -inf
    %2877 = vmax.xlane.f32.xlu0 %v2876
    %v2878 = vpop.xlane.xlu0 %2877
    %v2879 = vsel %vm213, %v2875, -inf
    %2880 = vmax.xlane.f32.xlu0 %v2879
    %v2881 = vpop.xlane.xlu0 %2880
    %v2882 = vsub.f32 %v2874, %v2878
    %v2883 = vsub.f32 %v2875, %v2881
    %v2884 = vmul.f32 %v2882, 1.442695
    %v2885 = vpow.pop %v2884
    %v2886 = vmul.f32 %v2883, 1.442695
    %v2887 = vpow.pop %v2886
    %v2888 = vsel %vm213, %v2885, 0.0
    %2889 = vadd.xlane.f32.xlu0 %v2888
    %v2890 = vpop.xlane.xlu0 %2889
    %v2891 = vsel %vm213, %v2887, 0.0
    %2892 = vadd.xlane.f32.xlu0 %v2891
    %v2893 = vpop.xlane.xlu0 %2892
    %v2894 = vrcp.pop %v2890
    %v2895 = vrcp.pop %v2893
    %v2896 = vmul.f32 %v2885, %v2894
    %v2897 = vmul.f32 %v2887, %v2895
    %2898 = vrot.lane.b32.xlu0 %v2280, 56
    %v2899 = vpop.permute.xlu0 %2898
    %v2902 = vsel %vm213, %v2896, 0
    %2904 = vmatprep.subr.mxu0 0.0
    %2905 = vmatpush1.msra.mxu0 %v2899
    %2906 = vmatprep.subr.mxu0 0.0
    %2907 = vmatpush1.msra.mxu0 0.0
    %2908 = vmatprep.subr.mxu0 0.0
    %2909 = vmatpush1.msra.mxu0 0.0
    %2910 = vmatprep.subr.mxu0 0.0
    %2911 = vmatpush1.msra.mxu0 0.0
    %2912 = vmatprep.subr.mxu0 0.0
    %2913 = vmatpush1.msra.mxu0 0.0
    %2914 = vmatprep.subr.mxu0 0.0
    %2915 = vmatpush1.msra.mxu0 0.0
    %2916 = vmatprep.subr.mxu0 0.0
    %2917 = vmatpush1.msra.mxu0 0.0
    %2918 = vmatprep.subr.mxu0 0.0
    %2919 = vmatpush1.msra.mxu0 0.0
    %2920 = vmatprep.subr.mxu0 0.0
    %2921 = vmatpush1.msra.mxu0 0.0
    %2922 = vmatprep.subr.mxu0 0.0
    %2923 = vmatpush1.msra.mxu0 0.0
    %2924 = vmatprep.subr.mxu0 0.0
    %2925 = vmatpush1.msra.mxu0 0.0
    %2926 = vmatprep.subr.mxu0 0.0
    %2927 = vmatpush1.msra.mxu0 0.0
    %2928 = vmatprep.subr.mxu0 0.0
    %2929 = vmatpush1.msra.mxu0 0.0
    %2930 = vmatprep.subr.mxu0 0.0
    %2931 = vmatpush1.msra.mxu0 0.0
    %2932 = vmatprep.subr.mxu0 0.0
    %2933 = vmatpush1.msra.mxu0 0.0
    %2934 = vmatprep.subr.mxu0 0.0
    %2935 = vmatpush1.msra.mxu0 0.0
    %2936 = vmatprep.subr.mxu0 0.0
    %2937 = vmatpush1.msra.mxu0 0.0
    %2938 = vmatprep.subr.mxu0 0.0
    %2939 = vmatpush1.msra.mxu0 0.0
    %2940 = vmatprep.subr.mxu0 0.0
    %2941 = vmatpush1.msra.mxu0 0.0
    %2942 = vmatprep.subr.mxu0 0.0
    %2943 = vmatpush1.msra.mxu0 0.0
    %2944 = vmatprep.subr.mxu0 0.0
    %2945 = vmatpush1.msra.mxu0 0.0
    %2946 = vmatprep.subr.mxu0 0.0
    %2947 = vmatpush1.msra.mxu0 0.0
    %2948 = vmatprep.subr.mxu0 0.0
    %2949 = vmatpush1.msra.mxu0 0.0
    %2950 = vmatprep.subr.mxu0 0.0
    %2951 = vmatpush1.msra.mxu0 0.0
    %2952 = vmatprep.subr.mxu0 0.0
    %2953 = vmatpush1.msra.mxu0 0.0
    %2954 = vmatprep.subr.mxu0 0.0
    %2955 = vmatpush1.msra.mxu0 0.0
    %2956 = vmatprep.subr.mxu0 0.0
    %2957 = vmatpush1.msra.mxu0 0.0
    %2958 = vmatprep.subr.mxu0 0.0
    %2959 = vmatpush1.msra.mxu0 0.0
    %2960 = vmatprep.subr.mxu0 0.0
    %2961 = vmatpush1.msra.mxu0 0.0
    %2962 = vmatprep.subr.mxu0 0.0
    %2963 = vmatpush1.msra.mxu0 0.0
    %2964 = vmatprep.subr.mxu0 0.0
    %2965 = vmatpush1.msra.mxu0 0.0
    %2966 = vmatprep.subr.mxu0 0.0
    %2967 = vmatpush1.msra.mxu0 0.0
    %2968 = vmatprep.mubr.f32.mxu0 0.0
    %2969 = vmatmul.mubr.f32.gmra.mrb[0].mxu0 %v2902
    %v2970 = vpop.f32.mrb[0].mxu0
    %v2971 = vadd.f32 0.0, %v2970
    %v2972 = vpop.f32.mrb[0].mxu0
    %2973 = vdwg.mxu0
    %2974 = vrot.lane.b32.xlu0 %v2285, 56
    %v2975 = vpop.permute.xlu0 %2974
    %v2978 = vsel %vm213, %v2897, 0
    %2980 = vmatprep.subr.mxu0 0.0
    %2981 = vmatpush1.msra.mxu0 %v2975
    %2982 = vmatprep.subr.mxu0 0.0
    %2983 = vmatpush1.msra.mxu0 0.0
    %2984 = vmatprep.subr.mxu0 0.0
    %2985 = vmatpush1.msra.mxu0 0.0
    %2986 = vmatprep.subr.mxu0 0.0
    %2987 = vmatpush1.msra.mxu0 0.0
    %2988 = vmatprep.subr.mxu0 0.0
    %2989 = vmatpush1.msra.mxu0 0.0
    %2990 = vmatprep.subr.mxu0 0.0
    %2991 = vmatpush1.msra.mxu0 0.0
    %2992 = vmatprep.subr.mxu0 0.0
    %2993 = vmatpush1.msra.mxu0 0.0
    %2994 = vmatprep.subr.mxu0 0.0
    %2995 = vmatpush1.msra.mxu0 0.0
    %2996 = vmatprep.subr.mxu0 0.0
    %2997 = vmatpush1.msra.mxu0 0.0
    %2998 = vmatprep.subr.mxu0 0.0
    %2999 = vmatpush1.msra.mxu0 0.0
    %3000 = vmatprep.subr.mxu0 0.0
    %3001 = vmatpush1.msra.mxu0 0.0
    %3002 = vmatprep.subr.mxu0 0.0
    %3003 = vmatpush1.msra.mxu0 0.0
    %3004 = vmatprep.subr.mxu0 0.0
    %3005 = vmatpush1.msra.mxu0 0.0
    %3006 = vmatprep.subr.mxu0 0.0
    %3007 = vmatpush1.msra.mxu0 0.0
    %3008 = vmatprep.subr.mxu0 0.0
    %3009 = vmatpush1.msra.mxu0 0.0
    %3010 = vmatprep.subr.mxu0 0.0
    %3011 = vmatpush1.msra.mxu0 0.0
    %3012 = vmatprep.subr.mxu0 0.0
    %3013 = vmatpush1.msra.mxu0 0.0
    %3014 = vmatprep.subr.mxu0 0.0
    %3015 = vmatpush1.msra.mxu0 0.0
    %3016 = vmatprep.subr.mxu0 0.0
    %3017 = vmatpush1.msra.mxu0 0.0
    %3018 = vmatprep.subr.mxu0 0.0
    %3019 = vmatpush1.msra.mxu0 0.0
    %3020 = vmatprep.subr.mxu0 0.0
    %3021 = vmatpush1.msra.mxu0 0.0
    %3022 = vmatprep.subr.mxu0 0.0
    %3023 = vmatpush1.msra.mxu0 0.0
    %3024 = vmatprep.subr.mxu0 0.0
    %3025 = vmatpush1.msra.mxu0 0.0
    %3026 = vmatprep.subr.mxu0 0.0
    %3027 = vmatpush1.msra.mxu0 0.0
    %3028 = vmatprep.subr.mxu0 0.0
    %3029 = vmatpush1.msra.mxu0 0.0
    %3030 = vmatprep.subr.mxu0 0.0
    %3031 = vmatpush1.msra.mxu0 0.0
    %3032 = vmatprep.subr.mxu0 0.0
    %3033 = vmatpush1.msra.mxu0 0.0
    %3034 = vmatprep.subr.mxu0 0.0
    %3035 = vmatpush1.msra.mxu0 0.0
    %3036 = vmatprep.subr.mxu0 0.0
    %3037 = vmatpush1.msra.mxu0 0.0
    %3038 = vmatprep.subr.mxu0 0.0
    %3039 = vmatpush1.msra.mxu0 0.0
    %3040 = vmatprep.subr.mxu0 0.0
    %3041 = vmatpush1.msra.mxu0 0.0
    %3042 = vmatprep.subr.mxu0 0.0
    %3043 = vmatpush1.msra.mxu0 0.0
    %3044 = vmatprep.mubr.f32.mxu0 0.0
    %3045 = vmatmul.mubr.f32.gmra.mrb[0].mxu0 %v2978
    %v3046 = vpop.f32.mrb[0].mxu0
    %v3047 = vadd.f32 0.0, %v3046
    %v3048 = vpop.f32.mrb[0].mxu0
    %3049 = vdwg.mxu0
    %v3051 = vsel %vm213, %v2971, 0
    %v3054 = vsel %vm213, %v3047, 0
    %3056 = vmatprep.subr.mxu0 0.0
    %3057 = vmatpush1.msra.mxu0 %v2290
    %3058 = vmatprep.subr.mxu0 0.0
    %3059 = vmatpush1.msra.mxu0 0.0
    %3060 = vmatprep.subr.mxu0 0.0
    %3061 = vmatpush1.msra.mxu0 0.0
    %3062 = vmatprep.subr.mxu0 0.0
    %3063 = vmatpush1.msra.mxu0 0.0
    %3064 = vmatprep.subr.mxu0 0.0
    %3065 = vmatpush1.msra.mxu0 0.0
    %3066 = vmatprep.subr.mxu0 0.0
    %3067 = vmatpush1.msra.mxu0 0.0
    %3068 = vmatprep.subr.mxu0 0.0
    %3069 = vmatpush1.msra.mxu0 0.0
    %3070 = vmatprep.subr.mxu0 0.0
    %3071 = vmatpush1.msra.mxu0 0.0
    %3072 = vmatprep.subr.mxu0 0.0
    %3073 = vmatpush1.msra.mxu0 0.0
    %3074 = vmatprep.subr.mxu0 0.0
    %3075 = vmatpush1.msra.mxu0 0.0
    %3076 = vmatprep.subr.mxu0 0.0
    %3077 = vmatpush1.msra.mxu0 0.0
    %3078 = vmatprep.subr.mxu0 0.0
    %3079 = vmatpush1.msra.mxu0 0.0
    %3080 = vmatprep.subr.mxu0 0.0
    %3081 = vmatpush1.msra.mxu0 0.0
    %3082 = vmatprep.subr.mxu0 0.0
    %3083 = vmatpush1.msra.mxu0 0.0
    %3084 = vmatprep.subr.mxu0 0.0
    %3085 = vmatpush1.msra.mxu0 0.0
    %3086 = vmatprep.subr.mxu0 0.0
    %3087 = vmatpush1.msra.mxu0 0.0
    %3088 = vmatprep.subr.mxu0 0.0
    %3089 = vmatpush1.msra.mxu0 0.0
    %3090 = vmatprep.subr.mxu0 0.0
    %3091 = vmatpush1.msra.mxu0 0.0
    %3092 = vmatprep.subr.mxu0 0.0
    %3093 = vmatpush1.msra.mxu0 0.0
    %3094 = vmatprep.subr.mxu0 0.0
    %3095 = vmatpush1.msra.mxu0 0.0
    %3096 = vmatprep.subr.mxu0 0.0
    %3097 = vmatpush1.msra.mxu0 0.0
    %3098 = vmatprep.subr.mxu0 0.0
    %3099 = vmatpush1.msra.mxu0 0.0
    %3100 = vmatprep.subr.mxu0 0.0
    %3101 = vmatpush1.msra.mxu0 0.0
    %3102 = vmatprep.subr.mxu0 0.0
    %3103 = vmatpush1.msra.mxu0 0.0
    %3104 = vmatprep.subr.mxu0 0.0
    %3105 = vmatpush1.msra.mxu0 0.0
    %3106 = vmatprep.subr.mxu0 0.0
    %3107 = vmatpush1.msra.mxu0 0.0
    %3108 = vmatprep.subr.mxu0 0.0
    %3109 = vmatpush1.msra.mxu0 0.0
    %3110 = vmatprep.subr.mxu0 0.0
    %3111 = vmatpush1.msra.mxu0 0.0
    %3112 = vmatprep.subr.mxu0 0.0
    %3113 = vmatpush1.msra.mxu0 0.0
    %3114 = vmatprep.subr.mxu0 0.0
    %3115 = vmatpush1.msra.mxu0 0.0
    %3116 = vmatprep.subr.mxu0 0.0
    %3117 = vmatpush1.msra.mxu0 0.0
    %3118 = vmatprep.subr.mxu0 0.0
    %3119 = vmatpush1.msra.mxu0 0.0
    %3120 = vmatprep.mubr.f32.mxu0 0.0
    %3121 = vmatmul.mubr.f32.gmra.mrb[0].mxu0 %v3051
    %v3122 = vpop.f32.mrb[0].mxu0
    %v3123 = vadd.f32 0.0, %v3122
    %v3124 = vpop.f32.mrb[0].mxu0
    %3125 = vmatprep.mubr.f32.mxu0 0.0
    %3126 = vmatmul.mubr.f32.gmra.mrb[0].mxu0 %v3054
    %v3127 = vpop.f32.mrb[0].mxu0
    %v3128 = vadd.f32 0.0, %v3127
    %v3129 = vpop.f32.mrb[0].mxu0
    %3130 = vdwg.mxu0
    %v3131 = vadd.f32 %v2714, %v3123
    %v3132 = vadd.f32 %v2715, %v3128
    %3133 = vrot.lane.b32.xlu0 %v2280, 112
    %v3134 = vpop.permute.xlu0 %3133
    %3135 = vrot.lane.b32.xlu0 %v2280, 80
    %v3136 = vpop.permute.xlu0 %3135
    %v3137 = vsel %vm213, %v3134, 0
    %v3139 = vsel %vm213, %v3136, 0
    %3141 = vmatprep.subr.mxu0 0.0
    %3142 = vmatpush1.xpose.msra.mxu0 %v3139
    %3143 = vmatprep.subr.mxu0 0.0
    %3144 = vmatpush1.xpose.msra.mxu0 0.0
    %3145 = vmatprep.subr.mxu0 0.0
    %3146 = vmatpush1.xpose.msra.mxu0 0.0
    %3147 = vmatprep.subr.mxu0 0.0
    %3148 = vmatpush1.xpose.msra.mxu0 0.0
    %3149 = vmatprep.subr.mxu0 0.0
    %3150 = vmatpush1.xpose.msra.mxu0 0.0
    %3151 = vmatprep.subr.mxu0 0.0
    %3152 = vmatpush1.xpose.msra.mxu0 0.0
    %3153 = vmatprep.subr.mxu0 0.0
    %3154 = vmatpush1.xpose.msra.mxu0 0.0
    %3155 = vmatprep.subr.mxu0 0.0
    %3156 = vmatpush1.xpose.msra.mxu0 0.0
    %3157 = vmatprep.subr.mxu0 0.0
    %3158 = vmatpush1.xpose.msra.mxu0 0.0
    %3159 = vmatprep.subr.mxu0 0.0
    %3160 = vmatpush1.xpose.msra.mxu0 0.0
    %3161 = vmatprep.subr.mxu0 0.0
    %3162 = vmatpush1.xpose.msra.mxu0 0.0
    %3163 = vmatprep.subr.mxu0 0.0
    %3164 = vmatpush1.xpose.msra.mxu0 0.0
    %3165 = vmatprep.subr.mxu0 0.0
    %3166 = vmatpush1.xpose.msra.mxu0 0.0
    %3167 = vmatprep.subr.mxu0 0.0
    %3168 = vmatpush1.xpose.msra.mxu0 0.0
    %3169 = vmatprep.subr.mxu0 0.0
    %3170 = vmatpush1.xpose.msra.mxu0 0.0
    %3171 = vmatprep.subr.mxu0 0.0
    %3172 = vmatpush1.xpose.msra.mxu0 0.0
    %3173 = vmatprep.subr.mxu0 0.0
    %3174 = vmatpush1.xpose.msra.mxu0 0.0
    %3175 = vmatprep.subr.mxu0 0.0
    %3176 = vmatpush1.xpose.msra.mxu0 0.0
    %3177 = vmatprep.subr.mxu0 0.0
    %3178 = vmatpush1.xpose.msra.mxu0 0.0
    %3179 = vmatprep.subr.mxu0 0.0
    %3180 = vmatpush1.xpose.msra.mxu0 0.0
    %3181 = vmatprep.subr.mxu0 0.0
    %3182 = vmatpush1.xpose.msra.mxu0 0.0
    %3183 = vmatprep.subr.mxu0 0.0
    %3184 = vmatpush1.xpose.msra.mxu0 0.0
    %3185 = vmatprep.subr.mxu0 0.0
    %3186 = vmatpush1.xpose.msra.mxu0 0.0
    %3187 = vmatprep.subr.mxu0 0.0
    %3188 = vmatpush1.xpose.msra.mxu0 0.0
    %3189 = vmatprep.subr.mxu0 0.0
    %3190 = vmatpush1.xpose.msra.mxu0 0.0
    %3191 = vmatprep.subr.mxu0 0.0
    %3192 = vmatpush1.xpose.msra.mxu0 0.0
    %3193 = vmatprep.subr.mxu0 0.0
    %3194 = vmatpush1.xpose.msra.mxu0 0.0
    %3195 = vmatprep.subr.mxu0 0.0
    %3196 = vmatpush1.xpose.msra.mxu0 0.0
    %3197 = vmatprep.subr.mxu0 0.0
    %3198 = vmatpush1.xpose.msra.mxu0 0.0
    %3199 = vmatprep.subr.mxu0 0.0
    %3200 = vmatpush1.xpose.msra.mxu0 0.0
    %3201 = vmatprep.subr.mxu0 0.0
    %3202 = vmatpush1.xpose.msra.mxu0 0.0
    %3203 = vmatprep.subr.mxu0 0.0
    %3204 = vmatpush1.xpose.msra.mxu0 0.0
    %3205 = vmatprep.mubr.f32.mxu0 0.0
    %3206 = vmatmul.mubr.f32.gmra.mrb[0].mxu0 %v3137
    %v3207 = vpop.f32.mrb[0].mxu0
    %v3208 = vadd.f32 0.0, %v3207
    %v3209 = vpop.f32.mrb[0].mxu0
    %3210 = vdwg.mxu0
    %3211 = vrot.lane.b32.xlu0 %v2285, 112
    %v3212 = vpop.permute.xlu0 %3211
    %3213 = vrot.lane.b32.xlu0 %v2285, 80
    %v3214 = vpop.permute.xlu0 %3213
    %v3215 = vsel %vm213, %v3212, 0
    %v3217 = vsel %vm213, %v3214, 0
    %3219 = vmatprep.subr.mxu0 0.0
    %3220 = vmatpush1.xpose.msra.mxu0 %v3217
    %3221 = vmatprep.subr.mxu0 0.0
    %3222 = vmatpush1.xpose.msra.mxu0 0.0
    %3223 = vmatprep.subr.mxu0 0.0
    %3224 = vmatpush1.xpose.msra.mxu0 0.0
    %3225 = vmatprep.subr.mxu0 0.0
    %3226 = vmatpush1.xpose.msra.mxu0 0.0
    %3227 = vmatprep.subr.mxu0 0.0
    %3228 = vmatpush1.xpose.msra.mxu0 0.0
    %3229 = vmatprep.subr.mxu0 0.0
    %3230 = vmatpush1.xpose.msra.mxu0 0.0
    %3231 = vmatprep.subr.mxu0 0.0
    %3232 = vmatpush1.xpose.msra.mxu0 0.0
    %3233 = vmatprep.subr.mxu0 0.0
    %3234 = vmatpush1.xpose.msra.mxu0 0.0
    %3235 = vmatprep.subr.mxu0 0.0
    %3236 = vmatpush1.xpose.msra.mxu0 0.0
    %3237 = vmatprep.subr.mxu0 0.0
    %3238 = vmatpush1.xpose.msra.mxu0 0.0
    %3239 = vmatprep.subr.mxu0 0.0
    %3240 = vmatpush1.xpose.msra.mxu0 0.0
    %3241 = vmatprep.subr.mxu0 0.0
    %3242 = vmatpush1.xpose.msra.mxu0 0.0
    %3243 = vmatprep.subr.mxu0 0.0
    %3244 = vmatpush1.xpose.msra.mxu0 0.0
    %3245 = vmatprep.subr.mxu0 0.0
    %3246 = vmatpush1.xpose.msra.mxu0 0.0
    %3247 = vmatprep.subr.mxu0 0.0
    %3248 = vmatpush1.xpose.msra.mxu0 0.0
    %3249 = vmatprep.subr.mxu0 0.0
    %3250 = vmatpush1.xpose.msra.mxu0 0.0
    %3251 = vmatprep.subr.mxu0 0.0
    %3252 = vmatpush1.xpose.msra.mxu0 0.0
    %3253 = vmatprep.subr.mxu0 0.0
    %3254 = vmatpush1.xpose.msra.mxu0 0.0
    %3255 = vmatprep.subr.mxu0 0.0
    %3256 = vmatpush1.xpose.msra.mxu0 0.0
    %3257 = vmatprep.subr.mxu0 0.0
    %3258 = vmatpush1.xpose.msra.mxu0 0.0
    %3259 = vmatprep.subr.mxu0 0.0
    %3260 = vmatpush1.xpose.msra.mxu0 0.0
    %3261 = vmatprep.subr.mxu0 0.0
    %3262 = vmatpush1.xpose.msra.mxu0 0.0
    %3263 = vmatprep.subr.mxu0 0.0
    %3264 = vmatpush1.xpose.msra.mxu0 0.0
    %3265 = vmatprep.subr.mxu0 0.0
    %3266 = vmatpush1.xpose.msra.mxu0 0.0
    %3267 = vmatprep.subr.mxu0 0.0
    %3268 = vmatpush1.xpose.msra.mxu0 0.0
    %3269 = vmatprep.subr.mxu0 0.0
    %3270 = vmatpush1.xpose.msra.mxu0 0.0
    %3271 = vmatprep.subr.mxu0 0.0
    %3272 = vmatpush1.xpose.msra.mxu0 0.0
    %3273 = vmatprep.subr.mxu0 0.0
    %3274 = vmatpush1.xpose.msra.mxu0 0.0
    %3275 = vmatprep.subr.mxu0 0.0
    %3276 = vmatpush1.xpose.msra.mxu0 0.0
    %3277 = vmatprep.subr.mxu0 0.0
    %3278 = vmatpush1.xpose.msra.mxu0 0.0
    %3279 = vmatprep.subr.mxu0 0.0
    %3280 = vmatpush1.xpose.msra.mxu0 0.0
    %3281 = vmatprep.subr.mxu0 0.0
    %3282 = vmatpush1.xpose.msra.mxu0 0.0
    %3283 = vmatprep.mubr.f32.mxu0 0.0
    %3284 = vmatmul.mubr.f32.gmra.mrb[0].mxu0 %v3215
    %v3285 = vpop.f32.mrb[0].mxu0
    %v3286 = vadd.f32 0.0, %v3285
    %v3287 = vpop.f32.mrb[0].mxu0
    %3288 = vdwg.mxu0
    %v3289 = vmul.f32 %v3208, 0.35355338
    %v3290 = vmul.f32 %v3286, 0.35355338
    %v3291 = vadd.f32 %v3289, %v372
    %v3292 = vadd.f32 %v3290, %v376
    %v3293 = vsel %vm213, %v3291, -inf
    %3294 = vmax.xlane.f32.xlu0 %v3293
    %v3295 = vpop.xlane.xlu0 %3294
    %v3296 = vsel %vm213, %v3292, -inf
    %3297 = vmax.xlane.f32.xlu0 %v3296
    %v3298 = vpop.xlane.xlu0 %3297
    %v3299 = vsub.f32 %v3291, %v3295
    %v3300 = vsub.f32 %v3292, %v3298
    %v3301 = vmul.f32 %v3299, 1.442695
    %v3302 = vpow.pop %v3301
    %v3303 = vmul.f32 %v3300, 1.442695
    %v3304 = vpow.pop %v3303
    %v3305 = vsel %vm213, %v3302, 0.0
    %3306 = vadd.xlane.f32.xlu0 %v3305
    %v3307 = vpop.xlane.xlu0 %3306
    %v3308 = vsel %vm213, %v3304, 0.0
    %3309 = vadd.xlane.f32.xlu0 %v3308
    %v3310 = vpop.xlane.xlu0 %3309
    %v3311 = vrcp.pop %v3307
    %v3312 = vrcp.pop %v3310
    %v3313 = vmul.f32 %v3302, %v3311
    %v3314 = vmul.f32 %v3304, %v3312
    %3315 = vrot.lane.b32.xlu0 %v2280, 48
    %v3316 = vpop.permute.xlu0 %3315
    %v3319 = vsel %vm213, %v3313, 0
    %3321 = vmatprep.subr.mxu0 0.0
    %3322 = vmatpush1.msra.mxu0 %v3316
    %3323 = vmatprep.subr.mxu0 0.0
    %3324 = vmatpush1.msra.mxu0 0.0
    %3325 = vmatprep.subr.mxu0 0.0
    %3326 = vmatpush1.msra.mxu0 0.0
    %3327 = vmatprep.subr.mxu0 0.0
    %3328 = vmatpush1.msra.mxu0 0.0
    %3329 = vmatprep.subr.mxu0 0.0
    %3330 = vmatpush1.msra.mxu0 0.0
    %3331 = vmatprep.subr.mxu0 0.0
    %3332 = vmatpush1.msra.mxu0 0.0
    %3333 = vmatprep.subr.mxu0 0.0
    %3334 = vmatpush1.msra.mxu0 0.0
    %3335 = vmatprep.subr.mxu0 0.0
    %3336 = vmatpush1.msra.mxu0 0.0
    %3337 = vmatprep.subr.mxu0 0.0
    %3338 = vmatpush1.msra.mxu0 0.0
    %3339 = vmatprep.subr.mxu0 0.0
    %3340 = vmatpush1.msra.mxu0 0.0
    %3341 = vmatprep.subr.mxu0 0.0
    %3342 = vmatpush1.msra.mxu0 0.0
    %3343 = vmatprep.subr.mxu0 0.0
    %3344 = vmatpush1.msra.mxu0 0.0
    %3345 = vmatprep.subr.mxu0 0.0
    %3346 = vmatpush1.msra.mxu0 0.0
    %3347 = vmatprep.subr.mxu0 0.0
    %3348 = vmatpush1.msra.mxu0 0.0
    %3349 = vmatprep.subr.mxu0 0.0
    %3350 = vmatpush1.msra.mxu0 0.0
    %3351 = vmatprep.subr.mxu0 0.0
    %3352 = vmatpush1.msra.mxu0 0.0
    %3353 = vmatprep.subr.mxu0 0.0
    %3354 = vmatpush1.msra.mxu0 0.0
    %3355 = vmatprep.subr.mxu0 0.0
    %3356 = vmatpush1.msra.mxu0 0.0
    %3357 = vmatprep.subr.mxu0 0.0
    %3358 = vmatpush1.msra.mxu0 0.0
    %3359 = vmatprep.subr.mxu0 0.0
    %3360 = vmatpush1.msra.mxu0 0.0
    %3361 = vmatprep.subr.mxu0 0.0
    %3362 = vmatpush1.msra.mxu0 0.0
    %3363 = vmatprep.subr.mxu0 0.0
    %3364 = vmatpush1.msra.mxu0 0.0
    %3365 = vmatprep.subr.mxu0 0.0
    %3366 = vmatpush1.msra.mxu0 0.0
    %3367 = vmatprep.subr.mxu0 0.0
    %3368 = vmatpush1.msra.mxu0 0.0
    %3369 = vmatprep.subr.mxu0 0.0
    %3370 = vmatpush1.msra.mxu0 0.0
    %3371 = vmatprep.subr.mxu0 0.0
    %3372 = vmatpush1.msra.mxu0 0.0
    %3373 = vmatprep.subr.mxu0 0.0
    %3374 = vmatpush1.msra.mxu0 0.0
    %3375 = vmatprep.subr.mxu0 0.0
    %3376 = vmatpush1.msra.mxu0 0.0
    %3377 = vmatprep.subr.mxu0 0.0
    %3378 = vmatpush1.msra.mxu0 0.0
    %3379 = vmatprep.subr.mxu0 0.0
    %3380 = vmatpush1.msra.mxu0 0.0
    %3381 = vmatprep.subr.mxu0 0.0
    %3382 = vmatpush1.msra.mxu0 0.0
    %3383 = vmatprep.subr.mxu0 0.0
    %3384 = vmatpush1.msra.mxu0 0.0
    %3385 = vmatprep.mubr.f32.mxu0 0.0
    %3386 = vmatmul.mubr.f32.gmra.mrb[0].mxu0 %v3319
    %v3387 = vpop.f32.mrb[0].mxu0
    %v3388 = vadd.f32 0.0, %v3387
    %v3389 = vpop.f32.mrb[0].mxu0
    %3390 = vdwg.mxu0
    %3391 = vrot.lane.b32.xlu0 %v2285, 48
    %v3392 = vpop.permute.xlu0 %3391
    %v3395 = vsel %vm213, %v3314, 0
    %3397 = vmatprep.subr.mxu0 0.0
    %3398 = vmatpush1.msra.mxu0 %v3392
    %3399 = vmatprep.subr.mxu0 0.0
    %3400 = vmatpush1.msra.mxu0 0.0
    %3401 = vmatprep.subr.mxu0 0.0
    %3402 = vmatpush1.msra.mxu0 0.0
    %3403 = vmatprep.subr.mxu0 0.0
    %3404 = vmatpush1.msra.mxu0 0.0
    %3405 = vmatprep.subr.mxu0 0.0
    %3406 = vmatpush1.msra.mxu0 0.0
    %3407 = vmatprep.subr.mxu0 0.0
    %3408 = vmatpush1.msra.mxu0 0.0
    %3409 = vmatprep.subr.mxu0 0.0
    %3410 = vmatpush1.msra.mxu0 0.0
    %3411 = vmatprep.subr.mxu0 0.0
    %3412 = vmatpush1.msra.mxu0 0.0
    %3413 = vmatprep.subr.mxu0 0.0
    %3414 = vmatpush1.msra.mxu0 0.0
    %3415 = vmatprep.subr.mxu0 0.0
    %3416 = vmatpush1.msra.mxu0 0.0
    %3417 = vmatprep.subr.mxu0 0.0
    %3418 = vmatpush1.msra.mxu0 0.0
    %3419 = vmatprep.subr.mxu0 0.0
    %3420 = vmatpush1.msra.mxu0 0.0
    %3421 = vmatprep.subr.mxu0 0.0
    %3422 = vmatpush1.msra.mxu0 0.0
    %3423 = vmatprep.subr.mxu0 0.0
    %3424 = vmatpush1.msra.mxu0 0.0
    %3425 = vmatprep.subr.mxu0 0.0
    %3426 = vmatpush1.msra.mxu0 0.0
    %3427 = vmatprep.subr.mxu0 0.0
    %3428 = vmatpush1.msra.mxu0 0.0
    %3429 = vmatprep.subr.mxu0 0.0
    %3430 = vmatpush1.msra.mxu0 0.0
    %3431 = vmatprep.subr.mxu0 0.0
    %3432 = vmatpush1.msra.mxu0 0.0
    %3433 = vmatprep.subr.mxu0 0.0
    %3434 = vmatpush1.msra.mxu0 0.0
    %3435 = vmatprep.subr.mxu0 0.0
    %3436 = vmatpush1.msra.mxu0 0.0
    %3437 = vmatprep.subr.mxu0 0.0
    %3438 = vmatpush1.msra.mxu0 0.0
    %3439 = vmatprep.subr.mxu0 0.0
    %3440 = vmatpush1.msra.mxu0 0.0
    %3441 = vmatprep.subr.mxu0 0.0
    %3442 = vmatpush1.msra.mxu0 0.0
    %3443 = vmatprep.subr.mxu0 0.0
    %3444 = vmatpush1.msra.mxu0 0.0
    %3445 = vmatprep.subr.mxu0 0.0
    %3446 = vmatpush1.msra.mxu0 0.0
    %3447 = vmatprep.subr.mxu0 0.0
    %3448 = vmatpush1.msra.mxu0 0.0
    %3449 = vmatprep.subr.mxu0 0.0
    %3450 = vmatpush1.msra.mxu0 0.0
    %3451 = vmatprep.subr.mxu0 0.0
    %3452 = vmatpush1.msra.mxu0 0.0
    %3453 = vmatprep.subr.mxu0 0.0
    %3454 = vmatpush1.msra.mxu0 0.0
    %3455 = vmatprep.subr.mxu0 0.0
    %3456 = vmatpush1.msra.mxu0 0.0
    %3457 = vmatprep.subr.mxu0 0.0
    %3458 = vmatpush1.msra.mxu0 0.0
    %3459 = vmatprep.subr.mxu0 0.0
    %3460 = vmatpush1.msra.mxu0 0.0
    %3461 = vmatprep.mubr.f32.mxu0 0.0
    %3462 = vmatmul.mubr.f32.gmra.mrb[0].mxu0 %v3395
    %v3463 = vpop.f32.mrb[0].mxu0
    %v3464 = vadd.f32 0.0, %v3463
    %v3465 = vpop.f32.mrb[0].mxu0
    %3466 = vdwg.mxu0
    %v3468 = vsel %vm213, %v3388, 0
    %v3471 = vsel %vm213, %v3464, 0
    %3473 = vmatprep.subr.mxu0 0.0
    %3474 = vmatpush1.msra.mxu0 %v2291
    %3475 = vmatprep.subr.mxu0 0.0
    %3476 = vmatpush1.msra.mxu0 0.0
    %3477 = vmatprep.subr.mxu0 0.0
    %3478 = vmatpush1.msra.mxu0 0.0
    %3479 = vmatprep.subr.mxu0 0.0
    %3480 = vmatpush1.msra.mxu0 0.0
    %3481 = vmatprep.subr.mxu0 0.0
    %3482 = vmatpush1.msra.mxu0 0.0
    %3483 = vmatprep.subr.mxu0 0.0
    %3484 = vmatpush1.msra.mxu0 0.0
    %3485 = vmatprep.subr.mxu0 0.0
    %3486 = vmatpush1.msra.mxu0 0.0
    %3487 = vmatprep.subr.mxu0 0.0
    %3488 = vmatpush1.msra.mxu0 0.0
    %3489 = vmatprep.subr.mxu0 0.0
    %3490 = vmatpush1.msra.mxu0 0.0
    %3491 = vmatprep.subr.mxu0 0.0
    %3492 = vmatpush1.msra.mxu0 0.0
    %3493 = vmatprep.subr.mxu0 0.0
    %3494 = vmatpush1.msra.mxu0 0.0
    %3495 = vmatprep.subr.mxu0 0.0
    %3496 = vmatpush1.msra.mxu0 0.0
    %3497 = vmatprep.subr.mxu0 0.0
    %3498 = vmatpush1.msra.mxu0 0.0
    %3499 = vmatprep.subr.mxu0 0.0
    %3500 = vmatpush1.msra.mxu0 0.0
    %3501 = vmatprep.subr.mxu0 0.0
    %3502 = vmatpush1.msra.mxu0 0.0
    %3503 = vmatprep.subr.mxu0 0.0
    %3504 = vmatpush1.msra.mxu0 0.0
    %3505 = vmatprep.subr.mxu0 0.0
    %3506 = vmatpush1.msra.mxu0 0.0
    %3507 = vmatprep.subr.mxu0 0.0
    %3508 = vmatpush1.msra.mxu0 0.0
    %3509 = vmatprep.subr.mxu0 0.0
    %3510 = vmatpush1.msra.mxu0 0.0
    %3511 = vmatprep.subr.mxu0 0.0
    %3512 = vmatpush1.msra.mxu0 0.0
    %3513 = vmatprep.subr.mxu0 0.0
    %3514 = vmatpush1.msra.mxu0 0.0
    %3515 = vmatprep.subr.mxu0 0.0
    %3516 = vmatpush1.msra.mxu0 0.0
    %3517 = vmatprep.subr.mxu0 0.0
    %3518 = vmatpush1.msra.mxu0 0.0
    %3519 = vmatprep.subr.mxu0 0.0
    %3520 = vmatpush1.msra.mxu0 0.0
    %3521 = vmatprep.subr.mxu0 0.0
    %3522 = vmatpush1.msra.mxu0 0.0
    %3523 = vmatprep.subr.mxu0 0.0
    %3524 = vmatpush1.msra.mxu0 0.0
    %3525 = vmatprep.subr.mxu0 0.0
    %3526 = vmatpush1.msra.mxu0 0.0
    %3527 = vmatprep.subr.mxu0 0.0
    %3528 = vmatpush1.msra.mxu0 0.0
    %3529 = vmatprep.subr.mxu0 0.0
    %3530 = vmatpush1.msra.mxu0 0.0
    %3531 = vmatprep.subr.mxu0 0.0
    %3532 = vmatpush1.msra.mxu0 0.0
    %3533 = vmatprep.subr.mxu0 0.0
    %3534 = vmatpush1.msra.mxu0 0.0
    %3535 = vmatprep.subr.mxu0 0.0
    %3536 = vmatpush1.msra.mxu0 0.0
    %3537 = vmatprep.mubr.f32.mxu0 0.0
    %3538 = vmatmul.mubr.f32.gmra.mrb[0].mxu0 %v3468
    %v3539 = vpop.f32.mrb[0].mxu0
    %v3540 = vadd.f32 0.0, %v3539
    %v3541 = vpop.f32.mrb[0].mxu0
    %3542 = vmatprep.mubr.f32.mxu0 0.0
    %3543 = vmatmul.mubr.f32.gmra.mrb[0].mxu0 %v3471
    %v3544 = vpop.f32.mrb[0].mxu0
    %v3545 = vadd.f32 0.0, %v3544
    %v3546 = vpop.f32.mrb[0].mxu0
    %3547 = vdwg.mxu0
    %v3548 = vadd.f32 %v3131, %v3540
    %v3549 = vadd.f32 %v3132, %v3545
    %3550 = vrot.lane.b32.xlu0 %v2280, 104
    %v3551 = vpop.permute.xlu0 %3550
    %3552 = vrot.lane.b32.xlu0 %v2280, 72
    %v3553 = vpop.permute.xlu0 %3552
    %v3554 = vsel %vm213, %v3551, 0
    %v3556 = vsel %vm213, %v3553, 0
    %3558 = vmatprep.subr.mxu0 0.0
    %3559 = vmatpush1.xpose.msra.mxu0 %v3556
    %3560 = vmatprep.subr.mxu0 0.0
    %3561 = vmatpush1.xpose.msra.mxu0 0.0
    %3562 = vmatprep.subr.mxu0 0.0
    %3563 = vmatpush1.xpose.msra.mxu0 0.0
    %3564 = vmatprep.subr.mxu0 0.0
    %3565 = vmatpush1.xpose.msra.mxu0 0.0
    %3566 = vmatprep.subr.mxu0 0.0
    %3567 = vmatpush1.xpose.msra.mxu0 0.0
    %3568 = vmatprep.subr.mxu0 0.0
    %3569 = vmatpush1.xpose.msra.mxu0 0.0
    %3570 = vmatprep.subr.mxu0 0.0
    %3571 = vmatpush1.xpose.msra.mxu0 0.0
    %3572 = vmatprep.subr.mxu0 0.0
    %3573 = vmatpush1.xpose.msra.mxu0 0.0
    %3574 = vmatprep.subr.mxu0 0.0
    %3575 = vmatpush1.xpose.msra.mxu0 0.0
    %3576 = vmatprep.subr.mxu0 0.0
    %3577 = vmatpush1.xpose.msra.mxu0 0.0
    %3578 = vmatprep.subr.mxu0 0.0
    %3579 = vmatpush1.xpose.msra.mxu0 0.0
    %3580 = vmatprep.subr.mxu0 0.0
    %3581 = vmatpush1.xpose.msra.mxu0 0.0
    %3582 = vmatprep.subr.mxu0 0.0
    %3583 = vmatpush1.xpose.msra.mxu0 0.0
    %3584 = vmatprep.subr.mxu0 0.0
    %3585 = vmatpush1.xpose.msra.mxu0 0.0
    %3586 = vmatprep.subr.mxu0 0.0
    %3587 = vmatpush1.xpose.msra.mxu0 0.0
    %3588 = vmatprep.subr.mxu0 0.0
    %3589 = vmatpush1.xpose.msra.mxu0 0.0
    %3590 = vmatprep.subr.mxu0 0.0
    %3591 = vmatpush1.xpose.msra.mxu0 0.0
    %3592 = vmatprep.subr.mxu0 0.0
    %3593 = vmatpush1.xpose.msra.mxu0 0.0
    %3594 = vmatprep.subr.mxu0 0.0
    %3595 = vmatpush1.xpose.msra.mxu0 0.0
    %3596 = vmatprep.subr.mxu0 0.0
    %3597 = vmatpush1.xpose.msra.mxu0 0.0
    %3598 = vmatprep.subr.mxu0 0.0
    %3599 = vmatpush1.xpose.msra.mxu0 0.0
    %3600 = vmatprep.subr.mxu0 0.0
    %3601 = vmatpush1.xpose.msra.mxu0 0.0
    %3602 = vmatprep.subr.mxu0 0.0
    %3603 = vmatpush1.xpose.msra.mxu0 0.0
    %3604 = vmatprep.subr.mxu0 0.0
    %3605 = vmatpush1.xpose.msra.mxu0 0.0
    %3606 = vmatprep.subr.mxu0 0.0
    %3607 = vmatpush1.xpose.msra.mxu0 0.0
    %3608 = vmatprep.subr.mxu0 0.0
    %3609 = vmatpush1.xpose.msra.mxu0 0.0
    %3610 = vmatprep.subr.mxu0 0.0
    %3611 = vmatpush1.xpose.msra.mxu0 0.0
    %3612 = vmatprep.subr.mxu0 0.0
    %3613 = vmatpush1.xpose.msra.mxu0 0.0
    %3614 = vmatprep.subr.mxu0 0.0
    %3615 = vmatpush1.xpose.msra.mxu0 0.0
    %3616 = vmatprep.subr.mxu0 0.0
    %3617 = vmatpush1.xpose.msra.mxu0 0.0
    %3618 = vmatprep.subr.mxu0 0.0
    %3619 = vmatpush1.xpose.msra.mxu0 0.0
    %3620 = vmatprep.subr.mxu0 0.0
    %3621 = vmatpush1.xpose.msra.mxu0 0.0
    %3622 = vmatprep.mubr.f32.mxu0 0.0
    %3623 = vmatmul.mubr.f32.gmra.mrb[0].mxu0 %v3554
    %v3624 = vpop.f32.mrb[0].mxu0
    %v3625 = vadd.f32 0.0, %v3624
    %v3626 = vpop.f32.mrb[0].mxu0
    %3627 = vdwg.mxu0
    %3628 = vrot.lane.b32.xlu0 %v2285, 104
    %v3629 = vpop.permute.xlu0 %3628
    %3630 = vrot.lane.b32.xlu0 %v2285, 72
    %v3631 = vpop.permute.xlu0 %3630
    %v3632 = vsel %vm213, %v3629, 0
    %v3634 = vsel %vm213, %v3631, 0
    %3636 = vmatprep.subr.mxu0 0.0
    %3637 = vmatpush1.xpose.msra.mxu0 %v3634
    %3638 = vmatprep.subr.mxu0 0.0
    %3639 = vmatpush1.xpose.msra.mxu0 0.0
    %3640 = vmatprep.subr.mxu0 0.0
    %3641 = vmatpush1.xpose.msra.mxu0 0.0
    %3642 = vmatprep.subr.mxu0 0.0
    %3643 = vmatpush1.xpose.msra.mxu0 0.0
    %3644 = vmatprep.subr.mxu0 0.0
    %3645 = vmatpush1.xpose.msra.mxu0 0.0
    %3646 = vmatprep.subr.mxu0 0.0
    %3647 = vmatpush1.xpose.msra.mxu0 0.0
    %3648 = vmatprep.subr.mxu0 0.0
    %3649 = vmatpush1.xpose.msra.mxu0 0.0
    %3650 = vmatprep.subr.mxu0 0.0
    %3651 = vmatpush1.xpose.msra.mxu0 0.0
    %3652 = vmatprep.subr.mxu0 0.0
    %3653 = vmatpush1.xpose.msra.mxu0 0.0
    %3654 = vmatprep.subr.mxu0 0.0
    %3655 = vmatpush1.xpose.msra.mxu0 0.0
    %3656 = vmatprep.subr.mxu0 0.0
    %3657 = vmatpush1.xpose.msra.mxu0 0.0
    %3658 = vmatprep.subr.mxu0 0.0
    %3659 = vmatpush1.xpose.msra.mxu0 0.0
    %3660 = vmatprep.subr.mxu0 0.0
    %3661 = vmatpush1.xpose.msra.mxu0 0.0
    %3662 = vmatprep.subr.mxu0 0.0
    %3663 = vmatpush1.xpose.msra.mxu0 0.0
    %3664 = vmatprep.subr.mxu0 0.0
    %3665 = vmatpush1.xpose.msra.mxu0 0.0
    %3666 = vmatprep.subr.mxu0 0.0
    %3667 = vmatpush1.xpose.msra.mxu0 0.0
    %3668 = vmatprep.subr.mxu0 0.0
    %3669 = vmatpush1.xpose.msra.mxu0 0.0
    %3670 = vmatprep.subr.mxu0 0.0
    %3671 = vmatpush1.xpose.msra.mxu0 0.0
    %3672 = vmatprep.subr.mxu0 0.0
    %3673 = vmatpush1.xpose.msra.mxu0 0.0
    %3674 = vmatprep.subr.mxu0 0.0
    %3675 = vmatpush1.xpose.msra.mxu0 0.0
    %3676 = vmatprep.subr.mxu0 0.0
    %3677 = vmatpush1.xpose.msra.mxu0 0.0
    %3678 = vmatprep.subr.mxu0 0.0
    %3679 = vmatpush1.xpose.msra.mxu0 0.0
    %3680 = vmatprep.subr.mxu0 0.0
    %3681 = vmatpush1.xpose.msra.mxu0 0.0
    %3682 = vmatprep.subr.mxu0 0.0
    %3683 = vmatpush1.xpose.msra.mxu0 0.0
    %3684 = vmatprep.subr.mxu0 0.0
    %3685 = vmatpush1.xpose.msra.mxu0 0.0
    %3686 = vmatprep.subr.mxu0 0.0
    %3687 = vmatpush1.xpose.msra.mxu0 0.0
    %3688 = vmatprep.subr.mxu0 0.0
    %3689 = vmatpush1.xpose.msra.mxu0 0.0
    %3690 = vmatprep.subr.mxu0 0.0
    %3691 = vmatpush1.xpose.msra.mxu0 0.0
    %3692 = vmatprep.subr.mxu0 0.0
    %3693 = vmatpush1.xpose.msra.mxu0 0.0
    %3694 = vmatprep.subr.mxu0 0.0
    %3695 = vmatpush1.xpose.msra.mxu0 0.0
    %3696 = vmatprep.subr.mxu0 0.0
    %3697 = vmatpush1.xpose.msra.mxu0 0.0
    %3698 = vmatprep.subr.mxu0 0.0
    %3699 = vmatpush1.xpose.msra.mxu0 0.0
    %3700 = vmatprep.mubr.f32.mxu0 0.0
    %3701 = vmatmul.mubr.f32.gmra.mrb[0].mxu0 %v3632
    %v3702 = vpop.f32.mrb[0].mxu0
    %v3703 = vadd.f32 0.0, %v3702
    %v3704 = vpop.f32.mrb[0].mxu0
    %3705 = vdwg.mxu0
    %v3706 = vmul.f32 %v3625, 0.35355338
    %v3707 = vmul.f32 %v3703, 0.35355338
    %v3708 = vadd.f32 %v3706, %v372
    %v3709 = vadd.f32 %v3707, %v376
    %v3710 = vsel %vm213, %v3708, -inf
    %3711 = vmax.xlane.f32.xlu0 %v3710
    %v3712 = vpop.xlane.xlu0 %3711
    %v3713 = vsel %vm213, %v3709, -inf
    %3714 = vmax.xlane.f32.xlu0 %v3713
    %v3715 = vpop.xlane.xlu0 %3714
    %v3716 = vsub.f32 %v3708, %v3712
    %v3717 = vsub.f32 %v3709, %v3715
    %v3718 = vmul.f32 %v3716, 1.442695
    %v3719 = vpow.pop %v3718
    %v3720 = vmul.f32 %v3717, 1.442695
    %v3721 = vpow.pop %v3720
    %v3722 = vsel %vm213, %v3719, 0.0
    %3723 = vadd.xlane.f32.xlu0 %v3722
    %v3724 = vpop.xlane.xlu0 %3723
    %v3725 = vsel %vm213, %v3721, 0.0
    %3726 = vadd.xlane.f32.xlu0 %v3725
    %v3727 = vpop.xlane.xlu0 %3726
    %v3728 = vrcp.pop %v3724
    %v3729 = vrcp.pop %v3727
    %v3730 = vmul.f32 %v3719, %v3728
    %v3731 = vmul.f32 %v3721, %v3729
    %3732 = vrot.lane.b32.xlu0 %v2280, 40
    %v3733 = vpop.permute.xlu0 %3732
    %v3736 = vsel %vm213, %v3730, 0
    %3738 = vmatprep.subr.mxu0 0.0
    %3739 = vmatpush1.msra.mxu0 %v3733
    %3740 = vmatprep.subr.mxu0 0.0
    %3741 = vmatpush1.msra.mxu0 0.0
    %3742 = vmatprep.subr.mxu0 0.0
    %3743 = vmatpush1.msra.mxu0 0.0
    %3744 = vmatprep.subr.mxu0 0.0
    %3745 = vmatpush1.msra.mxu0 0.0
    %3746 = vmatprep.subr.mxu0 0.0
    %3747 = vmatpush1.msra.mxu0 0.0
    %3748 = vmatprep.subr.mxu0 0.0
    %3749 = vmatpush1.msra.mxu0 0.0
    %3750 = vmatprep.subr.mxu0 0.0
    %3751 = vmatpush1.msra.mxu0 0.0
    %3752 = vmatprep.subr.mxu0 0.0
    %3753 = vmatpush1.msra.mxu0 0.0
    %3754 = vmatprep.subr.mxu0 0.0
    %3755 = vmatpush1.msra.mxu0 0.0
    %3756 = vmatprep.subr.mxu0 0.0
    %3757 = vmatpush1.msra.mxu0 0.0
    %3758 = vmatprep.subr.mxu0 0.0
    %3759 = vmatpush1.msra.mxu0 0.0
    %3760 = vmatprep.subr.mxu0 0.0
    %3761 = vmatpush1.msra.mxu0 0.0
    %3762 = vmatprep.subr.mxu0 0.0
    %3763 = vmatpush1.msra.mxu0 0.0
    %3764 = vmatprep.subr.mxu0 0.0
    %3765 = vmatpush1.msra.mxu0 0.0
    %3766 = vmatprep.subr.mxu0 0.0
    %3767 = vmatpush1.msra.mxu0 0.0
    %3768 = vmatprep.subr.mxu0 0.0
    %3769 = vmatpush1.msra.mxu0 0.0
    %3770 = vmatprep.subr.mxu0 0.0
    %3771 = vmatpush1.msra.mxu0 0.0
    %3772 = vmatprep.subr.mxu0 0.0
    %3773 = vmatpush1.msra.mxu0 0.0
    %3774 = vmatprep.subr.mxu0 0.0
    %3775 = vmatpush1.msra.mxu0 0.0
    %3776 = vmatprep.subr.mxu0 0.0
    %3777 = vmatpush1.msra.mxu0 0.0
    %3778 = vmatprep.subr.mxu0 0.0
    %3779 = vmatpush1.msra.mxu0 0.0
    %3780 = vmatprep.subr.mxu0 0.0
    %3781 = vmatpush1.msra.mxu0 0.0
    %3782 = vmatprep.subr.mxu0 0.0
    %3783 = vmatpush1.msra.mxu0 0.0
    %3784 = vmatprep.subr.mxu0 0.0
    %3785 = vmatpush1.msra.mxu0 0.0
    %3786 = vmatprep.subr.mxu0 0.0
    %3787 = vmatpush1.msra.mxu0 0.0
    %3788 = vmatprep.subr.mxu0 0.0
    %3789 = vmatpush1.msra.mxu0 0.0
    %3790 = vmatprep.subr.mxu0 0.0
    %3791 = vmatpush1.msra.mxu0 0.0
    %3792 = vmatprep.subr.mxu0 0.0
    %3793 = vmatpush1.msra.mxu0 0.0
    %3794 = vmatprep.subr.mxu0 0.0
    %3795 = vmatpush1.msra.mxu0 0.0
    %3796 = vmatprep.subr.mxu0 0.0
    %3797 = vmatpush1.msra.mxu0 0.0
    %3798 = vmatprep.subr.mxu0 0.0
    %3799 = vmatpush1.msra.mxu0 0.0
    %3800 = vmatprep.subr.mxu0 0.0
    %3801 = vmatpush1.msra.mxu0 0.0
    %3802 = vmatprep.mubr.f32.mxu0 0.0
    %3803 = vmatmul.mubr.f32.gmra.mrb[0].mxu0 %v3736
    %v3804 = vpop.f32.mrb[0].mxu0
    %v3805 = vadd.f32 0.0, %v3804
    %v3806 = vpop.f32.mrb[0].mxu0
    %3807 = vdwg.mxu0
    %3808 = vrot.lane.b32.xlu0 %v2285, 40
    %v3809 = vpop.permute.xlu0 %3808
    %v3812 = vsel %vm213, %v3731, 0
    %3814 = vmatprep.subr.mxu0 0.0
    %3815 = vmatpush1.msra.mxu0 %v3809
    %3816 = vmatprep.subr.mxu0 0.0
    %3817 = vmatpush1.msra.mxu0 0.0
    %3818 = vmatprep.subr.mxu0 0.0
    %3819 = vmatpush1.msra.mxu0 0.0
    %3820 = vmatprep.subr.mxu0 0.0
    %3821 = vmatpush1.msra.mxu0 0.0
    %3822 = vmatprep.subr.mxu0 0.0
    %3823 = vmatpush1.msra.mxu0 0.0
    %3824 = vmatprep.subr.mxu0 0.0
    %3825 = vmatpush1.msra.mxu0 0.0
    %3826 = vmatprep.subr.mxu0 0.0
    %3827 = vmatpush1.msra.mxu0 0.0
    %3828 = vmatprep.subr.mxu0 0.0
    %3829 = vmatpush1.msra.mxu0 0.0
    %3830 = vmatprep.subr.mxu0 0.0
    %3831 = vmatpush1.msra.mxu0 0.0
    %3832 = vmatprep.subr.mxu0 0.0
    %3833 = vmatpush1.msra.mxu0 0.0
    %3834 = vmatprep.subr.mxu0 0.0
    %3835 = vmatpush1.msra.mxu0 0.0
    %3836 = vmatprep.subr.mxu0 0.0
    %3837 = vmatpush1.msra.mxu0 0.0
    %3838 = vmatprep.subr.mxu0 0.0
    %3839 = vmatpush1.msra.mxu0 0.0
    %3840 = vmatprep.subr.mxu0 0.0
    %3841 = vmatpush1.msra.mxu0 0.0
    %3842 = vmatprep.subr.mxu0 0.0
    %3843 = vmatpush1.msra.mxu0 0.0
    %3844 = vmatprep.subr.mxu0 0.0
    %3845 = vmatpush1.msra.mxu0 0.0
    %3846 = vmatprep.subr.mxu0 0.0
    %3847 = vmatpush1.msra.mxu0 0.0
    %3848 = vmatprep.subr.mxu0 0.0
    %3849 = vmatpush1.msra.mxu0 0.0
    %3850 = vmatprep.subr.mxu0 0.0
    %3851 = vmatpush1.msra.mxu0 0.0
    %3852 = vmatprep.subr.mxu0 0.0
    %3853 = vmatpush1.msra.mxu0 0.0
    %3854 = vmatprep.subr.mxu0 0.0
    %3855 = vmatpush1.msra.mxu0 0.0
    %3856 = vmatprep.subr.mxu0 0.0
    %3857 = vmatpush1.msra.mxu0 0.0
    %3858 = vmatprep.subr.mxu0 0.0
    %3859 = vmatpush1.msra.mxu0 0.0
    %3860 = vmatprep.subr.mxu0 0.0
    %3861 = vmatpush1.msra.mxu0 0.0
    %3862 = vmatprep.subr.mxu0 0.0
    %3863 = vmatpush1.msra.mxu0 0.0
    %3864 = vmatprep.subr.mxu0 0.0
    %3865 = vmatpush1.msra.mxu0 0.0
    %3866 = vmatprep.subr.mxu0 0.0
    %3867 = vmatpush1.msra.mxu0 0.0
    %3868 = vmatprep.subr.mxu0 0.0
    %3869 = vmatpush1.msra.mxu0 0.0
    %3870 = vmatprep.subr.mxu0 0.0
    %3871 = vmatpush1.msra.mxu0 0.0
    %3872 = vmatprep.subr.mxu0 0.0
    %3873 = vmatpush1.msra.mxu0 0.0
    %3874 = vmatprep.subr.mxu0 0.0
    %3875 = vmatpush1.msra.mxu0 0.0
    %3876 = vmatprep.subr.mxu0 0.0
    %3877 = vmatpush1.msra.mxu0 0.0
    %3878 = vmatprep.mubr.f32.mxu0 0.0
    %3879 = vmatmul.mubr.f32.gmra.mrb[0].mxu0 %v3812
    %v3880 = vpop.f32.mrb[0].mxu0
    %v3881 = vadd.f32 0.0, %v3880
    %v3882 = vpop.f32.mrb[0].mxu0
    %3883 = vdwg.mxu0
    %v3885 = vsel %vm213, %v3805, 0
    %v3888 = vsel %vm213, %v3881, 0
    %3890 = vmatprep.subr.mxu0 0.0
    %3891 = vmatpush1.msra.mxu0 %v2292
    %3892 = vmatprep.subr.mxu0 0.0
    %3893 = vmatpush1.msra.mxu0 0.0
    %3894 = vmatprep.subr.mxu0 0.0
    %3895 = vmatpush1.msra.mxu0 0.0
    %3896 = vmatprep.subr.mxu0 0.0
    %3897 = vmatpush1.msra.mxu0 0.0
    %3898 = vmatprep.subr.mxu0 0.0
    %3899 = vmatpush1.msra.mxu0 0.0
    %3900 = vmatprep.subr.mxu0 0.0
    %3901 = vmatpush1.msra.mxu0 0.0
    %3902 = vmatprep.subr.mxu0 0.0
    %3903 = vmatpush1.msra.mxu0 0.0
    %3904 = vmatprep.subr.mxu0 0.0
    %3905 = vmatpush1.msra.mxu0 0.0
    %3906 = vmatprep.subr.mxu0 0.0
    %3907 = vmatpush1.msra.mxu0 0.0
    %3908 = vmatprep.subr.mxu0 0.0
    %3909 = vmatpush1.msra.mxu0 0.0
    %3910 = vmatprep.subr.mxu0 0.0
    %3911 = vmatpush1.msra.mxu0 0.0
    %3912 = vmatprep.subr.mxu0 0.0
    %3913 = vmatpush1.msra.mxu0 0.0
    %3914 = vmatprep.subr.mxu0 0.0
    %3915 = vmatpush1.msra.mxu0 0.0
    %3916 = vmatprep.subr.mxu0 0.0
    %3917 = vmatpush1.msra.mxu0 0.0
    %3918 = vmatprep.subr.mxu0 0.0
    %3919 = vmatpush1.msra.mxu0 0.0
    %3920 = vmatprep.subr.mxu0 0.0
    %3921 = vmatpush1.msra.mxu0 0.0
    %3922 = vmatprep.subr.mxu0 0.0
    %3923 = vmatpush1.msra.mxu0 0.0
    %3924 = vmatprep.subr.mxu0 0.0
    %3925 = vmatpush1.msra.mxu0 0.0
    %3926 = vmatprep.subr.mxu0 0.0
    %3927 = vmatpush1.msra.mxu0 0.0
    %3928 = vmatprep.subr.mxu0 0.0
    %3929 = vmatpush1.msra.mxu0 0.0
    %3930 = vmatprep.subr.mxu0 0.0
    %3931 = vmatpush1.msra.mxu0 0.0
    %3932 = vmatprep.subr.mxu0 0.0
    %3933 = vmatpush1.msra.mxu0 0.0
    %3934 = vmatprep.subr.mxu0 0.0
    %3935 = vmatpush1.msra.mxu0 0.0
    %3936 = vmatprep.subr.mxu0 0.0
    %3937 = vmatpush1.msra.mxu0 0.0
    %3938 = vmatprep.subr.mxu0 0.0
    %3939 = vmatpush1.msra.mxu0 0.0
    %3940 = vmatprep.subr.mxu0 0.0
    %3941 = vmatpush1.msra.mxu0 0.0
    %3942 = vmatprep.subr.mxu0 0.0
    %3943 = vmatpush1.msra.mxu0 0.0
    %3944 = vmatprep.subr.mxu0 0.0
    %3945 = vmatpush1.msra.mxu0 0.0
    %3946 = vmatprep.subr.mxu0 0.0
    %3947 = vmatpush1.msra.mxu0 0.0
    %3948 = vmatprep.subr.mxu0 0.0
    %3949 = vmatpush1.msra.mxu0 0.0
    %3950 = vmatprep.subr.mxu0 0.0
    %3951 = vmatpush1.msra.mxu0 0.0
    %3952 = vmatprep.subr.mxu0 0.0
    %3953 = vmatpush1.msra.mxu0 0.0
    %3954 = vmatprep.mubr.f32.mxu0 0.0
    %3955 = vmatmul.mubr.f32.gmra.mrb[0].mxu0 %v3885
    %v3956 = vpop.f32.mrb[0].mxu0
    %v3957 = vadd.f32 0.0, %v3956
    %v3958 = vpop.f32.mrb[0].mxu0
    %3959 = vmatprep.mubr.f32.mxu0 0.0
    %3960 = vmatmul.mubr.f32.gmra.mrb[0].mxu0 %v3888
    %v3961 = vpop.f32.mrb[0].mxu0
    %v3962 = vadd.f32 0.0, %v3961
    %v3963 = vpop.f32.mrb[0].mxu0
    %3964 = vdwg.mxu0
    %v3965 = vadd.f32 %v3548, %v3957
    %v3966 = vadd.f32 %v3549, %v3962
    %v3967 = vadd.f32 %v3965, %v2192
    %v3968 = vadd.f32 %v3966, %v2193
    %s3969 = scalar_lea.vmem %s8, 1
    %v3970 = vld [vmem:[%s3969] sm:$0x1]
    %s3971 = scalar_lea.vmem %s9, 1
    %v3972 = vld [vmem:[%s3971] sm:$0x1]
    %v3973 = vsel %vm69, %v3967, 0.0
    %3974 = vadd.xlane.f32.xlu0 %v3973
    %v3975 = vpop.xlane.xlu0 %3974
    %v3976 = vsel %vm69, %v3968, 0.0
    %3977 = vadd.xlane.f32.xlu0 %v3976
    %v3978 = vpop.xlane.xlu0 %3977
    %v3979 = vmul.f32 %v3975, %v76
    %v3980 = vmul.f32 %v3978, %v76
    %v3981 = vsub.f32 %v3967, %v3979
    %v3982 = vsub.f32 %v3968, %v3980
    %v3983 = vmul.f32 %v3981, %v3981
    %v3984 = vmul.f32 %v3982, %v3982
    %v3985 = vsel %vm69, %v3983, 0.0
    %3986 = vadd.xlane.f32.xlu0 %v3985
    %v3987 = vpop.xlane.xlu0 %3986
    %v3988 = vsel %vm69, %v3984, 0.0
    %3989 = vadd.xlane.f32.xlu0 %v3988
    %v3990 = vpop.xlane.xlu0 %3989
    %v3991 = vmul.f32 %v3987, %v76
    %v3992 = vmul.f32 %v3990, %v76
    %v3993 = vadd.f32 %v3991, 1e-05
    %v3994 = vadd.f32 %v3992, 1e-05
    %v3995 = vrsqrt.pop %v3993
    %v3996 = vrsqrt.pop %v3994
    %v3997 = vmul.f32 %v3981, %v3995
    %v3998 = vmul.f32 %v3982, %v3996
    %v4000 = vlaneseq
    %v4001 = vshrl.u32 %v4000, 7
    %v4002 = vsub.s32 0, %v4001
    %v4003 = vrot.slane %v3970, %v4002
    %v4005 = vmul.f32 %v3997, %v4003
    %v4006 = vmul.f32 %v3998, %v4003
    %v4008 = vlaneseq
    %v4009 = vshrl.u32 %v4008, 7
    %v4010 = vsub.s32 0, %v4009
    %v4011 = vrot.slane %v3972, %v4010
    %v4013 = vadd.f32 %v4005, %v4011
    %v4014 = vadd.f32 %v4006, %v4011
    %s4015 = scalar_lea.vmem %s10, 32
    %v4016 = vld [vmem:[%s4015] sm:$0xff]
    %v4017 = vld [vmem:[%s4015 + $0x8] sm:$0xff]
    %v4018 = vld [vmem:[%s4015 + $0x10] sm:$0xff]
    %v4019 = vld [vmem:[%s4015 + $0x18] sm:$0xff]
    %s4020 = scalar_lea.vmem %s11, 1
    %v4021 = vld [vmem:[%s4020] sm:$0x1]
    %v4023 = vlaneseq
    %v4024 = vshrl.u32 %v4023, 7
    %v4025 = vsub.s32 0, %v4024
    %v4026 = vrot.slane %v4021, %v4025
    %v4029 = vsel %vm69, %v4013, 0
    %v4032 = vsel %vm69, %v4014, 0
    %4034 = vmatprep.subr.mxu0 0.0
    %4035 = vmatpush1.msra.mxu0 %v4016
    %4036 = vmatprep.subr.mxu0 0.0
    %4037 = vmatpush1.msra.mxu0 %v4017
    %4038 = vmatprep.subr.mxu0 0.0
    %4039 = vmatpush1.msra.mxu0 %v4018
    %4040 = vmatprep.subr.mxu0 0.0
    %4041 = vmatpush1.msra.mxu0 %v4019
    %4042 = vmatprep.subr.mxu0 0.0
    %4043 = vmatpush1.msra.mxu0 0.0
    %4044 = vmatprep.subr.mxu0 0.0
    %4045 = vmatpush1.msra.mxu0 0.0
    %4046 = vmatprep.subr.mxu0 0.0
    %4047 = vmatpush1.msra.mxu0 0.0
    %4048 = vmatprep.subr.mxu0 0.0
    %4049 = vmatpush1.msra.mxu0 0.0
    %4050 = vmatprep.subr.mxu0 0.0
    %4051 = vmatpush1.msra.mxu0 0.0
    %4052 = vmatprep.subr.mxu0 0.0
    %4053 = vmatpush1.msra.mxu0 0.0
    %4054 = vmatprep.subr.mxu0 0.0
    %4055 = vmatpush1.msra.mxu0 0.0
    %4056 = vmatprep.subr.mxu0 0.0
    %4057 = vmatpush1.msra.mxu0 0.0
    %4058 = vmatprep.subr.mxu0 0.0
    %4059 = vmatpush1.msra.mxu0 0.0
    %4060 = vmatprep.subr.mxu0 0.0
    %4061 = vmatpush1.msra.mxu0 0.0
    %4062 = vmatprep.subr.mxu0 0.0
    %4063 = vmatpush1.msra.mxu0 0.0
    %4064 = vmatprep.subr.mxu0 0.0
    %4065 = vmatpush1.msra.mxu0 0.0
    %4066 = vmatprep.subr.mxu0 0.0
    %4067 = vmatpush1.msra.mxu0 0.0
    %4068 = vmatprep.subr.mxu0 0.0
    %4069 = vmatpush1.msra.mxu0 0.0
    %4070 = vmatprep.subr.mxu0 0.0
    %4071 = vmatpush1.msra.mxu0 0.0
    %4072 = vmatprep.subr.mxu0 0.0
    %4073 = vmatpush1.msra.mxu0 0.0
    %4074 = vmatprep.subr.mxu0 0.0
    %4075 = vmatpush1.msra.mxu0 0.0
    %4076 = vmatprep.subr.mxu0 0.0
    %4077 = vmatpush1.msra.mxu0 0.0
    %4078 = vmatprep.subr.mxu0 0.0
    %4079 = vmatpush1.msra.mxu0 0.0
    %4080 = vmatprep.subr.mxu0 0.0
    %4081 = vmatpush1.msra.mxu0 0.0
    %4082 = vmatprep.subr.mxu0 0.0
    %4083 = vmatpush1.msra.mxu0 0.0
    %4084 = vmatprep.subr.mxu0 0.0
    %4085 = vmatpush1.msra.mxu0 0.0
    %4086 = vmatprep.subr.mxu0 0.0
    %4087 = vmatpush1.msra.mxu0 0.0
    %4088 = vmatprep.subr.mxu0 0.0
    %4089 = vmatpush1.msra.mxu0 0.0
    %4090 = vmatprep.subr.mxu0 0.0
    %4091 = vmatpush1.msra.mxu0 0.0
    %4092 = vmatprep.subr.mxu0 0.0
    %4093 = vmatpush1.msra.mxu0 0.0
    %4094 = vmatprep.subr.mxu0 0.0
    %4095 = vmatpush1.msra.mxu0 0.0
    %4096 = vmatprep.subr.mxu0 0.0
    %4097 = vmatpush1.msra.mxu0 0.0
    %4098 = vmatprep.mubr.f32.mxu0 0.0
    %4099 = vmatmul.mubr.f32.gmra.mrb[0].mxu0 %v4029
    %v4100 = vpop.f32.mrb[0].mxu0
    %v4101 = vadd.f32 %v4026, %v4100
    %v4102 = vpop.f32.mrb[0].mxu0
    %4103 = vmatprep.mubr.f32.mxu0 0.0
    %4104 = vmatmul.mubr.f32.gmra.mrb[0].mxu0 %v4032
    %v4105 = vpop.f32.mrb[0].mxu0
    %v4106 = vadd.f32 %v4026, %v4105
    %v4107 = vpop.f32.mrb[0].mxu0
    %4108 = vdwg.mxu0
    %v4109 = vmul.f32 %v4101, 0.5
    %v4110 = vmul.f32 %v4106, 0.5
    %v4111 = vmul.f32 %v4101, 0.044715
    %v4112 = vmul.f32 %v4106, 0.044715
    %v4113 = vmul.f32 %v4111, %v4101
    %v4114 = vmul.f32 %v4112, %v4106
    %v4115 = vmul.f32 %v4113, %v4101
    %v4116 = vmul.f32 %v4114, %v4106
    %v4117 = vadd.f32 %v4101, %v4115
    %v4118 = vadd.f32 %v4106, %v4116
    %v4119 = vmul.f32 %v4117, 0.7978846
    %v4120 = vmul.f32 %v4118, 0.7978846
    %v4121 = vtanh.pop %v4119
    %v4122 = vtanh.pop %v4120
    %v4123 = vadd.f32 %v4121, 1.0
    %v4124 = vadd.f32 %v4122, 1.0
    %v4125 = vmul.f32 %v4109, %v4123
    %v4126 = vmul.f32 %v4110, %v4124
    %s4127 = scalar_lea.vmem %s12, 64
    %v4128 = vld [vmem:[%s4127] sm:$0xff]
    %v4129 = vld [vmem:[%s4127 + $0x8] sm:$0xff]
    %v4130 = vld [vmem:[%s4127 + $0x10] sm:$0xff]
    %v4131 = vld [vmem:[%s4127 + $0x18] sm:$0xff]
    %v4132 = vld [vmem:[%s4127 + $0x20] sm:$0xff]
    %v4133 = vld [vmem:[%s4127 + $0x28] sm:$0xff]
    %v4134 = vld [vmem:[%s4127 + $0x30] sm:$0xff]
    %v4135 = vld [vmem:[%s4127 + $0x38] sm:$0xff]
    %s4136 = scalar_lea.vmem %s13, 1
    %v4137 = vld [vmem:[%s4136] sm:$0x1]
    %v4139 = vlaneseq
    %v4140 = vshrl.u32 %v4139, 7
    %v4141 = vsub.s32 0, %v4140
    %v4142 = vrot.slane %v4137, %v4141
    %v4145 = vsel %vm2066, %v4125, 0
    %v4148 = vsel %vm2066, %v4126, 0
    %4150 = vmatprep.subr.mxu0 0.0
    %4151 = vmatpush1.msra.mxu0 %v4128
    %4152 = vmatprep.subr.mxu0 0.0
    %4153 = vmatpush1.msra.mxu0 %v4129
    %4154 = vmatprep.subr.mxu0 0.0
    %4155 = vmatpush1.msra.mxu0 %v4130
    %4156 = vmatprep.subr.mxu0 0.0
    %4157 = vmatpush1.msra.mxu0 %v4131
    %4158 = vmatprep.subr.mxu0 0.0
    %4159 = vmatpush1.msra.mxu0 %v4132
    %4160 = vmatprep.subr.mxu0 0.0
    %4161 = vmatpush1.msra.mxu0 %v4133
    %4162 = vmatprep.subr.mxu0 0.0
    %4163 = vmatpush1.msra.mxu0 %v4134
    %4164 = vmatprep.subr.mxu0 0.0
    %4165 = vmatpush1.msra.mxu0 %v4135
    %4166 = vmatprep.subr.mxu0 0.0
    %4167 = vmatpush1.msra.mxu0 0.0
    %4168 = vmatprep.subr.mxu0 0.0
    %4169 = vmatpush1.msra.mxu0 0.0
    %4170 = vmatprep.subr.mxu0 0.0
    %4171 = vmatpush1.msra.mxu0 0.0
    %4172 = vmatprep.subr.mxu0 0.0
    %4173 = vmatpush1.msra.mxu0 0.0
    %4174 = vmatprep.subr.mxu0 0.0
    %4175 = vmatpush1.msra.mxu0 0.0
    %4176 = vmatprep.subr.mxu0 0.0
    %4177 = vmatpush1.msra.mxu0 0.0
    %4178 = vmatprep.subr.mxu0 0.0
    %4179 = vmatpush1.msra.mxu0 0.0
    %4180 = vmatprep.subr.mxu0 0.0
    %4181 = vmatpush1.msra.mxu0 0.0
    %4182 = vmatprep.subr.mxu0 0.0
    %4183 = vmatpush1.msra.mxu0 0.0
    %4184 = vmatprep.subr.mxu0 0.0
    %4185 = vmatpush1.msra.mxu0 0.0
    %4186 = vmatprep.subr.mxu0 0.0
    %4187 = vmatpush1.msra.mxu0 0.0
    %4188 = vmatprep.subr.mxu0 0.0
    %4189 = vmatpush1.msra.mxu0 0.0
    %4190 = vmatprep.subr.mxu0 0.0
    %4191 = vmatpush1.msra.mxu0 0.0
    %4192 = vmatprep.subr.mxu0 0.0
    %4193 = vmatpush1.msra.mxu0 0.0
    %4194 = vmatprep.subr.mxu0 0.0
    %4195 = vmatpush1.msra.mxu0 0.0
    %4196 = vmatprep.subr.mxu0 0.0
    %4197 = vmatpush1.msra.mxu0 0.0
    %4198 = vmatprep.subr.mxu0 0.0
    %4199 = vmatpush1.msra.mxu0 0.0
    %4200 = vmatprep.subr.mxu0 0.0
    %4201 = vmatpush1.msra.mxu0 0.0
    %4202 = vmatprep.subr.mxu0 0.0
    %4203 = vmatpush1.msra.mxu0 0.0
    %4204 = vmatprep.subr.mxu0 0.0
    %4205 = vmatpush1.msra.mxu0 0.0
    %4206 = vmatprep.subr.mxu0 0.0
    %4207 = vmatpush1.msra.mxu0 0.0
    %4208 = vmatprep.subr.mxu0 0.0
    %4209 = vmatpush1.msra.mxu0 0.0
    %4210 = vmatprep.subr.mxu0 0.0
    %4211 = vmatpush1.msra.mxu0 0.0
    %4212 = vmatprep.subr.mxu0 0.0
    %4213 = vmatpush1.msra.mxu0 0.0
    %4214 = vmatprep.mubr.f32.mxu0 0.0
    %4215 = vmatmul.mubr.f32.gmra.mrb[0].mxu0 %v4145
    %v4216 = vpop.f32.mrb[0].mxu0
    %v4217 = vadd.f32 %v4142, %v4216
    %v4218 = vpop.f32.mrb[0].mxu0
    %4219 = vmatprep.mubr.f32.mxu0 0.0
    %4220 = vmatmul.mubr.f32.gmra.mrb[0].mxu0 %v4148
    %v4221 = vpop.f32.mrb[0].mxu0
    %v4222 = vadd.f32 %v4142, %v4221
    %v4223 = vpop.f32.mrb[0].mxu0
    %4224 = vdwg.mxu0
    %v4225 = vadd.f32 %v4217, %v4013
    %v4226 = vadd.f32 %v4222, %v4014
    %s4227 = scalar_lea.vmem %s14, 1
    %v4228 = vld [vmem:[%s4227] sm:$0x1]
    %s4229 = scalar_lea.vmem %s15, 1
    %v4230 = vld [vmem:[%s4229] sm:$0x1]
    %v4231 = vsel %vm69, %v4225, 0.0
    %4232 = vadd.xlane.f32.xlu0 %v4231
    %v4233 = vpop.xlane.xlu0 %4232
    %v4234 = vsel %vm69, %v4226, 0.0
    %4235 = vadd.xlane.f32.xlu0 %v4234
    %v4236 = vpop.xlane.xlu0 %4235
    %v4237 = vmul.f32 %v4233, %v76
    %v4238 = vmul.f32 %v4236, %v76
    %v4239 = vsub.f32 %v4225, %v4237
    %v4240 = vsub.f32 %v4226, %v4238
    %v4241 = vmul.f32 %v4239, %v4239
    %v4242 = vmul.f32 %v4240, %v4240
    %v4243 = vsel %vm69, %v4241, 0.0
    %4244 = vadd.xlane.f32.xlu0 %v4243
    %v4245 = vpop.xlane.xlu0 %4244
    %v4246 = vsel %vm69, %v4242, 0.0
    %4247 = vadd.xlane.f32.xlu0 %v4246
    %v4248 = vpop.xlane.xlu0 %4247
    %v4249 = vmul.f32 %v4245, %v76
    %v4250 = vmul.f32 %v4248, %v76
    %v4251 = vadd.f32 %v4249, 1e-05
    %v4252 = vadd.f32 %v4250, 1e-05
    %v4253 = vrsqrt.pop %v4251
    %v4254 = vrsqrt.pop %v4252
    %v4255 = vmul.f32 %v4239, %v4253
    %v4256 = vmul.f32 %v4240, %v4254
    %v4258 = vlaneseq
    %v4259 = vshrl.u32 %v4258, 7
    %v4260 = vsub.s32 0, %v4259
    %v4261 = vrot.slane %v4228, %v4260
    %v4263 = vmul.f32 %v4255, %v4261
    %v4264 = vmul.f32 %v4256, %v4261
    %v4266 = vlaneseq
    %v4267 = vshrl.u32 %v4266, 7
    %v4268 = vsub.s32 0, %v4267
    %v4269 = vrot.slane %v4230, %v4268
    %v4271 = vadd.f32 %v4263, %v4269
    %v4272 = vadd.f32 %v4264, %v4269
    %4273 = vst.msk [vmem:[#allocation2] sm:$0xff] %vm69, %v4271
    %4274 = vst.msk [vmem:[#allocation2 + $0x8] sm:$0xff] %vm69, %v4272
    %v4276 = vrot.slane %v4272, 7
    %vm4278 = vcmask 1040384
    %v4279 = vsel %vm4278, %v4271, %v4276
    %v4280 = vld [vmem:[%s16] sm:$0xff]
    %v4281 = vld [vmem:[%s16 + $0x8] sm:$0xff]
    %v4282 = vld [vmem:[%s16 + $0x10] sm:$0xff]
    %v4283 = vld [vmem:[%s16 + $0x18] sm:$0xff]
    %v4284 = vld [vmem:[%s17] sm:$0x1]
    %v4286 = vlaneseq
    %v4287 = vshrl.u32 %v4286, 7
    %v4288 = vsub.s32 0, %v4287
    %v4289 = vrot.slane %v4284, %v4288
    %v4292 = vsel %vm69, %v4279, 0
    %4294 = vmatprep.subr.mxu0 0.0
    %4295 = vmatpush1.msra.mxu0 %v4280
    %4296 = vmatprep.subr.mxu0 0.0
    %4297 = vmatpush1.msra.mxu0 %v4281
    %4298 = vmatprep.subr.mxu0 0.0
    %4299 = vmatpush1.msra.mxu0 %v4282
    %4300 = vmatprep.subr.mxu0 0.0
    %4301 = vmatpush1.msra.mxu0 %v4283
    %4302 = vmatprep.subr.mxu0 0.0
    %4303 = vmatpush1.msra.mxu0 0.0
    %4304 = vmatprep.subr.mxu0 0.0
    %4305 = vmatpush1.msra.mxu0 0.0
    %4306 = vmatprep.subr.mxu0 0.0
    %4307 = vmatpush1.msra.mxu0 0.0
    %4308 = vmatprep.subr.mxu0 0.0
    %4309 = vmatpush1.msra.mxu0 0.0
    %4310 = vmatprep.subr.mxu0 0.0
    %4311 = vmatpush1.msra.mxu0 0.0
    %4312 = vmatprep.subr.mxu0 0.0
    %4313 = vmatpush1.msra.mxu0 0.0
    %4314 = vmatprep.subr.mxu0 0.0
    %4315 = vmatpush1.msra.mxu0 0.0
    %4316 = vmatprep.subr.mxu0 0.0
    %4317 = vmatpush1.msra.mxu0 0.0
    %4318 = vmatprep.subr.mxu0 0.0
    %4319 = vmatpush1.msra.mxu0 0.0
    %4320 = vmatprep.subr.mxu0 0.0
    %4321 = vmatpush1.msra.mxu0 0.0
    %4322 = vmatprep.subr.mxu0 0.0
    %4323 = vmatpush1.msra.mxu0 0.0
    %4324 = vmatprep.subr.mxu0 0.0
    %4325 = vmatpush1.msra.mxu0 0.0
    %4326 = vmatprep.subr.mxu0 0.0
    %4327 = vmatpush1.msra.mxu0 0.0
    %4328 = vmatprep.subr.mxu0 0.0
    %4329 = vmatpush1.msra.mxu0 0.0
    %4330 = vmatprep.subr.mxu0 0.0
    %4331 = vmatpush1.msra.mxu0 0.0
    %4332 = vmatprep.subr.mxu0 0.0
    %4333 = vmatpush1.msra.mxu0 0.0
    %4334 = vmatprep.subr.mxu0 0.0
    %4335 = vmatpush1.msra.mxu0 0.0
    %4336 = vmatprep.subr.mxu0 0.0
    %4337 = vmatpush1.msra.mxu0 0.0
    %4338 = vmatprep.subr.mxu0 0.0
    %4339 = vmatpush1.msra.mxu0 0.0
    %4340 = vmatprep.subr.mxu0 0.0
    %4341 = vmatpush1.msra.mxu0 0.0
    %4342 = vmatprep.subr.mxu0 0.0
    %4343 = vmatpush1.msra.mxu0 0.0
    %4344 = vmatprep.subr.mxu0 0.0
    %4345 = vmatpush1.msra.mxu0 0.0
    %4346 = vmatprep.subr.mxu0 0.0
    %4347 = vmatpush1.msra.mxu0 0.0
    %4348 = vmatprep.subr.mxu0 0.0
    %4349 = vmatpush1.msra.mxu0 0.0
    %4350 = vmatprep.subr.mxu0 0.0
    %4351 = vmatpush1.msra.mxu0 0.0
    %4352 = vmatprep.subr.mxu0 0.0
    %4353 = vmatpush1.msra.mxu0 0.0
    %4354 = vmatprep.subr.mxu0 0.0
    %4355 = vmatpush1.msra.mxu0 0.0
    %4356 = vmatprep.subr.mxu0 0.0
    %4357 = vmatpush1.msra.mxu0 0.0
    %4358 = vmatprep.mubr.f32.mxu0 0.0
    %4359 = vmatmul.mubr.f32.gmra.mrb[0].mxu0 %v4292
    %v4360 = vpop.f32.mrb[0].mxu0
    %v4361 = vadd.f32 %v4289, %v4360
    %v4362 = vpop.f32.mrb[0].mxu0
    %4363 = vdwg.mxu0
    %v4364 = vtanh.pop %v4361
    %vm4365 = vcmask 254976
    %4366 = vst.msk [vmem:[#allocation4] sm:$0x3] %vm4365, %v4364
    // Predicated region
    $region74: #{roberta_forward.1} parent=1 // pred_check
      _
    $region75: #{roberta_forward.1} parent=1 // pred_check_branch
      %4368 = sbr.rel (0) target = $region77
    $region76: #{roberta_forward.1} parent=1 // pred_region
      %s4370 = ssub.s32 256, 256
      %4371 = vsyncadd [#allocation3], %s4370
      %s4372 = sshll.u32 [#allocation2], 4
      %s4373 = int_to_ptr.vmem [resolvable:$true] %s4372
      %4378 = dma.vmem_to_hbm [thread:$0]  %s4373, 256, %s18, [#allocation3], 128, 128, 8
    $region77: #{roberta_forward.1} parent=1 // pred_fallthru
      _
    // Predicated region
    $region78: #{roberta_forward.1} parent=1 // pred_check
      _
    $region79: #{roberta_forward.1} parent=1 // pred_check_branch
      %4380 = sbr.rel (0) target = $region81
    $region80: #{roberta_forward.1} parent=1 // pred_region
      %s4382 = ssub.s32 32, 32
      %4383 = vsyncadd [#allocation5], %s4382
      %s4385 = sshll.u32 [#allocation4], 4
      %s4386 = int_to_ptr.vmem [resolvable:$true] %s4385
      %4388 = dma.vmem_to_hbm [thread:$0]  %s4386, 32, %s19, [#allocation5]
    $region81: #{roberta_forward.1} parent=1 // pred_fallthru
      _
    // Predicated region
    $region82: #{roberta_forward.1} parent=1 // pred_check
      _
    $region83: #{roberta_forward.1} parent=1 // pred_check_branch
      %4390 = sbr.rel (0) target = $region85
    $region84: #{roberta_forward.1} parent=1 // pred_region
      %4391 = dma.done [#allocation3], 256
    $region85: #{roberta_forward.1} parent=1 // pred_fallthru
      _
    // Predicated region
    $region86: #{roberta_forward.1} parent=1 // pred_check
      _
    $region87: #{roberta_forward.1} parent=1 // pred_check_branch
      %4393 = sbr.rel (0) target = $region89
    $region88: #{roberta_forward.1} parent=1 // pred_region
      %4394 = dma.done [#allocation5], 32
    $region89: #{roberta_forward.1} parent=1 // pred_fallthru
      _
    %4395 = vsyncpa [#allocation3], 1
    %4396 = vsyncpa [#allocation5], 1

</llo_original>
